<compile_context>
chip_gen: v7x
topology: tpu7x:2x2x1
jax: 0.10.0
libtpu: 0.0.40
codegen_flags: <defaults>
</compile_context>

<pallas_src>
import jax
import jax.numpy as jnp
from jax.experimental import pallas as pl
from jax.experimental.pallas import tpu as pltpu


def _round_up(x: int, m: int) -> int:
    return ((x + m - 1) // m) * m


def _make_snn_kernel(beta: float, threshold: float, num_steps: int,
                     Bp: int, Hp: int, Op: int):
    def snn_kernel(x_ref, w1_ref, b1_ref, w2_ref, b2_ref, spk_ref, mem_ref):
        # ---- loop-invariant work: done exactly once ----
        # fc1: cur1 = x @ W1 + b1  (does not depend on t)
        cur1 = (jnp.dot(x_ref[...], w1_ref[...],
                        preferred_element_type=jnp.float32)
                + jnp.broadcast_to(b1_ref[...], (Bp, Hp)))
        b2 = jnp.broadcast_to(b2_ref[...], (Bp, Op))   # hoisted bias broadcast
        w2 = w2_ref[...]                               # resident in vregs across the loop

        # ---- LIF state (tiny: a handful of vregs), carried through the unrolled loop ----
        mem1 = jnp.zeros((Bp, Hp), jnp.float32)
        mem2 = jnp.zeros((Bp, Op), jnp.float32)
        spk1 = jnp.zeros((Bp, Hp), jnp.float32)        # spk_{t-1} == reset_t by construction
        spk2 = jnp.zeros((Bp, Op), jnp.float32)

        # Fully unrolled time loop (static trip count, static store indices; state is only
        # ~5 vregs so live-range growth is a non-issue).
        for t in range(num_steps):
            # lif1 (Leaky, subtract reset): reset uses previous-step spike
            mem1 = beta * mem1 + cur1 - spk1 * threshold
            spk1 = (mem1 > threshold).astype(jnp.float32)

            # fc2: cur2 = spk1 @ W2 + b2
            cur2 = jnp.dot(spk1, w2, preferred_element_type=jnp.float32) + b2

            # lif2
            mem2 = beta * mem2 + cur2 - spk2 * threshold
            spk2 = (mem2 > threshold).astype(jnp.float32)

            # record this time step (lane-dense, unmasked stores into the VMEM output block)
            spk_ref[t] = spk2
            mem_ref[t] = mem2

    return snn_kernel


def snn_forward(x, w1, b1, w2, b2, *, beta: float, num_steps: int, threshold: float = 1.0):
    """x: (B, num_inputs); w1: (num_inputs, H); b1: (1, H); w2: (H, O); b2: (1, O).
    Weights are stored (in_features, out_features) == transposed PyTorch nn.Linear weight.
    Returns (spk2_rec, mem2_rec), each (num_steps, B, O) float32 (== torch.stack(dim=0))."""
    B, n_in = x.shape
    H = w1.shape[1]
    O = w2.shape[1]

    # Pad to TPU-friendly shapes: batch -> multiple of 8 (sublanes), features -> multiples
    # of 128 (lanes).  Zero padding does not change the valid outputs.
    Bp = _round_up(B, 8)
    Ip = _round_up(n_in, 128)
    Hp = _round_up(H, 128)
    Op = _round_up(O, 128)

    xp = jnp.zeros((Bp, Ip), jnp.float32).at[:B, :n_in].set(x.astype(jnp.float32))
    w1p = jnp.zeros((Ip, Hp), jnp.float32).at[:n_in, :H].set(w1.astype(jnp.float32))
    b1p = jnp.zeros((1, Hp), jnp.float32).at[:, :H].set(b1.astype(jnp.float32))
    w2p = jnp.zeros((Hp, Op), jnp.float32).at[:H, :O].set(w2.astype(jnp.float32))
    b2p = jnp.zeros((1, Op), jnp.float32).at[:, :O].set(b2.astype(jnp.float32))

    kernel = _make_snn_kernel(beta, threshold, num_steps, Bp, Hp, Op)

    out_spec = pl.BlockSpec((num_steps, Bp, Op), lambda i: (0, 0, 0))

    spk_rec, mem_rec = pl.pallas_call(
        kernel,
        out_shape=(jax.ShapeDtypeStruct((num_steps, Bp, Op), jnp.float32),
                   jax.ShapeDtypeStruct((num_steps, Bp, Op), jnp.float32)),
        grid_spec=pltpu.PrefetchScalarGridSpec(
            num_scalar_prefetch=0,
            grid=(1,),  # single invocation: whole recurrence runs in-kernel
            in_specs=[pl.BlockSpec((Bp, Ip), lambda i: (0, 0)),   # x
                      pl.BlockSpec((Ip, Hp), lambda i: (0, 0)),   # w1
                      pl.BlockSpec((1, Hp), lambda i: (0, 0)),    # b1
                      pl.BlockSpec((Hp, Op), lambda i: (0, 0)),   # w2
                      pl.BlockSpec((1, Op), lambda i: (0, 0))],   # b2
            out_specs=[out_spec, out_spec],
        ),
        compiler_params=pltpu.CompilerParams(
            dimension_semantics=("arbitrary",)),
    )(xp, w1p, b1p, w2p, b2p)

    # Strip padding back to the user-visible shapes.
    return spk_rec[:, :B, :O], mem_rec[:, :B, :O]


def snn_forward_ref(x, w1, b1, w2, b2, *, beta: float, num_steps: int):
    """Pure-JAX reference mirroring the PyTorch/snntorch loop."""
    B = x.shape[0]
    H, O = w1.shape[1], w2.shape[1]
    mem1 = jnp.zeros((B, H), jnp.float32)
    mem2 = jnp.zeros((B, O), jnp.float32)
    spks, mems = [], []
    for _ in range(num_steps):
        cur1 = x @ w1 + b1
        mem1 = beta * mem1 + cur1 - (mem1 > 1.0).astype(jnp.float32)
        spk1 = (mem1 > 1.0).astype(jnp.float32)
        cur2 = spk1 @ w2 + b2
        mem2 = beta * mem2 + cur2 - (mem2 > 1.0).astype(jnp.float32)
        spk2 = (mem2 > 1.0).astype(jnp.float32)
        spks.append(spk2)
        mems.append(mem2)
    return jnp.stack(spks, 0), jnp.stack(mems, 0)


if __name__ == "__main__":
    # Small shapes consistent with the module: Linear(num_inputs, num_hidden), Linear(num_hidden, num_outputs)
    batch, num_inputs, num_hidden, num_outputs = 8, 32, 64, 16
    beta, num_steps = 0.9, 25

    key = jax.random.PRNGKey(0)
    kx, k1, k2, k3, k4 = jax.random.split(key, 5)

    x = jax.random.normal(kx, (batch, num_inputs), jnp.float32)

    # Deterministic param init (PyTorch-Linear-style uniform(+-1/sqrt(fan_in))), stored as (in, out).
    lim1 = 1.0 / jnp.sqrt(jnp.float32(num_inputs))
    w1 = jax.random.uniform(k1, (num_inputs, num_hidden), jnp.float32, -lim1, lim1)
    b1 = jax.random.uniform(k2, (1, num_hidden), jnp.float32, -lim1, lim1)
    lim2 = 1.0 / jnp.sqrt(jnp.float32(num_hidden))
    w2 = jax.random.uniform(k3, (num_hidden, num_outputs), jnp.float32, -lim2, lim2)
    b2 = jax.random.uniform(k4, (1, num_outputs), jnp.float32, -lim2, lim2)

    spk_rec, mem_rec = snn_forward(x, w1, b1, w2, b2, beta=beta, num_steps=num_steps)
    jax.block_until_ready((spk_rec, mem_rec))

    spk_ref, mem_ref = snn_forward_ref(x, w1, b1, w2, b2, beta=beta, num_steps=num_steps)
    assert spk_rec.shape == (num_steps, batch, num_outputs)
    assert mem_rec.shape == (num_steps, batch, num_outputs)
    assert jnp.allclose(spk_rec, spk_ref, atol=1e-5)
    assert jnp.allclose(mem_rec, mem_ref, atol=1e-5)

    print("KERNEL_OK")
</pallas_src>

<mosaic_0001>
module attributes {stable_mosaic.version = 11 : i64} {
  func.func @snn_kernel(%arg0: i32, %arg1: memref<8x128xf32, #tpu.memory_space<vmem>>, %arg2: memref<128x128xf32, #tpu.memory_space<vmem>>, %arg3: memref<1x128xf32, #tpu.memory_space<vmem>>, %arg4: memref<128x128xf32, #tpu.memory_space<vmem>>, %arg5: memref<1x128xf32, #tpu.memory_space<vmem>>, %arg6: memref<25x8x128xf32, #tpu.memory_space<vmem>>, %arg7: memref<25x8x128xf32, #tpu.memory_space<vmem>>) attributes {dimension_semantics = [#tpu.dimension_semantics<arbitrary>], iteration_bounds = array<i64: 1>, scalar_prefetch = 0 : i64, scratch_operands = 0 : i64, tpu.core_type = #tpu.core_type<tc>, window_params = [{pipeline_mode = #tpu.pipeline_mode<synchronous>, transform_indices = @transform_0, window_bounds = array<i64: 8, 128>}, {pipeline_mode = #tpu.pipeline_mode<synchronous>, transform_indices = @transform_1, window_bounds = array<i64: 128, 128>}, {pipeline_mode = #tpu.pipeline_mode<synchronous>, transform_indices = @transform_2, window_bounds = array<i64: 1, 128>}, {pipeline_mode = #tpu.pipeline_mode<synchronous>, transform_indices = @transform_3, window_bounds = array<i64: 128, 128>}, {pipeline_mode = #tpu.pipeline_mode<synchronous>, transform_indices = @transform_4, window_bounds = array<i64: 1, 128>}, {pipeline_mode = #tpu.pipeline_mode<synchronous>, transform_indices = @transform_5, window_bounds = array<i64: 25, 8, 128>}, {pipeline_mode = #tpu.pipeline_mode<synchronous>, transform_indices = @transform_6, window_bounds = array<i64: 25, 8, 128>}]} {
    %c0 = arith.constant 0 : index
    %c0_0 = arith.constant 0 : index
    %0 = vector.load %arg1[%c0, %c0_0] : memref<8x128xf32, #tpu.memory_space<vmem>>, vector<8x128xf32>
    %c0_1 = arith.constant 0 : index
    %c0_2 = arith.constant 0 : index
    %1 = vector.load %arg2[%c0_1, %c0_2] : memref<128x128xf32, #tpu.memory_space<vmem>>, vector<128x128xf32>
    %cst = arith.constant dense<0.000000e+00> : vector<8x128xf32>
    %2 = tpu.matmul %0, %1, %cst {dimension_numbers = #tpu.dot_dimension_numbers<[1], [0], [0], [1], [0, 0, 1, 1], [], []>} : vector<8x128xf32>, vector<128x128xf32>, vector<8x128xf32> -> vector<8x128xf32>
    %c0_3 = arith.constant 0 : index
    %c0_4 = arith.constant 0 : index
    %3 = vector.load %arg3[%c0_3, %c0_4] : memref<1x128xf32, #tpu.memory_space<vmem>>, vector<1x128xf32>
    %4 = vector.shape_cast %3 : vector<1x128xf32> to vector<1x128xf32>
    %5 = vector.broadcast %4 : vector<1x128xf32> to vector<8x128xf32>
    %6 = arith.addf %2, %5 : vector<8x128xf32>
    %c0_5 = arith.constant 0 : index
    %c0_6 = arith.constant 0 : index
    %7 = vector.load %arg5[%c0_5, %c0_6] : memref<1x128xf32, #tpu.memory_space<vmem>>, vector<1x128xf32>
    %8 = vector.shape_cast %7 : vector<1x128xf32> to vector<1x128xf32>
    %9 = vector.broadcast %8 : vector<1x128xf32> to vector<8x128xf32>
    %c0_7 = arith.constant 0 : index
    %c0_8 = arith.constant 0 : index
    %10 = vector.load %arg4[%c0_7, %c0_8] : memref<128x128xf32, #tpu.memory_space<vmem>>, vector<128x128xf32>
    %cst_9 = arith.constant 0.000000e+00 : f32
    %11 = vector.broadcast %cst_9 : f32 to vector<8x128xf32>
    %cst_10 = arith.constant 0.000000e+00 : f32
    %12 = vector.broadcast %cst_10 : f32 to vector<8x128xf32>
    %cst_11 = arith.constant 0.000000e+00 : f32
    %13 = vector.broadcast %cst_11 : f32 to vector<8x128xf32>
    %cst_12 = arith.constant 0.000000e+00 : f32
    %14 = vector.broadcast %cst_12 : f32 to vector<8x128xf32>
    %cst_13 = arith.constant 0.899999976 : f32
    %15 = vector.broadcast %cst_13 : f32 to vector<8x128xf32>
    %16 = arith.mulf %15, %11 : vector<8x128xf32>
    %17 = arith.addf %16, %6 : vector<8x128xf32>
    %cst_14 = arith.constant 1.000000e+00 : f32
    %18 = vector.broadcast %cst_14 : f32 to vector<8x128xf32>
    %19 = arith.mulf %13, %18 : vector<8x128xf32>
    %20 = arith.subf %17, %19 : vector<8x128xf32>
    %cst_15 = arith.constant 1.000000e+00 : f32
    %21 = vector.broadcast %cst_15 : f32 to vector<8x128xf32>
    %22 = arith.cmpf ogt, %20, %21 : vector<8x128xf32>
    %23 = arith.extui %22 : vector<8x128xi1> to vector<8x128xi32>
    %24 = arith.sitofp %23 : vector<8x128xi32> to vector<8x128xf32>
    %cst_16 = arith.constant dense<0.000000e+00> : vector<8x128xf32>
    %25 = tpu.matmul %24, %10, %cst_16 {dimension_numbers = #tpu.dot_dimension_numbers<[1], [0], [0], [1], [0, 0, 1, 1], [], []>} : vector<8x128xf32>, vector<128x128xf32>, vector<8x128xf32> -> vector<8x128xf32>
    %26 = arith.addf %25, %9 : vector<8x128xf32>
    %cst_17 = arith.constant 0.899999976 : f32
    %27 = vector.broadcast %cst_17 : f32 to vector<8x128xf32>
    %28 = arith.mulf %27, %12 : vector<8x128xf32>
    %29 = arith.addf %28, %26 : vector<8x128xf32>
    %cst_18 = arith.constant 1.000000e+00 : f32
    %30 = vector.broadcast %cst_18 : f32 to vector<8x128xf32>
    %31 = arith.mulf %14, %30 : vector<8x128xf32>
    %32 = arith.subf %29, %31 : vector<8x128xf32>
    %cst_19 = arith.constant 1.000000e+00 : f32
    %33 = vector.broadcast %cst_19 : f32 to vector<8x128xf32>
    %34 = arith.cmpf ogt, %32, %33 : vector<8x128xf32>
    %35 = arith.extui %34 : vector<8x128xi1> to vector<8x128xi32>
    %36 = arith.sitofp %35 : vector<8x128xi32> to vector<8x128xf32>
    %c0_20 = arith.constant 0 : index
    %c0_21 = arith.constant 0 : index
    %c0_22 = arith.constant 0 : index
    %37 = vector.load %arg6[%c0_20, %c0_21, %c0_22] : memref<25x8x128xf32, #tpu.memory_space<vmem>>, vector<1x8x128xf32>
    %38 = vector.shape_cast %37 : vector<1x8x128xf32> to vector<8x128xf32>
    %39 = vector.shape_cast %36 : vector<8x128xf32> to vector<1x8x128xf32>
    tpu.vector_store %arg6[%c0_20, %c0_21, %c0_22], %39 {strides = array<i32>} : memref<25x8x128xf32, #tpu.memory_space<vmem>>, vector<1x8x128xf32>,
    %c0_23 = arith.constant 0 : index
    %c0_24 = arith.constant 0 : index
    %c0_25 = arith.constant 0 : index
    %40 = vector.load %arg7[%c0_23, %c0_24, %c0_25] : memref<25x8x128xf32, #tpu.memory_space<vmem>>, vector<1x8x128xf32>
    %41 = vector.shape_cast %40 : vector<1x8x128xf32> to vector<8x128xf32>
    %42 = vector.shape_cast %32 : vector<8x128xf32> to vector<1x8x128xf32>
    tpu.vector_store %arg7[%c0_23, %c0_24, %c0_25], %42 {strides = array<i32>} : memref<25x8x128xf32, #tpu.memory_space<vmem>>, vector<1x8x128xf32>,
    %cst_26 = arith.constant 0.899999976 : f32
    %43 = vector.broadcast %cst_26 : f32 to vector<8x128xf32>
    %44 = arith.mulf %43, %20 : vector<8x128xf32>
    %45 = arith.addf %44, %6 : vector<8x128xf32>
    %cst_27 = arith.constant 1.000000e+00 : f32
    %46 = vector.broadcast %cst_27 : f32 to vector<8x128xf32>
    %47 = arith.mulf %24, %46 : vector<8x128xf32>
    %48 = arith.subf %45, %47 : vector<8x128xf32>
    %cst_28 = arith.constant 1.000000e+00 : f32
    %49 = vector.broadcast %cst_28 : f32 to vector<8x128xf32>
    %50 = arith.cmpf ogt, %48, %49 : vector<8x128xf32>
    %51 = arith.extui %50 : vector<8x128xi1> to vector<8x128xi32>
    %52 = arith.sitofp %51 : vector<8x128xi32> to vector<8x128xf32>
    %cst_29 = arith.constant dense<0.000000e+00> : vector<8x128xf32>
    %53 = tpu.matmul %52, %10, %cst_29 {dimension_numbers = #tpu.dot_dimension_numbers<[1], [0], [0], [1], [0, 0, 1, 1], [], []>} : vector<8x128xf32>, vector<128x128xf32>, vector<8x128xf32> -> vector<8x128xf32>
    %54 = arith.addf %53, %9 : vector<8x128xf32>
    %cst_30 = arith.constant 0.899999976 : f32
    %55 = vector.broadcast %cst_30 : f32 to vector<8x128xf32>
    %56 = arith.mulf %55, %32 : vector<8x128xf32>
    %57 = arith.addf %56, %54 : vector<8x128xf32>
    %cst_31 = arith.constant 1.000000e+00 : f32
    %58 = vector.broadcast %cst_31 : f32 to vector<8x128xf32>
    %59 = arith.mulf %36, %58 : vector<8x128xf32>
    %60 = arith.subf %57, %59 : vector<8x128xf32>
    %cst_32 = arith.constant 1.000000e+00 : f32
    %61 = vector.broadcast %cst_32 : f32 to vector<8x128xf32>
    %62 = arith.cmpf ogt, %60, %61 : vector<8x128xf32>
    %63 = arith.extui %62 : vector<8x128xi1> to vector<8x128xi32>
    %64 = arith.sitofp %63 : vector<8x128xi32> to vector<8x128xf32>
    %c1 = arith.constant 1 : index
    %c0_33 = arith.constant 0 : index
    %c0_34 = arith.constant 0 : index
    %65 = vector.load %arg6[%c1, %c0_33, %c0_34] : memref<25x8x128xf32, #tpu.memory_space<vmem>>, vector<1x8x128xf32>
    %66 = vector.shape_cast %65 : vector<1x8x128xf32> to vector<8x128xf32>
    %67 = vector.shape_cast %64 : vector<8x128xf32> to vector<1x8x128xf32>
    tpu.vector_store %arg6[%c1, %c0_33, %c0_34], %67 {strides = array<i32>} : memref<25x8x128xf32, #tpu.memory_space<vmem>>, vector<1x8x128xf32>,
    %c1_35 = arith.constant 1 : index
    %c0_36 = arith.constant 0 : index
    %c0_37 = arith.constant 0 : index
    %68 = vector.load %arg7[%c1_35, %c0_36, %c0_37] : memref<25x8x128xf32, #tpu.memory_space<vmem>>, vector<1x8x128xf32>
    %69 = vector.shape_cast %68 : vector<1x8x128xf32> to vector<8x128xf32>
    %70 = vector.shape_cast %60 : vector<8x128xf32> to vector<1x8x128xf32>
    tpu.vector_store %arg7[%c1_35, %c0_36, %c0_37], %70 {strides = array<i32>} : memref<25x8x128xf32, #tpu.memory_space<vmem>>, vector<1x8x128xf32>,
    %cst_38 = arith.constant 0.899999976 : f32
    %71 = vector.broadcast %cst_38 : f32 to vector<8x128xf32>
    %72 = arith.mulf %71, %48 : vector<8x128xf32>
    %73 = arith.addf %72, %6 : vector<8x128xf32>
    %cst_39 = arith.constant 1.000000e+00 : f32
    %74 = vector.broadcast %cst_39 : f32 to vector<8x128xf32>
    %75 = arith.mulf %52, %74 : vector<8x128xf32>
    %76 = arith.subf %73, %75 : vector<8x128xf32>
    %cst_40 = arith.constant 1.000000e+00 : f32
    %77 = vector.broadcast %cst_40 : f32 to vector<8x128xf32>
    %78 = arith.cmpf ogt, %76, %77 : vector<8x128xf32>
    %79 = arith.extui %78 : vector<8x128xi1> to vector<8x128xi32>
    %80 = arith.sitofp %79 : vector<8x128xi32> to vector<8x128xf32>
    %cst_41 = arith.constant dense<0.000000e+00> : vector<8x128xf32>
    %81 = tpu.matmul %80, %10, %cst_41 {dimension_numbers = #tpu.dot_dimension_numbers<[1], [0], [0], [1], [0, 0, 1, 1], [], []>} : vector<8x128xf32>, vector<128x128xf32>, vector<8x128xf32> -> vector<8x128xf32>
    %82 = arith.addf %81, %9 : vector<8x128xf32>
    %cst_42 = arith.constant 0.899999976 : f32
    %83 = vector.broadcast %cst_42 : f32 to vector<8x128xf32>
    %84 = arith.mulf %83, %60 : vector<8x128xf32>
    %85 = arith.addf %84, %82 : vector<8x128xf32>
    %cst_43 = arith.constant 1.000000e+00 : f32
    %86 = vector.broadcast %cst_43 : f32 to vector<8x128xf32>
    %87 = arith.mulf %64, %86 : vector<8x128xf32>
    %88 = arith.subf %85, %87 : vector<8x128xf32>
    %cst_44 = arith.constant 1.000000e+00 : f32
    %89 = vector.broadcast %cst_44 : f32 to vector<8x128xf32>
    %90 = arith.cmpf ogt, %88, %89 : vector<8x128xf32>
    %91 = arith.extui %90 : vector<8x128xi1> to vector<8x128xi32>
    %92 = arith.sitofp %91 : vector<8x128xi32> to vector<8x128xf32>
    %c2 = arith.constant 2 : index
    %c0_45 = arith.constant 0 : index
    %c0_46 = arith.constant 0 : index
    %93 = vector.load %arg6[%c2, %c0_45, %c0_46] : memref<25x8x128xf32, #tpu.memory_space<vmem>>, vector<1x8x128xf32>
    %94 = vector.shape_cast %93 : vector<1x8x128xf32> to vector<8x128xf32>
    %95 = vector.shape_cast %92 : vector<8x128xf32> to vector<1x8x128xf32>
    tpu.vector_store %arg6[%c2, %c0_45, %c0_46], %95 {strides = array<i32>} : memref<25x8x128xf32, #tpu.memory_space<vmem>>, vector<1x8x128xf32>,
    %c2_47 = arith.constant 2 : index
    %c0_48 = arith.constant 0 : index
    %c0_49 = arith.constant 0 : index
    %96 = vector.load %arg7[%c2_47, %c0_48, %c0_49] : memref<25x8x128xf32, #tpu.memory_space<vmem>>, vector<1x8x128xf32>
    %97 = vector.shape_cast %96 : vector<1x8x128xf32> to vector<8x128xf32>
    %98 = vector.shape_cast %88 : vector<8x128xf32> to vector<1x8x128xf32>
    tpu.vector_store %arg7[%c2_47, %c0_48, %c0_49], %98 {strides = array<i32>} : memref<25x8x128xf32, #tpu.memory_space<vmem>>, vector<1x8x128xf32>,
    %cst_50 = arith.constant 0.899999976 : f32
    %99 = vector.broadcast %cst_50 : f32 to vector<8x128xf32>
    %100 = arith.mulf %99, %76 : vector<8x128xf32>
    %101 = arith.addf %100, %6 : vector<8x128xf32>
    %cst_51 = arith.constant 1.000000e+00 : f32
    %102 = vector.broadcast %cst_51 : f32 to vector<8x128xf32>
    %103 = arith.mulf %80, %102 : vector<8x128xf32>
    %104 = arith.subf %101, %103 : vector<8x128xf32>
    %cst_52 = arith.constant 1.000000e+00 : f32
    %105 = vector.broadcast %cst_52 : f32 to vector<8x128xf32>
    %106 = arith.cmpf ogt, %104, %105 : vector<8x128xf32>
    %107 = arith.extui %106 : vector<8x128xi1> to vector<8x128xi32>
    %108 = arith.sitofp %107 : vector<8x128xi32> to vector<8x128xf32>
    %cst_53 = arith.constant dense<0.000000e+00> : vector<8x128xf32>
    %109 = tpu.matmul %108, %10, %cst_53 {dimension_numbers = #tpu.dot_dimension_numbers<[1], [0], [0], [1], [0, 0, 1, 1], [], []>} : vector<8x128xf32>, vector<128x128xf32>, vector<8x128xf32> -> vector<8x128xf32>
    %110 = arith.addf %109, %9 : vector<8x128xf32>
    %cst_54 = arith.constant 0.899999976 : f32
    %111 = vector.broadcast %cst_54 : f32 to vector<8x128xf32>
    %112 = arith.mulf %111, %88 : vector<8x128xf32>
    %113 = arith.addf %112, %110 : vector<8x128xf32>
    %cst_55 = arith.constant 1.000000e+00 : f32
    %114 = vector.broadcast %cst_55 : f32 to vector<8x128xf32>
    %115 = arith.mulf %92, %114 : vector<8x128xf32>
    %116 = arith.subf %113, %115 : vector<8x128xf32>
    %cst_56 = arith.constant 1.000000e+00 : f32
    %117 = vector.broadcast %cst_56 : f32 to vector<8x128xf32>
    %118 = arith.cmpf ogt, %116, %117 : vector<8x128xf32>
    %119 = arith.extui %118 : vector<8x128xi1> to vector<8x128xi32>
    %120 = arith.sitofp %119 : vector<8x128xi32> to vector<8x128xf32>
    %c3 = arith.constant 3 : index
    %c0_57 = arith.constant 0 : index
    %c0_58 = arith.constant 0 : index
    %121 = vector.load %arg6[%c3, %c0_57, %c0_58] : memref<25x8x128xf32, #tpu.memory_space<vmem>>, vector<1x8x128xf32>
    %122 = vector.shape_cast %121 : vector<1x8x128xf32> to vector<8x128xf32>
    %123 = vector.shape_cast %120 : vector<8x128xf32> to vector<1x8x128xf32>
    tpu.vector_store %arg6[%c3, %c0_57, %c0_58], %123 {strides = array<i32>} : memref<25x8x128xf32, #tpu.memory_space<vmem>>, vector<1x8x128xf32>,
    %c3_59 = arith.constant 3 : index
    %c0_60 = arith.constant 0 : index
    %c0_61 = arith.constant 0 : index
    %124 = vector.load %arg7[%c3_59, %c0_60, %c0_61] : memref<25x8x128xf32, #tpu.memory_space<vmem>>, vector<1x8x128xf32>
    %125 = vector.shape_cast %124 : vector<1x8x128xf32> to vector<8x128xf32>
    %126 = vector.shape_cast %116 : vector<8x128xf32> to vector<1x8x128xf32>
    tpu.vector_store %arg7[%c3_59, %c0_60, %c0_61], %126 {strides = array<i32>} : memref<25x8x128xf32, #tpu.memory_space<vmem>>, vector<1x8x128xf32>,
    %cst_62 = arith.constant 0.899999976 : f32
    %127 = vector.broadcast %cst_62 : f32 to vector<8x128xf32>
    %128 = arith.mulf %127, %104 : vector<8x128xf32>
    %129 = arith.addf %128, %6 : vector<8x128xf32>
    %cst_63 = arith.constant 1.000000e+00 : f32
    %130 = vector.broadcast %cst_63 : f32 to vector<8x128xf32>
    %131 = arith.mulf %108, %130 : vector<8x128xf32>
    %132 = arith.subf %129, %131 : vector<8x128xf32>
    %cst_64 = arith.constant 1.000000e+00 : f32
    %133 = vector.broadcast %cst_64 : f32 to vector<8x128xf32>
    %134 = arith.cmpf ogt, %132, %133 : vector<8x128xf32>
    %135 = arith.extui %134 : vector<8x128xi1> to vector<8x128xi32>
    %136 = arith.sitofp %135 : vector<8x128xi32> to vector<8x128xf32>
    %cst_65 = arith.constant dense<0.000000e+00> : vector<8x128xf32>
    %137 = tpu.matmul %136, %10, %cst_65 {dimension_numbers = #tpu.dot_dimension_numbers<[1], [0], [0], [1], [0, 0, 1, 1], [], []>} : vector<8x128xf32>, vector<128x128xf32>, vector<8x128xf32> -> vector<8x128xf32>
    %138 = arith.addf %137, %9 : vector<8x128xf32>
    %cst_66 = arith.constant 0.899999976 : f32
    %139 = vector.broadcast %cst_66 : f32 to vector<8x128xf32>
    %140 = arith.mulf %139, %116 : vector<8x128xf32>
    %141 = arith.addf %140, %138 : vector<8x128xf32>
    %cst_67 = arith.constant 1.000000e+00 : f32
    %142 = vector.broadcast %cst_67 : f32 to vector<8x128xf32>
    %143 = arith.mulf %120, %142 : vector<8x128xf32>
    %144 = arith.subf %141, %143 : vector<8x128xf32>
    %cst_68 = arith.constant 1.000000e+00 : f32
    %145 = vector.broadcast %cst_68 : f32 to vector<8x128xf32>
    %146 = arith.cmpf ogt, %144, %145 : vector<8x128xf32>
    %147 = arith.extui %146 : vector<8x128xi1> to vector<8x128xi32>
    %148 = arith.sitofp %147 : vector<8x128xi32> to vector<8x128xf32>
    %c4 = arith.constant 4 : index
    %c0_69 = arith.constant 0 : index
    %c0_70 = arith.constant 0 : index
    %149 = vector.load %arg6[%c4, %c0_69, %c0_70] : memref<25x8x128xf32, #tpu.memory_space<vmem>>, vector<1x8x128xf32>
    %150 = vector.shape_cast %149 : vector<1x8x128xf32> to vector<8x128xf32>
    %151 = vector.shape_cast %148 : vector<8x128xf32> to vector<1x8x128xf32>
    tpu.vector_store %arg6[%c4, %c0_69, %c0_70], %151 {strides = array<i32>} : memref<25x8x128xf32, #tpu.memory_space<vmem>>, vector<1x8x128xf32>,
    %c4_71 = arith.constant 4 : index
    %c0_72 = arith.constant 0 : index
    %c0_73 = arith.constant 0 : index
    %152 = vector.load %arg7[%c4_71, %c0_72, %c0_73] : memref<25x8x128xf32, #tpu.memory_space<vmem>>, vector<1x8x128xf32>
    %153 = vector.shape_cast %152 : vector<1x8x128xf32> to vector<8x128xf32>
    %154 = vector.shape_cast %144 : vector<8x128xf32> to vector<1x8x128xf32>
    tpu.vector_store %arg7[%c4_71, %c0_72, %c0_73], %154 {strides = array<i32>} : memref<25x8x128xf32, #tpu.memory_space<vmem>>, vector<1x8x128xf32>,
    %cst_74 = arith.constant 0.899999976 : f32
    %155 = vector.broadcast %cst_74 : f32 to vector<8x128xf32>
    %156 = arith.mulf %155, %132 : vector<8x128xf32>
    %157 = arith.addf %156, %6 : vector<8x128xf32>
    %cst_75 = arith.constant 1.000000e+00 : f32
    %158 = vector.broadcast %cst_75 : f32 to vector<8x128xf32>
    %159 = arith.mulf %136, %158 : vector<8x128xf32>
    %160 = arith.subf %157, %159 : vector<8x128xf32>
    %cst_76 = arith.constant 1.000000e+00 : f32
    %161 = vector.broadcast %cst_76 : f32 to vector<8x128xf32>
    %162 = arith.cmpf ogt, %160, %161 : vector<8x128xf32>
    %163 = arith.extui %162 : vector<8x128xi1> to vector<8x128xi32>
    %164 = arith.sitofp %163 : vector<8x128xi32> to vector<8x128xf32>
    %cst_77 = arith.constant dense<0.000000e+00> : vector<8x128xf32>
    %165 = tpu.matmul %164, %10, %cst_77 {dimension_numbers = #tpu.dot_dimension_numbers<[1], [0], [0], [1], [0, 0, 1, 1], [], []>} : vector<8x128xf32>, vector<128x128xf32>, vector<8x128xf32> -> vector<8x128xf32>
    %166 = arith.addf %165, %9 : vector<8x128xf32>
    %cst_78 = arith.constant 0.899999976 : f32
    %167 = vector.broadcast %cst_78 : f32 to vector<8x128xf32>
    %168 = arith.mulf %167, %144 : vector<8x128xf32>
    %169 = arith.addf %168, %166 : vector<8x128xf32>
    %cst_79 = arith.constant 1.000000e+00 : f32
    %170 = vector.broadcast %cst_79 : f32 to vector<8x128xf32>
    %171 = arith.mulf %148, %170 : vector<8x128xf32>
    %172 = arith.subf %169, %171 : vector<8x128xf32>
    %cst_80 = arith.constant 1.000000e+00 : f32
    %173 = vector.broadcast %cst_80 : f32 to vector<8x128xf32>
    %174 = arith.cmpf ogt, %172, %173 : vector<8x128xf32>
    %175 = arith.extui %174 : vector<8x128xi1> to vector<8x128xi32>
    %176 = arith.sitofp %175 : vector<8x128xi32> to vector<8x128xf32>
    %c5 = arith.constant 5 : index
    %c0_81 = arith.constant 0 : index
    %c0_82 = arith.constant 0 : index
    %177 = vector.load %arg6[%c5, %c0_81, %c0_82] : memref<25x8x128xf32, #tpu.memory_space<vmem>>, vector<1x8x128xf32>
    %178 = vector.shape_cast %177 : vector<1x8x128xf32> to vector<8x128xf32>
    %179 = vector.shape_cast %176 : vector<8x128xf32> to vector<1x8x128xf32>
    tpu.vector_store %arg6[%c5, %c0_81, %c0_82], %179 {strides = array<i32>} : memref<25x8x128xf32, #tpu.memory_space<vmem>>, vector<1x8x128xf32>,
    %c5_83 = arith.constant 5 : index
    %c0_84 = arith.constant 0 : index
    %c0_85 = arith.constant 0 : index
    %180 = vector.load %arg7[%c5_83, %c0_84, %c0_85] : memref<25x8x128xf32, #tpu.memory_space<vmem>>, vector<1x8x128xf32>
    %181 = vector.shape_cast %180 : vector<1x8x128xf32> to vector<8x128xf32>
    %182 = vector.shape_cast %172 : vector<8x128xf32> to vector<1x8x128xf32>
    tpu.vector_store %arg7[%c5_83, %c0_84, %c0_85], %182 {strides = array<i32>} : memref<25x8x128xf32, #tpu.memory_space<vmem>>, vector<1x8x128xf32>,
    %cst_86 = arith.constant 0.899999976 : f32
    %183 = vector.broadcast %cst_86 : f32 to vector<8x128xf32>
    %184 = arith.mulf %183, %160 : vector<8x128xf32>
    %185 = arith.addf %184, %6 : vector<8x128xf32>
    %cst_87 = arith.constant 1.000000e+00 : f32
    %186 = vector.broadcast %cst_87 : f32 to vector<8x128xf32>
    %187 = arith.mulf %164, %186 : vector<8x128xf32>
    %188 = arith.subf %185, %187 : vector<8x128xf32>
    %cst_88 = arith.constant 1.000000e+00 : f32
    %189 = vector.broadcast %cst_88 : f32 to vector<8x128xf32>
    %190 = arith.cmpf ogt, %188, %189 : vector<8x128xf32>
    %191 = arith.extui %190 : vector<8x128xi1> to vector<8x128xi32>
    %192 = arith.sitofp %191 : vector<8x128xi32> to vector<8x128xf32>
    %cst_89 = arith.constant dense<0.000000e+00> : vector<8x128xf32>
    %193 = tpu.matmul %192, %10, %cst_89 {dimension_numbers = #tpu.dot_dimension_numbers<[1], [0], [0], [1], [0, 0, 1, 1], [], []>} : vector<8x128xf32>, vector<128x128xf32>, vector<8x128xf32> -> vector<8x128xf32>
    %194 = arith.addf %193, %9 : vector<8x128xf32>
    %cst_90 = arith.constant 0.899999976 : f32
    %195 = vector.broadcast %cst_90 : f32 to vector<8x128xf32>
    %196 = arith.mulf %195, %172 : vector<8x128xf32>
    %197 = arith.addf %196, %194 : vector<8x128xf32>
    %cst_91 = arith.constant 1.000000e+00 : f32
    %198 = vector.broadcast %cst_91 : f32 to vector<8x128xf32>
    %199 = arith.mulf %176, %198 : vector<8x128xf32>
    %200 = arith.subf %197, %199 : vector<8x128xf32>
    %cst_92 = arith.constant 1.000000e+00 : f32
    %201 = vector.broadcast %cst_92 : f32 to vector<8x128xf32>
    %202 = arith.cmpf ogt, %200, %201 : vector<8x128xf32>
    %203 = arith.extui %202 : vector<8x128xi1> to vector<8x128xi32>
    %204 = arith.sitofp %203 : vector<8x128xi32> to vector<8x128xf32>
    %c6 = arith.constant 6 : index
    %c0_93 = arith.constant 0 : index
    %c0_94 = arith.constant 0 : index
    %205 = vector.load %arg6[%c6, %c0_93, %c0_94] : memref<25x8x128xf32, #tpu.memory_space<vmem>>, vector<1x8x128xf32>
    %206 = vector.shape_cast %205 : vector<1x8x128xf32> to vector<8x128xf32>
    %207 = vector.shape_cast %204 : vector<8x128xf32> to vector<1x8x128xf32>
    tpu.vector_store %arg6[%c6, %c0_93, %c0_94], %207 {strides = array<i32>} : memref<25x8x128xf32, #tpu.memory_space<vmem>>, vector<1x8x128xf32>,
    %c6_95 = arith.constant 6 : index
    %c0_96 = arith.constant 0 : index
    %c0_97 = arith.constant 0 : index
    %208 = vector.load %arg7[%c6_95, %c0_96, %c0_97] : memref<25x8x128xf32, #tpu.memory_space<vmem>>, vector<1x8x128xf32>
    %209 = vector.shape_cast %208 : vector<1x8x128xf32> to vector<8x128xf32>
    %210 = vector.shape_cast %200 : vector<8x128xf32> to vector<1x8x128xf32>
    tpu.vector_store %arg7[%c6_95, %c0_96, %c0_97], %210 {strides = array<i32>} : memref<25x8x128xf32, #tpu.memory_space<vmem>>, vector<1x8x128xf32>,
    %cst_98 = arith.constant 0.899999976 : f32
    %211 = vector.broadcast %cst_98 : f32 to vector<8x128xf32>
    %212 = arith.mulf %211, %188 : vector<8x128xf32>
    %213 = arith.addf %212, %6 : vector<8x128xf32>
    %cst_99 = arith.constant 1.000000e+00 : f32
    %214 = vector.broadcast %cst_99 : f32 to vector<8x128xf32>
    %215 = arith.mulf %192, %214 : vector<8x128xf32>
    %216 = arith.subf %213, %215 : vector<8x128xf32>
    %cst_100 = arith.constant 1.000000e+00 : f32
    %217 = vector.broadcast %cst_100 : f32 to vector<8x128xf32>
    %218 = arith.cmpf ogt, %216, %217 : vector<8x128xf32>
    %219 = arith.extui %218 : vector<8x128xi1> to vector<8x128xi32>
    %220 = arith.sitofp %219 : vector<8x128xi32> to vector<8x128xf32>
    %cst_101 = arith.constant dense<0.000000e+00> : vector<8x128xf32>
    %221 = tpu.matmul %220, %10, %cst_101 {dimension_numbers = #tpu.dot_dimension_numbers<[1], [0], [0], [1], [0, 0, 1, 1], [], []>} : vector<8x128xf32>, vector<128x128xf32>, vector<8x128xf32> -> vector<8x128xf32>
    %222 = arith.addf %221, %9 : vector<8x128xf32>
    %cst_102 = arith.constant 0.899999976 : f32
    %223 = vector.broadcast %cst_102 : f32 to vector<8x128xf32>
    %224 = arith.mulf %223, %200 : vector<8x128xf32>
    %225 = arith.addf %224, %222 : vector<8x128xf32>
    %cst_103 = arith.constant 1.000000e+00 : f32
    %226 = vector.broadcast %cst_103 : f32 to vector<8x128xf32>
    %227 = arith.mulf %204, %226 : vector<8x128xf32>
    %228 = arith.subf %225, %227 : vector<8x128xf32>
    %cst_104 = arith.constant 1.000000e+00 : f32
    %229 = vector.broadcast %cst_104 : f32 to vector<8x128xf32>
    %230 = arith.cmpf ogt, %228, %229 : vector<8x128xf32>
    %231 = arith.extui %230 : vector<8x128xi1> to vector<8x128xi32>
    %232 = arith.sitofp %231 : vector<8x128xi32> to vector<8x128xf32>
    %c7 = arith.constant 7 : index
    %c0_105 = arith.constant 0 : index
    %c0_106 = arith.constant 0 : index
    %233 = vector.load %arg6[%c7, %c0_105, %c0_106] : memref<25x8x128xf32, #tpu.memory_space<vmem>>, vector<1x8x128xf32>
    %234 = vector.shape_cast %233 : vector<1x8x128xf32> to vector<8x128xf32>
    %235 = vector.shape_cast %232 : vector<8x128xf32> to vector<1x8x128xf32>
    tpu.vector_store %arg6[%c7, %c0_105, %c0_106], %235 {strides = array<i32>} : memref<25x8x128xf32, #tpu.memory_space<vmem>>, vector<1x8x128xf32>,
    %c7_107 = arith.constant 7 : index
    %c0_108 = arith.constant 0 : index
    %c0_109 = arith.constant 0 : index
    %236 = vector.load %arg7[%c7_107, %c0_108, %c0_109] : memref<25x8x128xf32, #tpu.memory_space<vmem>>, vector<1x8x128xf32>
    %237 = vector.shape_cast %236 : vector<1x8x128xf32> to vector<8x128xf32>
    %238 = vector.shape_cast %228 : vector<8x128xf32> to vector<1x8x128xf32>
    tpu.vector_store %arg7[%c7_107, %c0_108, %c0_109], %238 {strides = array<i32>} : memref<25x8x128xf32, #tpu.memory_space<vmem>>, vector<1x8x128xf32>,
    %cst_110 = arith.constant 0.899999976 : f32
    %239 = vector.broadcast %cst_110 : f32 to vector<8x128xf32>
    %240 = arith.mulf %239, %216 : vector<8x128xf32>
    %241 = arith.addf %240, %6 : vector<8x128xf32>
    %cst_111 = arith.constant 1.000000e+00 : f32
    %242 = vector.broadcast %cst_111 : f32 to vector<8x128xf32>
    %243 = arith.mulf %220, %242 : vector<8x128xf32>
    %244 = arith.subf %241, %243 : vector<8x128xf32>
    %cst_112 = arith.constant 1.000000e+00 : f32
    %245 = vector.broadcast %cst_112 : f32 to vector<8x128xf32>
    %246 = arith.cmpf ogt, %244, %245 : vector<8x128xf32>
    %247 = arith.extui %246 : vector<8x128xi1> to vector<8x128xi32>
    %248 = arith.sitofp %247 : vector<8x128xi32> to vector<8x128xf32>
    %cst_113 = arith.constant dense<0.000000e+00> : vector<8x128xf32>
    %249 = tpu.matmul %248, %10, %cst_113 {dimension_numbers = #tpu.dot_dimension_numbers<[1], [0], [0], [1], [0, 0, 1, 1], [], []>} : vector<8x128xf32>, vector<128x128xf32>, vector<8x128xf32> -> vector<8x128xf32>
    %250 = arith.addf %249, %9 : vector<8x128xf32>
    %cst_114 = arith.constant 0.899999976 : f32
    %251 = vector.broadcast %cst_114 : f32 to vector<8x128xf32>
    %252 = arith.mulf %251, %228 : vector<8x128xf32>
    %253 = arith.addf %252, %250 : vector<8x128xf32>
    %cst_115 = arith.constant 1.000000e+00 : f32
    %254 = vector.broadcast %cst_115 : f32 to vector<8x128xf32>
    %255 = arith.mulf %232, %254 : vector<8x128xf32>
    %256 = arith.subf %253, %255 : vector<8x128xf32>
    %cst_116 = arith.constant 1.000000e+00 : f32
    %257 = vector.broadcast %cst_116 : f32 to vector<8x128xf32>
    %258 = arith.cmpf ogt, %256, %257 : vector<8x128xf32>
    %259 = arith.extui %258 : vector<8x128xi1> to vector<8x128xi32>
    %260 = arith.sitofp %259 : vector<8x128xi32> to vector<8x128xf32>
    %c8 = arith.constant 8 : index
    %c0_117 = arith.constant 0 : index
    %c0_118 = arith.constant 0 : index
    %261 = vector.load %arg6[%c8, %c0_117, %c0_118] : memref<25x8x128xf32, #tpu.memory_space<vmem>>, vector<1x8x128xf32>
    %262 = vector.shape_cast %261 : vector<1x8x128xf32> to vector<8x128xf32>
    %263 = vector.shape_cast %260 : vector<8x128xf32> to vector<1x8x128xf32>
    tpu.vector_store %arg6[%c8, %c0_117, %c0_118], %263 {strides = array<i32>} : memref<25x8x128xf32, #tpu.memory_space<vmem>>, vector<1x8x128xf32>,
    %c8_119 = arith.constant 8 : index
    %c0_120 = arith.constant 0 : index
    %c0_121 = arith.constant 0 : index
    %264 = vector.load %arg7[%c8_119, %c0_120, %c0_121] : memref<25x8x128xf32, #tpu.memory_space<vmem>>, vector<1x8x128xf32>
    %265 = vector.shape_cast %264 : vector<1x8x128xf32> to vector<8x128xf32>
    %266 = vector.shape_cast %256 : vector<8x128xf32> to vector<1x8x128xf32>
    tpu.vector_store %arg7[%c8_119, %c0_120, %c0_121], %266 {strides = array<i32>} : memref<25x8x128xf32, #tpu.memory_space<vmem>>, vector<1x8x128xf32>,
    %cst_122 = arith.constant 0.899999976 : f32
    %267 = vector.broadcast %cst_122 : f32 to vector<8x128xf32>
    %268 = arith.mulf %267, %244 : vector<8x128xf32>
    %269 = arith.addf %268, %6 : vector<8x128xf32>
    %cst_123 = arith.constant 1.000000e+00 : f32
    %270 = vector.broadcast %cst_123 : f32 to vector<8x128xf32>
    %271 = arith.mulf %248, %270 : vector<8x128xf32>
    %272 = arith.subf %269, %271 : vector<8x128xf32>
    %cst_124 = arith.constant 1.000000e+00 : f32
    %273 = vector.broadcast %cst_124 : f32 to vector<8x128xf32>
    %274 = arith.cmpf ogt, %272, %273 : vector<8x128xf32>
    %275 = arith.extui %274 : vector<8x128xi1> to vector<8x128xi32>
    %276 = arith.sitofp %275 : vector<8x128xi32> to vector<8x128xf32>
    %cst_125 = arith.constant dense<0.000000e+00> : vector<8x128xf32>
    %277 = tpu.matmul %276, %10, %cst_125 {dimension_numbers = #tpu.dot_dimension_numbers<[1], [0], [0], [1], [0, 0, 1, 1], [], []>} : vector<8x128xf32>, vector<128x128xf32>, vector<8x128xf32> -> vector<8x128xf32>
    %278 = arith.addf %277, %9 : vector<8x128xf32>
    %cst_126 = arith.constant 0.899999976 : f32
    %279 = vector.broadcast %cst_126 : f32 to vector<8x128xf32>
    %280 = arith.mulf %279, %256 : vector<8x128xf32>
    %281 = arith.addf %280, %278 : vector<8x128xf32>
    %cst_127 = arith.constant 1.000000e+00 : f32
    %282 = vector.broadcast %cst_127 : f32 to vector<8x128xf32>
    %283 = arith.mulf %260, %282 : vector<8x128xf32>
    %284 = arith.subf %281, %283 : vector<8x128xf32>
    %cst_128 = arith.constant 1.000000e+00 : f32
    %285 = vector.broadcast %cst_128 : f32 to vector<8x128xf32>
    %286 = arith.cmpf ogt, %284, %285 : vector<8x128xf32>
    %287 = arith.extui %286 : vector<8x128xi1> to vector<8x128xi32>
    %288 = arith.sitofp %287 : vector<8x128xi32> to vector<8x128xf32>
    %c9 = arith.constant 9 : index
    %c0_129 = arith.constant 0 : index
    %c0_130 = arith.constant 0 : index
    %289 = vector.load %arg6[%c9, %c0_129, %c0_130] : memref<25x8x128xf32, #tpu.memory_space<vmem>>, vector<1x8x128xf32>
    %290 = vector.shape_cast %289 : vector<1x8x128xf32> to vector<8x128xf32>
    %291 = vector.shape_cast %288 : vector<8x128xf32> to vector<1x8x128xf32>
    tpu.vector_store %arg6[%c9, %c0_129, %c0_130], %291 {strides = array<i32>} : memref<25x8x128xf32, #tpu.memory_space<vmem>>, vector<1x8x128xf32>,
    %c9_131 = arith.constant 9 : index
    %c0_132 = arith.constant 0 : index
    %c0_133 = arith.constant 0 : index
    %292 = vector.load %arg7[%c9_131, %c0_132, %c0_133] : memref<25x8x128xf32, #tpu.memory_space<vmem>>, vector<1x8x128xf32>
    %293 = vector.shape_cast %292 : vector<1x8x128xf32> to vector<8x128xf32>
    %294 = vector.shape_cast %284 : vector<8x128xf32> to vector<1x8x128xf32>
    tpu.vector_store %arg7[%c9_131, %c0_132, %c0_133], %294 {strides = array<i32>} : memref<25x8x128xf32, #tpu.memory_space<vmem>>, vector<1x8x128xf32>,
    %cst_134 = arith.constant 0.899999976 : f32
    %295 = vector.broadcast %cst_134 : f32 to vector<8x128xf32>
    %296 = arith.mulf %295, %272 : vector<8x128xf32>
    %297 = arith.addf %296, %6 : vector<8x128xf32>
    %cst_135 = arith.constant 1.000000e+00 : f32
    %298 = vector.broadcast %cst_135 : f32 to vector<8x128xf32>
    %299 = arith.mulf %276, %298 : vector<8x128xf32>
    %300 = arith.subf %297, %299 : vector<8x128xf32>
    %cst_136 = arith.constant 1.000000e+00 : f32
    %301 = vector.broadcast %cst_136 : f32 to vector<8x128xf32>
    %302 = arith.cmpf ogt, %300, %301 : vector<8x128xf32>
    %303 = arith.extui %302 : vector<8x128xi1> to vector<8x128xi32>
    %304 = arith.sitofp %303 : vector<8x128xi32> to vector<8x128xf32>
    %cst_137 = arith.constant dense<0.000000e+00> : vector<8x128xf32>
    %305 = tpu.matmul %304, %10, %cst_137 {dimension_numbers = #tpu.dot_dimension_numbers<[1], [0], [0], [1], [0, 0, 1, 1], [], []>} : vector<8x128xf32>, vector<128x128xf32>, vector<8x128xf32> -> vector<8x128xf32>
    %306 = arith.addf %305, %9 : vector<8x128xf32>
    %cst_138 = arith.constant 0.899999976 : f32
    %307 = vector.broadcast %cst_138 : f32 to vector<8x128xf32>
    %308 = arith.mulf %307, %284 : vector<8x128xf32>
    %309 = arith.addf %308, %306 : vector<8x128xf32>
    %cst_139 = arith.constant 1.000000e+00 : f32
    %310 = vector.broadcast %cst_139 : f32 to vector<8x128xf32>
    %311 = arith.mulf %288, %310 : vector<8x128xf32>
    %312 = arith.subf %309, %311 : vector<8x128xf32>
    %cst_140 = arith.constant 1.000000e+00 : f32
    %313 = vector.broadcast %cst_140 : f32 to vector<8x128xf32>
    %314 = arith.cmpf ogt, %312, %313 : vector<8x128xf32>
    %315 = arith.extui %314 : vector<8x128xi1> to vector<8x128xi32>
    %316 = arith.sitofp %315 : vector<8x128xi32> to vector<8x128xf32>
    %c10 = arith.constant 10 : index
    %c0_141 = arith.constant 0 : index
    %c0_142 = arith.constant 0 : index
    %317 = vector.load %arg6[%c10, %c0_141, %c0_142] : memref<25x8x128xf32, #tpu.memory_space<vmem>>, vector<1x8x128xf32>
    %318 = vector.shape_cast %317 : vector<1x8x128xf32> to vector<8x128xf32>
    %319 = vector.shape_cast %316 : vector<8x128xf32> to vector<1x8x128xf32>
    tpu.vector_store %arg6[%c10, %c0_141, %c0_142], %319 {strides = array<i32>} : memref<25x8x128xf32, #tpu.memory_space<vmem>>, vector<1x8x128xf32>,
    %c10_143 = arith.constant 10 : index
    %c0_144 = arith.constant 0 : index
    %c0_145 = arith.constant 0 : index
    %320 = vector.load %arg7[%c10_143, %c0_144, %c0_145] : memref<25x8x128xf32, #tpu.memory_space<vmem>>, vector<1x8x128xf32>
    %321 = vector.shape_cast %320 : vector<1x8x128xf32> to vector<8x128xf32>
    %322 = vector.shape_cast %312 : vector<8x128xf32> to vector<1x8x128xf32>
    tpu.vector_store %arg7[%c10_143, %c0_144, %c0_145], %322 {strides = array<i32>} : memref<25x8x128xf32, #tpu.memory_space<vmem>>, vector<1x8x128xf32>,
    %cst_146 = arith.constant 0.899999976 : f32
    %323 = vector.broadcast %cst_146 : f32 to vector<8x128xf32>
    %324 = arith.mulf %323, %300 : vector<8x128xf32>
    %325 = arith.addf %324, %6 : vector<8x128xf32>
    %cst_147 = arith.constant 1.000000e+00 : f32
    %326 = vector.broadcast %cst_147 : f32 to vector<8x128xf32>
    %327 = arith.mulf %304, %326 : vector<8x128xf32>
    %328 = arith.subf %325, %327 : vector<8x128xf32>
    %cst_148 = arith.constant 1.000000e+00 : f32
    %329 = vector.broadcast %cst_148 : f32 to vector<8x128xf32>
    %330 = arith.cmpf ogt, %328, %329 : vector<8x128xf32>
    %331 = arith.extui %330 : vector<8x128xi1> to vector<8x128xi32>
    %332 = arith.sitofp %331 : vector<8x128xi32> to vector<8x128xf32>
    %cst_149 = arith.constant dense<0.000000e+00> : vector<8x128xf32>
    %333 = tpu.matmul %332, %10, %cst_149 {dimension_numbers = #tpu.dot_dimension_numbers<[1], [0], [0], [1], [0, 0, 1, 1], [], []>} : vector<8x128xf32>, vector<128x128xf32>, vector<8x128xf32> -> vector<8x128xf32>
    %334 = arith.addf %333, %9 : vector<8x128xf32>
    %cst_150 = arith.constant 0.899999976 : f32
    %335 = vector.broadcast %cst_150 : f32 to vector<8x128xf32>
    %336 = arith.mulf %335, %312 : vector<8x128xf32>
    %337 = arith.addf %336, %334 : vector<8x128xf32>
    %cst_151 = arith.constant 1.000000e+00 : f32
    %338 = vector.broadcast %cst_151 : f32 to vector<8x128xf32>
    %339 = arith.mulf %316, %338 : vector<8x128xf32>
    %340 = arith.subf %337, %339 : vector<8x128xf32>
    %cst_152 = arith.constant 1.000000e+00 : f32
    %341 = vector.broadcast %cst_152 : f32 to vector<8x128xf32>
    %342 = arith.cmpf ogt, %340, %341 : vector<8x128xf32>
    %343 = arith.extui %342 : vector<8x128xi1> to vector<8x128xi32>
    %344 = arith.sitofp %343 : vector<8x128xi32> to vector<8x128xf32>
    %c11 = arith.constant 11 : index
    %c0_153 = arith.constant 0 : index
    %c0_154 = arith.constant 0 : index
    %345 = vector.load %arg6[%c11, %c0_153, %c0_154] : memref<25x8x128xf32, #tpu.memory_space<vmem>>, vector<1x8x128xf32>
    %346 = vector.shape_cast %345 : vector<1x8x128xf32> to vector<8x128xf32>
    %347 = vector.shape_cast %344 : vector<8x128xf32> to vector<1x8x128xf32>
    tpu.vector_store %arg6[%c11, %c0_153, %c0_154], %347 {strides = array<i32>} : memref<25x8x128xf32, #tpu.memory_space<vmem>>, vector<1x8x128xf32>,
    %c11_155 = arith.constant 11 : index
    %c0_156 = arith.constant 0 : index
    %c0_157 = arith.constant 0 : index
    %348 = vector.load %arg7[%c11_155, %c0_156, %c0_157] : memref<25x8x128xf32, #tpu.memory_space<vmem>>, vector<1x8x128xf32>
    %349 = vector.shape_cast %348 : vector<1x8x128xf32> to vector<8x128xf32>
    %350 = vector.shape_cast %340 : vector<8x128xf32> to vector<1x8x128xf32>
    tpu.vector_store %arg7[%c11_155, %c0_156, %c0_157], %350 {strides = array<i32>} : memref<25x8x128xf32, #tpu.memory_space<vmem>>, vector<1x8x128xf32>,
    %cst_158 = arith.constant 0.899999976 : f32
    %351 = vector.broadcast %cst_158 : f32 to vector<8x128xf32>
    %352 = arith.mulf %351, %328 : vector<8x128xf32>
    %353 = arith.addf %352, %6 : vector<8x128xf32>
    %cst_159 = arith.constant 1.000000e+00 : f32
    %354 = vector.broadcast %cst_159 : f32 to vector<8x128xf32>
    %355 = arith.mulf %332, %354 : vector<8x128xf32>
    %356 = arith.subf %353, %355 : vector<8x128xf32>
    %cst_160 = arith.constant 1.000000e+00 : f32
    %357 = vector.broadcast %cst_160 : f32 to vector<8x128xf32>
    %358 = arith.cmpf ogt, %356, %357 : vector<8x128xf32>
    %359 = arith.extui %358 : vector<8x128xi1> to vector<8x128xi32>
    %360 = arith.sitofp %359 : vector<8x128xi32> to vector<8x128xf32>
    %cst_161 = arith.constant dense<0.000000e+00> : vector<8x128xf32>
    %361 = tpu.matmul %360, %10, %cst_161 {dimension_numbers = #tpu.dot_dimension_numbers<[1], [0], [0], [1], [0, 0, 1, 1], [], []>} : vector<8x128xf32>, vector<128x128xf32>, vector<8x128xf32> -> vector<8x128xf32>
    %362 = arith.addf %361, %9 : vector<8x128xf32>
    %cst_162 = arith.constant 0.899999976 : f32
    %363 = vector.broadcast %cst_162 : f32 to vector<8x128xf32>
    %364 = arith.mulf %363, %340 : vector<8x128xf32>
    %365 = arith.addf %364, %362 : vector<8x128xf32>
    %cst_163 = arith.constant 1.000000e+00 : f32
    %366 = vector.broadcast %cst_163 : f32 to vector<8x128xf32>
    %367 = arith.mulf %344, %366 : vector<8x128xf32>
    %368 = arith.subf %365, %367 : vector<8x128xf32>
    %cst_164 = arith.constant 1.000000e+00 : f32
    %369 = vector.broadcast %cst_164 : f32 to vector<8x128xf32>
    %370 = arith.cmpf ogt, %368, %369 : vector<8x128xf32>
    %371 = arith.extui %370 : vector<8x128xi1> to vector<8x128xi32>
    %372 = arith.sitofp %371 : vector<8x128xi32> to vector<8x128xf32>
    %c12 = arith.constant 12 : index
    %c0_165 = arith.constant 0 : index
    %c0_166 = arith.constant 0 : index
    %373 = vector.load %arg6[%c12, %c0_165, %c0_166] : memref<25x8x128xf32, #tpu.memory_space<vmem>>, vector<1x8x128xf32>
    %374 = vector.shape_cast %373 : vector<1x8x128xf32> to vector<8x128xf32>
    %375 = vector.shape_cast %372 : vector<8x128xf32> to vector<1x8x128xf32>
    tpu.vector_store %arg6[%c12, %c0_165, %c0_166], %375 {strides = array<i32>} : memref<25x8x128xf32, #tpu.memory_space<vmem>>, vector<1x8x128xf32>,
    %c12_167 = arith.constant 12 : index
    %c0_168 = arith.constant 0 : index
    %c0_169 = arith.constant 0 : index
    %376 = vector.load %arg7[%c12_167, %c0_168, %c0_169] : memref<25x8x128xf32, #tpu.memory_space<vmem>>, vector<1x8x128xf32>
    %377 = vector.shape_cast %376 : vector<1x8x128xf32> to vector<8x128xf32>
    %378 = vector.shape_cast %368 : vector<8x128xf32> to vector<1x8x128xf32>
    tpu.vector_store %arg7[%c12_167, %c0_168, %c0_169], %378 {strides = array<i32>} : memref<25x8x128xf32, #tpu.memory_space<vmem>>, vector<1x8x128xf32>,
    %cst_170 = arith.constant 0.899999976 : f32
    %379 = vector.broadcast %cst_170 : f32 to vector<8x128xf32>
    %380 = arith.mulf %379, %356 : vector<8x128xf32>
    %381 = arith.addf %380, %6 : vector<8x128xf32>
    %cst_171 = arith.constant 1.000000e+00 : f32
    %382 = vector.broadcast %cst_171 : f32 to vector<8x128xf32>
    %383 = arith.mulf %360, %382 : vector<8x128xf32>
    %384 = arith.subf %381, %383 : vector<8x128xf32>
    %cst_172 = arith.constant 1.000000e+00 : f32
    %385 = vector.broadcast %cst_172 : f32 to vector<8x128xf32>
    %386 = arith.cmpf ogt, %384, %385 : vector<8x128xf32>
    %387 = arith.extui %386 : vector<8x128xi1> to vector<8x128xi32>
    %388 = arith.sitofp %387 : vector<8x128xi32> to vector<8x128xf32>
    %cst_173 = arith.constant dense<0.000000e+00> : vector<8x128xf32>
    %389 = tpu.matmul %388, %10, %cst_173 {dimension_numbers = #tpu.dot_dimension_numbers<[1], [0], [0], [1], [0, 0, 1, 1], [], []>} : vector<8x128xf32>, vector<128x128xf32>, vector<8x128xf32> -> vector<8x128xf32>
    %390 = arith.addf %389, %9 : vector<8x128xf32>
    %cst_174 = arith.constant 0.899999976 : f32
    %391 = vector.broadcast %cst_174 : f32 to vector<8x128xf32>
    %392 = arith.mulf %391, %368 : vector<8x128xf32>
    %393 = arith.addf %392, %390 : vector<8x128xf32>
    %cst_175 = arith.constant 1.000000e+00 : f32
    %394 = vector.broadcast %cst_175 : f32 to vector<8x128xf32>
    %395 = arith.mulf %372, %394 : vector<8x128xf32>
    %396 = arith.subf %393, %395 : vector<8x128xf32>
    %cst_176 = arith.constant 1.000000e+00 : f32
    %397 = vector.broadcast %cst_176 : f32 to vector<8x128xf32>
    %398 = arith.cmpf ogt, %396, %397 : vector<8x128xf32>
    %399 = arith.extui %398 : vector<8x128xi1> to vector<8x128xi32>
    %400 = arith.sitofp %399 : vector<8x128xi32> to vector<8x128xf32>
    %c13 = arith.constant 13 : index
    %c0_177 = arith.constant 0 : index
    %c0_178 = arith.constant 0 : index
    %401 = vector.load %arg6[%c13, %c0_177, %c0_178] : memref<25x8x128xf32, #tpu.memory_space<vmem>>, vector<1x8x128xf32>
    %402 = vector.shape_cast %401 : vector<1x8x128xf32> to vector<8x128xf32>
    %403 = vector.shape_cast %400 : vector<8x128xf32> to vector<1x8x128xf32>
    tpu.vector_store %arg6[%c13, %c0_177, %c0_178], %403 {strides = array<i32>} : memref<25x8x128xf32, #tpu.memory_space<vmem>>, vector<1x8x128xf32>,
    %c13_179 = arith.constant 13 : index
    %c0_180 = arith.constant 0 : index
    %c0_181 = arith.constant 0 : index
    %404 = vector.load %arg7[%c13_179, %c0_180, %c0_181] : memref<25x8x128xf32, #tpu.memory_space<vmem>>, vector<1x8x128xf32>
    %405 = vector.shape_cast %404 : vector<1x8x128xf32> to vector<8x128xf32>
    %406 = vector.shape_cast %396 : vector<8x128xf32> to vector<1x8x128xf32>
    tpu.vector_store %arg7[%c13_179, %c0_180, %c0_181], %406 {strides = array<i32>} : memref<25x8x128xf32, #tpu.memory_space<vmem>>, vector<1x8x128xf32>,
    %cst_182 = arith.constant 0.899999976 : f32
    %407 = vector.broadcast %cst_182 : f32 to vector<8x128xf32>
    %408 = arith.mulf %407, %384 : vector<8x128xf32>
    %409 = arith.addf %408, %6 : vector<8x128xf32>
    %cst_183 = arith.constant 1.000000e+00 : f32
    %410 = vector.broadcast %cst_183 : f32 to vector<8x128xf32>
    %411 = arith.mulf %388, %410 : vector<8x128xf32>
    %412 = arith.subf %409, %411 : vector<8x128xf32>
    %cst_184 = arith.constant 1.000000e+00 : f32
    %413 = vector.broadcast %cst_184 : f32 to vector<8x128xf32>
    %414 = arith.cmpf ogt, %412, %413 : vector<8x128xf32>
    %415 = arith.extui %414 : vector<8x128xi1> to vector<8x128xi32>
    %416 = arith.sitofp %415 : vector<8x128xi32> to vector<8x128xf32>
    %cst_185 = arith.constant dense<0.000000e+00> : vector<8x128xf32>
    %417 = tpu.matmul %416, %10, %cst_185 {dimension_numbers = #tpu.dot_dimension_numbers<[1], [0], [0], [1], [0, 0, 1, 1], [], []>} : vector<8x128xf32>, vector<128x128xf32>, vector<8x128xf32> -> vector<8x128xf32>
    %418 = arith.addf %417, %9 : vector<8x128xf32>
    %cst_186 = arith.constant 0.899999976 : f32
    %419 = vector.broadcast %cst_186 : f32 to vector<8x128xf32>
    %420 = arith.mulf %419, %396 : vector<8x128xf32>
    %421 = arith.addf %420, %418 : vector<8x128xf32>
    %cst_187 = arith.constant 1.000000e+00 : f32
    %422 = vector.broadcast %cst_187 : f32 to vector<8x128xf32>
    %423 = arith.mulf %400, %422 : vector<8x128xf32>
    %424 = arith.subf %421, %423 : vector<8x128xf32>
    %cst_188 = arith.constant 1.000000e+00 : f32
    %425 = vector.broadcast %cst_188 : f32 to vector<8x128xf32>
    %426 = arith.cmpf ogt, %424, %425 : vector<8x128xf32>
    %427 = arith.extui %426 : vector<8x128xi1> to vector<8x128xi32>
    %428 = arith.sitofp %427 : vector<8x128xi32> to vector<8x128xf32>
    %c14 = arith.constant 14 : index
    %c0_189 = arith.constant 0 : index
    %c0_190 = arith.constant 0 : index
    %429 = vector.load %arg6[%c14, %c0_189, %c0_190] : memref<25x8x128xf32, #tpu.memory_space<vmem>>, vector<1x8x128xf32>
    %430 = vector.shape_cast %429 : vector<1x8x128xf32> to vector<8x128xf32>
    %431 = vector.shape_cast %428 : vector<8x128xf32> to vector<1x8x128xf32>
    tpu.vector_store %arg6[%c14, %c0_189, %c0_190], %431 {strides = array<i32>} : memref<25x8x128xf32, #tpu.memory_space<vmem>>, vector<1x8x128xf32>,
    %c14_191 = arith.constant 14 : index
    %c0_192 = arith.constant 0 : index
    %c0_193 = arith.constant 0 : index
    %432 = vector.load %arg7[%c14_191, %c0_192, %c0_193] : memref<25x8x128xf32, #tpu.memory_space<vmem>>, vector<1x8x128xf32>
    %433 = vector.shape_cast %432 : vector<1x8x128xf32> to vector<8x128xf32>
    %434 = vector.shape_cast %424 : vector<8x128xf32> to vector<1x8x128xf32>
    tpu.vector_store %arg7[%c14_191, %c0_192, %c0_193], %434 {strides = array<i32>} : memref<25x8x128xf32, #tpu.memory_space<vmem>>, vector<1x8x128xf32>,
    %cst_194 = arith.constant 0.899999976 : f32
    %435 = vector.broadcast %cst_194 : f32 to vector<8x128xf32>
    %436 = arith.mulf %435, %412 : vector<8x128xf32>
    %437 = arith.addf %436, %6 : vector<8x128xf32>
    %cst_195 = arith.constant 1.000000e+00 : f32
    %438 = vector.broadcast %cst_195 : f32 to vector<8x128xf32>
    %439 = arith.mulf %416, %438 : vector<8x128xf32>
    %440 = arith.subf %437, %439 : vector<8x128xf32>
    %cst_196 = arith.constant 1.000000e+00 : f32
    %441 = vector.broadcast %cst_196 : f32 to vector<8x128xf32>
    %442 = arith.cmpf ogt, %440, %441 : vector<8x128xf32>
    %443 = arith.extui %442 : vector<8x128xi1> to vector<8x128xi32>
    %444 = arith.sitofp %443 : vector<8x128xi32> to vector<8x128xf32>
    %cst_197 = arith.constant dense<0.000000e+00> : vector<8x128xf32>
    %445 = tpu.matmul %444, %10, %cst_197 {dimension_numbers = #tpu.dot_dimension_numbers<[1], [0], [0], [1], [0, 0, 1, 1], [], []>} : vector<8x128xf32>, vector<128x128xf32>, vector<8x128xf32> -> vector<8x128xf32>
    %446 = arith.addf %445, %9 : vector<8x128xf32>
    %cst_198 = arith.constant 0.899999976 : f32
    %447 = vector.broadcast %cst_198 : f32 to vector<8x128xf32>
    %448 = arith.mulf %447, %424 : vector<8x128xf32>
    %449 = arith.addf %448, %446 : vector<8x128xf32>
    %cst_199 = arith.constant 1.000000e+00 : f32
    %450 = vector.broadcast %cst_199 : f32 to vector<8x128xf32>
    %451 = arith.mulf %428, %450 : vector<8x128xf32>
    %452 = arith.subf %449, %451 : vector<8x128xf32>
    %cst_200 = arith.constant 1.000000e+00 : f32
    %453 = vector.broadcast %cst_200 : f32 to vector<8x128xf32>
    %454 = arith.cmpf ogt, %452, %453 : vector<8x128xf32>
    %455 = arith.extui %454 : vector<8x128xi1> to vector<8x128xi32>
    %456 = arith.sitofp %455 : vector<8x128xi32> to vector<8x128xf32>
    %c15 = arith.constant 15 : index
    %c0_201 = arith.constant 0 : index
    %c0_202 = arith.constant 0 : index
    %457 = vector.load %arg6[%c15, %c0_201, %c0_202] : memref<25x8x128xf32, #tpu.memory_space<vmem>>, vector<1x8x128xf32>
    %458 = vector.shape_cast %457 : vector<1x8x128xf32> to vector<8x128xf32>
    %459 = vector.shape_cast %456 : vector<8x128xf32> to vector<1x8x128xf32>
    tpu.vector_store %arg6[%c15, %c0_201, %c0_202], %459 {strides = array<i32>} : memref<25x8x128xf32, #tpu.memory_space<vmem>>, vector<1x8x128xf32>,
    %c15_203 = arith.constant 15 : index
    %c0_204 = arith.constant 0 : index
    %c0_205 = arith.constant 0 : index
    %460 = vector.load %arg7[%c15_203, %c0_204, %c0_205] : memref<25x8x128xf32, #tpu.memory_space<vmem>>, vector<1x8x128xf32>
    %461 = vector.shape_cast %460 : vector<1x8x128xf32> to vector<8x128xf32>
    %462 = vector.shape_cast %452 : vector<8x128xf32> to vector<1x8x128xf32>
    tpu.vector_store %arg7[%c15_203, %c0_204, %c0_205], %462 {strides = array<i32>} : memref<25x8x128xf32, #tpu.memory_space<vmem>>, vector<1x8x128xf32>,
    %cst_206 = arith.constant 0.899999976 : f32
    %463 = vector.broadcast %cst_206 : f32 to vector<8x128xf32>
    %464 = arith.mulf %463, %440 : vector<8x128xf32>
    %465 = arith.addf %464, %6 : vector<8x128xf32>
    %cst_207 = arith.constant 1.000000e+00 : f32
    %466 = vector.broadcast %cst_207 : f32 to vector<8x128xf32>
    %467 = arith.mulf %444, %466 : vector<8x128xf32>
    %468 = arith.subf %465, %467 : vector<8x128xf32>
    %cst_208 = arith.constant 1.000000e+00 : f32
    %469 = vector.broadcast %cst_208 : f32 to vector<8x128xf32>
    %470 = arith.cmpf ogt, %468, %469 : vector<8x128xf32>
    %471 = arith.extui %470 : vector<8x128xi1> to vector<8x128xi32>
    %472 = arith.sitofp %471 : vector<8x128xi32> to vector<8x128xf32>
    %cst_209 = arith.constant dense<0.000000e+00> : vector<8x128xf32>
    %473 = tpu.matmul %472, %10, %cst_209 {dimension_numbers = #tpu.dot_dimension_numbers<[1], [0], [0], [1], [0, 0, 1, 1], [], []>} : vector<8x128xf32>, vector<128x128xf32>, vector<8x128xf32> -> vector<8x128xf32>
    %474 = arith.addf %473, %9 : vector<8x128xf32>
    %cst_210 = arith.constant 0.899999976 : f32
    %475 = vector.broadcast %cst_210 : f32 to vector<8x128xf32>
    %476 = arith.mulf %475, %452 : vector<8x128xf32>
    %477 = arith.addf %476, %474 : vector<8x128xf32>
    %cst_211 = arith.constant 1.000000e+00 : f32
    %478 = vector.broadcast %cst_211 : f32 to vector<8x128xf32>
    %479 = arith.mulf %456, %478 : vector<8x128xf32>
    %480 = arith.subf %477, %479 : vector<8x128xf32>
    %cst_212 = arith.constant 1.000000e+00 : f32
    %481 = vector.broadcast %cst_212 : f32 to vector<8x128xf32>
    %482 = arith.cmpf ogt, %480, %481 : vector<8x128xf32>
    %483 = arith.extui %482 : vector<8x128xi1> to vector<8x128xi32>
    %484 = arith.sitofp %483 : vector<8x128xi32> to vector<8x128xf32>
    %c16 = arith.constant 16 : index
    %c0_213 = arith.constant 0 : index
    %c0_214 = arith.constant 0 : index
    %485 = vector.load %arg6[%c16, %c0_213, %c0_214] : memref<25x8x128xf32, #tpu.memory_space<vmem>>, vector<1x8x128xf32>
    %486 = vector.shape_cast %485 : vector<1x8x128xf32> to vector<8x128xf32>
    %487 = vector.shape_cast %484 : vector<8x128xf32> to vector<1x8x128xf32>
    tpu.vector_store %arg6[%c16, %c0_213, %c0_214], %487 {strides = array<i32>} : memref<25x8x128xf32, #tpu.memory_space<vmem>>, vector<1x8x128xf32>,
    %c16_215 = arith.constant 16 : index
    %c0_216 = arith.constant 0 : index
    %c0_217 = arith.constant 0 : index
    %488 = vector.load %arg7[%c16_215, %c0_216, %c0_217] : memref<25x8x128xf32, #tpu.memory_space<vmem>>, vector<1x8x128xf32>
    %489 = vector.shape_cast %488 : vector<1x8x128xf32> to vector<8x128xf32>
    %490 = vector.shape_cast %480 : vector<8x128xf32> to vector<1x8x128xf32>
    tpu.vector_store %arg7[%c16_215, %c0_216, %c0_217], %490 {strides = array<i32>} : memref<25x8x128xf32, #tpu.memory_space<vmem>>, vector<1x8x128xf32>,
    %cst_218 = arith.constant 0.899999976 : f32
    %491 = vector.broadcast %cst_218 : f32 to vector<8x128xf32>
    %492 = arith.mulf %491, %468 : vector<8x128xf32>
    %493 = arith.addf %492, %6 : vector<8x128xf32>
    %cst_219 = arith.constant 1.000000e+00 : f32
    %494 = vector.broadcast %cst_219 : f32 to vector<8x128xf32>
    %495 = arith.mulf %472, %494 : vector<8x128xf32>
    %496 = arith.subf %493, %495 : vector<8x128xf32>
    %cst_220 = arith.constant 1.000000e+00 : f32
    %497 = vector.broadcast %cst_220 : f32 to vector<8x128xf32>
    %498 = arith.cmpf ogt, %496, %497 : vector<8x128xf32>
    %499 = arith.extui %498 : vector<8x128xi1> to vector<8x128xi32>
    %500 = arith.sitofp %499 : vector<8x128xi32> to vector<8x128xf32>
    %cst_221 = arith.constant dense<0.000000e+00> : vector<8x128xf32>
    %501 = tpu.matmul %500, %10, %cst_221 {dimension_numbers = #tpu.dot_dimension_numbers<[1], [0], [0], [1], [0, 0, 1, 1], [], []>} : vector<8x128xf32>, vector<128x128xf32>, vector<8x128xf32> -> vector<8x128xf32>
    %502 = arith.addf %501, %9 : vector<8x128xf32>
    %cst_222 = arith.constant 0.899999976 : f32
    %503 = vector.broadcast %cst_222 : f32 to vector<8x128xf32>
    %504 = arith.mulf %503, %480 : vector<8x128xf32>
    %505 = arith.addf %504, %502 : vector<8x128xf32>
    %cst_223 = arith.constant 1.000000e+00 : f32
    %506 = vector.broadcast %cst_223 : f32 to vector<8x128xf32>
    %507 = arith.mulf %484, %506 : vector<8x128xf32>
    %508 = arith.subf %505, %507 : vector<8x128xf32>
    %cst_224 = arith.constant 1.000000e+00 : f32
    %509 = vector.broadcast %cst_224 : f32 to vector<8x128xf32>
    %510 = arith.cmpf ogt, %508, %509 : vector<8x128xf32>
    %511 = arith.extui %510 : vector<8x128xi1> to vector<8x128xi32>
    %512 = arith.sitofp %511 : vector<8x128xi32> to vector<8x128xf32>
    %c17 = arith.constant 17 : index
    %c0_225 = arith.constant 0 : index
    %c0_226 = arith.constant 0 : index
    %513 = vector.load %arg6[%c17, %c0_225, %c0_226] : memref<25x8x128xf32, #tpu.memory_space<vmem>>, vector<1x8x128xf32>
    %514 = vector.shape_cast %513 : vector<1x8x128xf32> to vector<8x128xf32>
    %515 = vector.shape_cast %512 : vector<8x128xf32> to vector<1x8x128xf32>
    tpu.vector_store %arg6[%c17, %c0_225, %c0_226], %515 {strides = array<i32>} : memref<25x8x128xf32, #tpu.memory_space<vmem>>, vector<1x8x128xf32>,
    %c17_227 = arith.constant 17 : index
    %c0_228 = arith.constant 0 : index
    %c0_229 = arith.constant 0 : index
    %516 = vector.load %arg7[%c17_227, %c0_228, %c0_229] : memref<25x8x128xf32, #tpu.memory_space<vmem>>, vector<1x8x128xf32>
    %517 = vector.shape_cast %516 : vector<1x8x128xf32> to vector<8x128xf32>
    %518 = vector.shape_cast %508 : vector<8x128xf32> to vector<1x8x128xf32>
    tpu.vector_store %arg7[%c17_227, %c0_228, %c0_229], %518 {strides = array<i32>} : memref<25x8x128xf32, #tpu.memory_space<vmem>>, vector<1x8x128xf32>,
    %cst_230 = arith.constant 0.899999976 : f32
    %519 = vector.broadcast %cst_230 : f32 to vector<8x128xf32>
    %520 = arith.mulf %519, %496 : vector<8x128xf32>
    %521 = arith.addf %520, %6 : vector<8x128xf32>
    %cst_231 = arith.constant 1.000000e+00 : f32
    %522 = vector.broadcast %cst_231 : f32 to vector<8x128xf32>
    %523 = arith.mulf %500, %522 : vector<8x128xf32>
    %524 = arith.subf %521, %523 : vector<8x128xf32>
    %cst_232 = arith.constant 1.000000e+00 : f32
    %525 = vector.broadcast %cst_232 : f32 to vector<8x128xf32>
    %526 = arith.cmpf ogt, %524, %525 : vector<8x128xf32>
    %527 = arith.extui %526 : vector<8x128xi1> to vector<8x128xi32>
    %528 = arith.sitofp %527 : vector<8x128xi32> to vector<8x128xf32>
    %cst_233 = arith.constant dense<0.000000e+00> : vector<8x128xf32>
    %529 = tpu.matmul %528, %10, %cst_233 {dimension_numbers = #tpu.dot_dimension_numbers<[1], [0], [0], [1], [0, 0, 1, 1], [], []>} : vector<8x128xf32>, vector<128x128xf32>, vector<8x128xf32> -> vector<8x128xf32>
    %530 = arith.addf %529, %9 : vector<8x128xf32>
    %cst_234 = arith.constant 0.899999976 : f32
    %531 = vector.broadcast %cst_234 : f32 to vector<8x128xf32>
    %532 = arith.mulf %531, %508 : vector<8x128xf32>
    %533 = arith.addf %532, %530 : vector<8x128xf32>
    %cst_235 = arith.constant 1.000000e+00 : f32
    %534 = vector.broadcast %cst_235 : f32 to vector<8x128xf32>
    %535 = arith.mulf %512, %534 : vector<8x128xf32>
    %536 = arith.subf %533, %535 : vector<8x128xf32>
    %cst_236 = arith.constant 1.000000e+00 : f32
    %537 = vector.broadcast %cst_236 : f32 to vector<8x128xf32>
    %538 = arith.cmpf ogt, %536, %537 : vector<8x128xf32>
    %539 = arith.extui %538 : vector<8x128xi1> to vector<8x128xi32>
    %540 = arith.sitofp %539 : vector<8x128xi32> to vector<8x128xf32>
    %c18 = arith.constant 18 : index
    %c0_237 = arith.constant 0 : index
    %c0_238 = arith.constant 0 : index
    %541 = vector.load %arg6[%c18, %c0_237, %c0_238] : memref<25x8x128xf32, #tpu.memory_space<vmem>>, vector<1x8x128xf32>
    %542 = vector.shape_cast %541 : vector<1x8x128xf32> to vector<8x128xf32>
    %543 = vector.shape_cast %540 : vector<8x128xf32> to vector<1x8x128xf32>
    tpu.vector_store %arg6[%c18, %c0_237, %c0_238], %543 {strides = array<i32>} : memref<25x8x128xf32, #tpu.memory_space<vmem>>, vector<1x8x128xf32>,
    %c18_239 = arith.constant 18 : index
    %c0_240 = arith.constant 0 : index
    %c0_241 = arith.constant 0 : index
    %544 = vector.load %arg7[%c18_239, %c0_240, %c0_241] : memref<25x8x128xf32, #tpu.memory_space<vmem>>, vector<1x8x128xf32>
    %545 = vector.shape_cast %544 : vector<1x8x128xf32> to vector<8x128xf32>
    %546 = vector.shape_cast %536 : vector<8x128xf32> to vector<1x8x128xf32>
    tpu.vector_store %arg7[%c18_239, %c0_240, %c0_241], %546 {strides = array<i32>} : memref<25x8x128xf32, #tpu.memory_space<vmem>>, vector<1x8x128xf32>,
    %cst_242 = arith.constant 0.899999976 : f32
    %547 = vector.broadcast %cst_242 : f32 to vector<8x128xf32>
    %548 = arith.mulf %547, %524 : vector<8x128xf32>
    %549 = arith.addf %548, %6 : vector<8x128xf32>
    %cst_243 = arith.constant 1.000000e+00 : f32
    %550 = vector.broadcast %cst_243 : f32 to vector<8x128xf32>
    %551 = arith.mulf %528, %550 : vector<8x128xf32>
    %552 = arith.subf %549, %551 : vector<8x128xf32>
    %cst_244 = arith.constant 1.000000e+00 : f32
    %553 = vector.broadcast %cst_244 : f32 to vector<8x128xf32>
    %554 = arith.cmpf ogt, %552, %553 : vector<8x128xf32>
    %555 = arith.extui %554 : vector<8x128xi1> to vector<8x128xi32>
    %556 = arith.sitofp %555 : vector<8x128xi32> to vector<8x128xf32>
    %cst_245 = arith.constant dense<0.000000e+00> : vector<8x128xf32>
    %557 = tpu.matmul %556, %10, %cst_245 {dimension_numbers = #tpu.dot_dimension_numbers<[1], [0], [0], [1], [0, 0, 1, 1], [], []>} : vector<8x128xf32>, vector<128x128xf32>, vector<8x128xf32> -> vector<8x128xf32>
    %558 = arith.addf %557, %9 : vector<8x128xf32>
    %cst_246 = arith.constant 0.899999976 : f32
    %559 = vector.broadcast %cst_246 : f32 to vector<8x128xf32>
    %560 = arith.mulf %559, %536 : vector<8x128xf32>
    %561 = arith.addf %560, %558 : vector<8x128xf32>
    %cst_247 = arith.constant 1.000000e+00 : f32
    %562 = vector.broadcast %cst_247 : f32 to vector<8x128xf32>
    %563 = arith.mulf %540, %562 : vector<8x128xf32>
    %564 = arith.subf %561, %563 : vector<8x128xf32>
    %cst_248 = arith.constant 1.000000e+00 : f32
    %565 = vector.broadcast %cst_248 : f32 to vector<8x128xf32>
    %566 = arith.cmpf ogt, %564, %565 : vector<8x128xf32>
    %567 = arith.extui %566 : vector<8x128xi1> to vector<8x128xi32>
    %568 = arith.sitofp %567 : vector<8x128xi32> to vector<8x128xf32>
    %c19 = arith.constant 19 : index
    %c0_249 = arith.constant 0 : index
    %c0_250 = arith.constant 0 : index
    %569 = vector.load %arg6[%c19, %c0_249, %c0_250] : memref<25x8x128xf32, #tpu.memory_space<vmem>>, vector<1x8x128xf32>
    %570 = vector.shape_cast %569 : vector<1x8x128xf32> to vector<8x128xf32>
    %571 = vector.shape_cast %568 : vector<8x128xf32> to vector<1x8x128xf32>
    tpu.vector_store %arg6[%c19, %c0_249, %c0_250], %571 {strides = array<i32>} : memref<25x8x128xf32, #tpu.memory_space<vmem>>, vector<1x8x128xf32>,
    %c19_251 = arith.constant 19 : index
    %c0_252 = arith.constant 0 : index
    %c0_253 = arith.constant 0 : index
    %572 = vector.load %arg7[%c19_251, %c0_252, %c0_253] : memref<25x8x128xf32, #tpu.memory_space<vmem>>, vector<1x8x128xf32>
    %573 = vector.shape_cast %572 : vector<1x8x128xf32> to vector<8x128xf32>
    %574 = vector.shape_cast %564 : vector<8x128xf32> to vector<1x8x128xf32>
    tpu.vector_store %arg7[%c19_251, %c0_252, %c0_253], %574 {strides = array<i32>} : memref<25x8x128xf32, #tpu.memory_space<vmem>>, vector<1x8x128xf32>,
    %cst_254 = arith.constant 0.899999976 : f32
    %575 = vector.broadcast %cst_254 : f32 to vector<8x128xf32>
    %576 = arith.mulf %575, %552 : vector<8x128xf32>
    %577 = arith.addf %576, %6 : vector<8x128xf32>
    %cst_255 = arith.constant 1.000000e+00 : f32
    %578 = vector.broadcast %cst_255 : f32 to vector<8x128xf32>
    %579 = arith.mulf %556, %578 : vector<8x128xf32>
    %580 = arith.subf %577, %579 : vector<8x128xf32>
    %cst_256 = arith.constant 1.000000e+00 : f32
    %581 = vector.broadcast %cst_256 : f32 to vector<8x128xf32>
    %582 = arith.cmpf ogt, %580, %581 : vector<8x128xf32>
    %583 = arith.extui %582 : vector<8x128xi1> to vector<8x128xi32>
    %584 = arith.sitofp %583 : vector<8x128xi32> to vector<8x128xf32>
    %cst_257 = arith.constant dense<0.000000e+00> : vector<8x128xf32>
    %585 = tpu.matmul %584, %10, %cst_257 {dimension_numbers = #tpu.dot_dimension_numbers<[1], [0], [0], [1], [0, 0, 1, 1], [], []>} : vector<8x128xf32>, vector<128x128xf32>, vector<8x128xf32> -> vector<8x128xf32>
    %586 = arith.addf %585, %9 : vector<8x128xf32>
    %cst_258 = arith.constant 0.899999976 : f32
    %587 = vector.broadcast %cst_258 : f32 to vector<8x128xf32>
    %588 = arith.mulf %587, %564 : vector<8x128xf32>
    %589 = arith.addf %588, %586 : vector<8x128xf32>
    %cst_259 = arith.constant 1.000000e+00 : f32
    %590 = vector.broadcast %cst_259 : f32 to vector<8x128xf32>
    %591 = arith.mulf %568, %590 : vector<8x128xf32>
    %592 = arith.subf %589, %591 : vector<8x128xf32>
    %cst_260 = arith.constant 1.000000e+00 : f32
    %593 = vector.broadcast %cst_260 : f32 to vector<8x128xf32>
    %594 = arith.cmpf ogt, %592, %593 : vector<8x128xf32>
    %595 = arith.extui %594 : vector<8x128xi1> to vector<8x128xi32>
    %596 = arith.sitofp %595 : vector<8x128xi32> to vector<8x128xf32>
    %c20 = arith.constant 20 : index
    %c0_261 = arith.constant 0 : index
    %c0_262 = arith.constant 0 : index
    %597 = vector.load %arg6[%c20, %c0_261, %c0_262] : memref<25x8x128xf32, #tpu.memory_space<vmem>>, vector<1x8x128xf32>
    %598 = vector.shape_cast %597 : vector<1x8x128xf32> to vector<8x128xf32>
    %599 = vector.shape_cast %596 : vector<8x128xf32> to vector<1x8x128xf32>
    tpu.vector_store %arg6[%c20, %c0_261, %c0_262], %599 {strides = array<i32>} : memref<25x8x128xf32, #tpu.memory_space<vmem>>, vector<1x8x128xf32>,
    %c20_263 = arith.constant 20 : index
    %c0_264 = arith.constant 0 : index
    %c0_265 = arith.constant 0 : index
    %600 = vector.load %arg7[%c20_263, %c0_264, %c0_265] : memref<25x8x128xf32, #tpu.memory_space<vmem>>, vector<1x8x128xf32>
    %601 = vector.shape_cast %600 : vector<1x8x128xf32> to vector<8x128xf32>
    %602 = vector.shape_cast %592 : vector<8x128xf32> to vector<1x8x128xf32>
    tpu.vector_store %arg7[%c20_263, %c0_264, %c0_265], %602 {strides = array<i32>} : memref<25x8x128xf32, #tpu.memory_space<vmem>>, vector<1x8x128xf32>,
    %cst_266 = arith.constant 0.899999976 : f32
    %603 = vector.broadcast %cst_266 : f32 to vector<8x128xf32>
    %604 = arith.mulf %603, %580 : vector<8x128xf32>
    %605 = arith.addf %604, %6 : vector<8x128xf32>
    %cst_267 = arith.constant 1.000000e+00 : f32
    %606 = vector.broadcast %cst_267 : f32 to vector<8x128xf32>
    %607 = arith.mulf %584, %606 : vector<8x128xf32>
    %608 = arith.subf %605, %607 : vector<8x128xf32>
    %cst_268 = arith.constant 1.000000e+00 : f32
    %609 = vector.broadcast %cst_268 : f32 to vector<8x128xf32>
    %610 = arith.cmpf ogt, %608, %609 : vector<8x128xf32>
    %611 = arith.extui %610 : vector<8x128xi1> to vector<8x128xi32>
    %612 = arith.sitofp %611 : vector<8x128xi32> to vector<8x128xf32>
    %cst_269 = arith.constant dense<0.000000e+00> : vector<8x128xf32>
    %613 = tpu.matmul %612, %10, %cst_269 {dimension_numbers = #tpu.dot_dimension_numbers<[1], [0], [0], [1], [0, 0, 1, 1], [], []>} : vector<8x128xf32>, vector<128x128xf32>, vector<8x128xf32> -> vector<8x128xf32>
    %614 = arith.addf %613, %9 : vector<8x128xf32>
    %cst_270 = arith.constant 0.899999976 : f32
    %615 = vector.broadcast %cst_270 : f32 to vector<8x128xf32>
    %616 = arith.mulf %615, %592 : vector<8x128xf32>
    %617 = arith.addf %616, %614 : vector<8x128xf32>
    %cst_271 = arith.constant 1.000000e+00 : f32
    %618 = vector.broadcast %cst_271 : f32 to vector<8x128xf32>
    %619 = arith.mulf %596, %618 : vector<8x128xf32>
    %620 = arith.subf %617, %619 : vector<8x128xf32>
    %cst_272 = arith.constant 1.000000e+00 : f32
    %621 = vector.broadcast %cst_272 : f32 to vector<8x128xf32>
    %622 = arith.cmpf ogt, %620, %621 : vector<8x128xf32>
    %623 = arith.extui %622 : vector<8x128xi1> to vector<8x128xi32>
    %624 = arith.sitofp %623 : vector<8x128xi32> to vector<8x128xf32>
    %c21 = arith.constant 21 : index
    %c0_273 = arith.constant 0 : index
    %c0_274 = arith.constant 0 : index
    %625 = vector.load %arg6[%c21, %c0_273, %c0_274] : memref<25x8x128xf32, #tpu.memory_space<vmem>>, vector<1x8x128xf32>
    %626 = vector.shape_cast %625 : vector<1x8x128xf32> to vector<8x128xf32>
    %627 = vector.shape_cast %624 : vector<8x128xf32> to vector<1x8x128xf32>
    tpu.vector_store %arg6[%c21, %c0_273, %c0_274], %627 {strides = array<i32>} : memref<25x8x128xf32, #tpu.memory_space<vmem>>, vector<1x8x128xf32>,
    %c21_275 = arith.constant 21 : index
    %c0_276 = arith.constant 0 : index
    %c0_277 = arith.constant 0 : index
    %628 = vector.load %arg7[%c21_275, %c0_276, %c0_277] : memref<25x8x128xf32, #tpu.memory_space<vmem>>, vector<1x8x128xf32>
    %629 = vector.shape_cast %628 : vector<1x8x128xf32> to vector<8x128xf32>
    %630 = vector.shape_cast %620 : vector<8x128xf32> to vector<1x8x128xf32>
    tpu.vector_store %arg7[%c21_275, %c0_276, %c0_277], %630 {strides = array<i32>} : memref<25x8x128xf32, #tpu.memory_space<vmem>>, vector<1x8x128xf32>,
    %cst_278 = arith.constant 0.899999976 : f32
    %631 = vector.broadcast %cst_278 : f32 to vector<8x128xf32>
    %632 = arith.mulf %631, %608 : vector<8x128xf32>
    %633 = arith.addf %632, %6 : vector<8x128xf32>
    %cst_279 = arith.constant 1.000000e+00 : f32
    %634 = vector.broadcast %cst_279 : f32 to vector<8x128xf32>
    %635 = arith.mulf %612, %634 : vector<8x128xf32>
    %636 = arith.subf %633, %635 : vector<8x128xf32>
    %cst_280 = arith.constant 1.000000e+00 : f32
    %637 = vector.broadcast %cst_280 : f32 to vector<8x128xf32>
    %638 = arith.cmpf ogt, %636, %637 : vector<8x128xf32>
    %639 = arith.extui %638 : vector<8x128xi1> to vector<8x128xi32>
    %640 = arith.sitofp %639 : vector<8x128xi32> to vector<8x128xf32>
    %cst_281 = arith.constant dense<0.000000e+00> : vector<8x128xf32>
    %641 = tpu.matmul %640, %10, %cst_281 {dimension_numbers = #tpu.dot_dimension_numbers<[1], [0], [0], [1], [0, 0, 1, 1], [], []>} : vector<8x128xf32>, vector<128x128xf32>, vector<8x128xf32> -> vector<8x128xf32>
    %642 = arith.addf %641, %9 : vector<8x128xf32>
    %cst_282 = arith.constant 0.899999976 : f32
    %643 = vector.broadcast %cst_282 : f32 to vector<8x128xf32>
    %644 = arith.mulf %643, %620 : vector<8x128xf32>
    %645 = arith.addf %644, %642 : vector<8x128xf32>
    %cst_283 = arith.constant 1.000000e+00 : f32
    %646 = vector.broadcast %cst_283 : f32 to vector<8x128xf32>
    %647 = arith.mulf %624, %646 : vector<8x128xf32>
    %648 = arith.subf %645, %647 : vector<8x128xf32>
    %cst_284 = arith.constant 1.000000e+00 : f32
    %649 = vector.broadcast %cst_284 : f32 to vector<8x128xf32>
    %650 = arith.cmpf ogt, %648, %649 : vector<8x128xf32>
    %651 = arith.extui %650 : vector<8x128xi1> to vector<8x128xi32>
    %652 = arith.sitofp %651 : vector<8x128xi32> to vector<8x128xf32>
    %c22 = arith.constant 22 : index
    %c0_285 = arith.constant 0 : index
    %c0_286 = arith.constant 0 : index
    %653 = vector.load %arg6[%c22, %c0_285, %c0_286] : memref<25x8x128xf32, #tpu.memory_space<vmem>>, vector<1x8x128xf32>
    %654 = vector.shape_cast %653 : vector<1x8x128xf32> to vector<8x128xf32>
    %655 = vector.shape_cast %652 : vector<8x128xf32> to vector<1x8x128xf32>
    tpu.vector_store %arg6[%c22, %c0_285, %c0_286], %655 {strides = array<i32>} : memref<25x8x128xf32, #tpu.memory_space<vmem>>, vector<1x8x128xf32>,
    %c22_287 = arith.constant 22 : index
    %c0_288 = arith.constant 0 : index
    %c0_289 = arith.constant 0 : index
    %656 = vector.load %arg7[%c22_287, %c0_288, %c0_289] : memref<25x8x128xf32, #tpu.memory_space<vmem>>, vector<1x8x128xf32>
    %657 = vector.shape_cast %656 : vector<1x8x128xf32> to vector<8x128xf32>
    %658 = vector.shape_cast %648 : vector<8x128xf32> to vector<1x8x128xf32>
    tpu.vector_store %arg7[%c22_287, %c0_288, %c0_289], %658 {strides = array<i32>} : memref<25x8x128xf32, #tpu.memory_space<vmem>>, vector<1x8x128xf32>,
    %cst_290 = arith.constant 0.899999976 : f32
    %659 = vector.broadcast %cst_290 : f32 to vector<8x128xf32>
    %660 = arith.mulf %659, %636 : vector<8x128xf32>
    %661 = arith.addf %660, %6 : vector<8x128xf32>
    %cst_291 = arith.constant 1.000000e+00 : f32
    %662 = vector.broadcast %cst_291 : f32 to vector<8x128xf32>
    %663 = arith.mulf %640, %662 : vector<8x128xf32>
    %664 = arith.subf %661, %663 : vector<8x128xf32>
    %cst_292 = arith.constant 1.000000e+00 : f32
    %665 = vector.broadcast %cst_292 : f32 to vector<8x128xf32>
    %666 = arith.cmpf ogt, %664, %665 : vector<8x128xf32>
    %667 = arith.extui %666 : vector<8x128xi1> to vector<8x128xi32>
    %668 = arith.sitofp %667 : vector<8x128xi32> to vector<8x128xf32>
    %cst_293 = arith.constant dense<0.000000e+00> : vector<8x128xf32>
    %669 = tpu.matmul %668, %10, %cst_293 {dimension_numbers = #tpu.dot_dimension_numbers<[1], [0], [0], [1], [0, 0, 1, 1], [], []>} : vector<8x128xf32>, vector<128x128xf32>, vector<8x128xf32> -> vector<8x128xf32>
    %670 = arith.addf %669, %9 : vector<8x128xf32>
    %cst_294 = arith.constant 0.899999976 : f32
    %671 = vector.broadcast %cst_294 : f32 to vector<8x128xf32>
    %672 = arith.mulf %671, %648 : vector<8x128xf32>
    %673 = arith.addf %672, %670 : vector<8x128xf32>
    %cst_295 = arith.constant 1.000000e+00 : f32
    %674 = vector.broadcast %cst_295 : f32 to vector<8x128xf32>
    %675 = arith.mulf %652, %674 : vector<8x128xf32>
    %676 = arith.subf %673, %675 : vector<8x128xf32>
    %cst_296 = arith.constant 1.000000e+00 : f32
    %677 = vector.broadcast %cst_296 : f32 to vector<8x128xf32>
    %678 = arith.cmpf ogt, %676, %677 : vector<8x128xf32>
    %679 = arith.extui %678 : vector<8x128xi1> to vector<8x128xi32>
    %680 = arith.sitofp %679 : vector<8x128xi32> to vector<8x128xf32>
    %c23 = arith.constant 23 : index
    %c0_297 = arith.constant 0 : index
    %c0_298 = arith.constant 0 : index
    %681 = vector.load %arg6[%c23, %c0_297, %c0_298] : memref<25x8x128xf32, #tpu.memory_space<vmem>>, vector<1x8x128xf32>
    %682 = vector.shape_cast %681 : vector<1x8x128xf32> to vector<8x128xf32>
    %683 = vector.shape_cast %680 : vector<8x128xf32> to vector<1x8x128xf32>
    tpu.vector_store %arg6[%c23, %c0_297, %c0_298], %683 {strides = array<i32>} : memref<25x8x128xf32, #tpu.memory_space<vmem>>, vector<1x8x128xf32>,
    %c23_299 = arith.constant 23 : index
    %c0_300 = arith.constant 0 : index
    %c0_301 = arith.constant 0 : index
    %684 = vector.load %arg7[%c23_299, %c0_300, %c0_301] : memref<25x8x128xf32, #tpu.memory_space<vmem>>, vector<1x8x128xf32>
    %685 = vector.shape_cast %684 : vector<1x8x128xf32> to vector<8x128xf32>
    %686 = vector.shape_cast %676 : vector<8x128xf32> to vector<1x8x128xf32>
    tpu.vector_store %arg7[%c23_299, %c0_300, %c0_301], %686 {strides = array<i32>} : memref<25x8x128xf32, #tpu.memory_space<vmem>>, vector<1x8x128xf32>,
    %cst_302 = arith.constant 0.899999976 : f32
    %687 = vector.broadcast %cst_302 : f32 to vector<8x128xf32>
    %688 = arith.mulf %687, %664 : vector<8x128xf32>
    %689 = arith.addf %688, %6 : vector<8x128xf32>
    %cst_303 = arith.constant 1.000000e+00 : f32
    %690 = vector.broadcast %cst_303 : f32 to vector<8x128xf32>
    %691 = arith.mulf %668, %690 : vector<8x128xf32>
    %692 = arith.subf %689, %691 : vector<8x128xf32>
    %cst_304 = arith.constant 1.000000e+00 : f32
    %693 = vector.broadcast %cst_304 : f32 to vector<8x128xf32>
    %694 = arith.cmpf ogt, %692, %693 : vector<8x128xf32>
    %695 = arith.extui %694 : vector<8x128xi1> to vector<8x128xi32>
    %696 = arith.sitofp %695 : vector<8x128xi32> to vector<8x128xf32>
    %cst_305 = arith.constant dense<0.000000e+00> : vector<8x128xf32>
    %697 = tpu.matmul %696, %10, %cst_305 {dimension_numbers = #tpu.dot_dimension_numbers<[1], [0], [0], [1], [0, 0, 1, 1], [], []>} : vector<8x128xf32>, vector<128x128xf32>, vector<8x128xf32> -> vector<8x128xf32>
    %698 = arith.addf %697, %9 : vector<8x128xf32>
    %cst_306 = arith.constant 0.899999976 : f32
    %699 = vector.broadcast %cst_306 : f32 to vector<8x128xf32>
    %700 = arith.mulf %699, %676 : vector<8x128xf32>
    %701 = arith.addf %700, %698 : vector<8x128xf32>
    %cst_307 = arith.constant 1.000000e+00 : f32
    %702 = vector.broadcast %cst_307 : f32 to vector<8x128xf32>
    %703 = arith.mulf %680, %702 : vector<8x128xf32>
    %704 = arith.subf %701, %703 : vector<8x128xf32>
    %cst_308 = arith.constant 1.000000e+00 : f32
    %705 = vector.broadcast %cst_308 : f32 to vector<8x128xf32>
    %706 = arith.cmpf ogt, %704, %705 : vector<8x128xf32>
    %707 = arith.extui %706 : vector<8x128xi1> to vector<8x128xi32>
    %708 = arith.sitofp %707 : vector<8x128xi32> to vector<8x128xf32>
    %c24 = arith.constant 24 : index
    %c0_309 = arith.constant 0 : index
    %c0_310 = arith.constant 0 : index
    %709 = vector.load %arg6[%c24, %c0_309, %c0_310] : memref<25x8x128xf32, #tpu.memory_space<vmem>>, vector<1x8x128xf32>
    %710 = vector.shape_cast %709 : vector<1x8x128xf32> to vector<8x128xf32>
    %711 = vector.shape_cast %708 : vector<8x128xf32> to vector<1x8x128xf32>
    tpu.vector_store %arg6[%c24, %c0_309, %c0_310], %711 {strides = array<i32>} : memref<25x8x128xf32, #tpu.memory_space<vmem>>, vector<1x8x128xf32>,
    %c24_311 = arith.constant 24 : index
    %c0_312 = arith.constant 0 : index
    %c0_313 = arith.constant 0 : index
    %712 = vector.load %arg7[%c24_311, %c0_312, %c0_313] : memref<25x8x128xf32, #tpu.memory_space<vmem>>, vector<1x8x128xf32>
    %713 = vector.shape_cast %712 : vector<1x8x128xf32> to vector<8x128xf32>
    %714 = vector.shape_cast %704 : vector<8x128xf32> to vector<1x8x128xf32>
    tpu.vector_store %arg7[%c24_311, %c0_312, %c0_313], %714 {strides = array<i32>} : memref<25x8x128xf32, #tpu.memory_space<vmem>>, vector<1x8x128xf32>,
    return
  }
  func.func @transform_0(%arg0: i32) -> (i32, i32) {
    %c0_i32 = arith.constant 0 : i32
    %c0_i32_0 = arith.constant 0 : i32
    %c0_i32_1 = arith.constant 0 : i32
    return %c0_i32, %c0_i32_0 : i32, i32
  }
  func.func @transform_1(%arg0: i32) -> (i32, i32) {
    %c0_i32 = arith.constant 0 : i32
    %c0_i32_0 = arith.constant 0 : i32
    %c0_i32_1 = arith.constant 0 : i32
    return %c0_i32, %c0_i32_0 : i32, i32
  }
  func.func @transform_2(%arg0: i32) -> (i32, i32) {
    %c0_i32 = arith.constant 0 : i32
    %c0_i32_0 = arith.constant 0 : i32
    %c0_i32_1 = arith.constant 0 : i32
    return %c0_i32, %c0_i32_0 : i32, i32
  }
  func.func @transform_3(%arg0: i32) -> (i32, i32) {
    %c0_i32 = arith.constant 0 : i32
    %c0_i32_0 = arith.constant 0 : i32
    %c0_i32_1 = arith.constant 0 : i32
    return %c0_i32, %c0_i32_0 : i32, i32
  }
  func.func @transform_4(%arg0: i32) -> (i32, i32) {
    %c0_i32 = arith.constant 0 : i32
    %c0_i32_0 = arith.constant 0 : i32
    %c0_i32_1 = arith.constant 0 : i32
    return %c0_i32, %c0_i32_0 : i32, i32
  }
  func.func @transform_5(%arg0: i32) -> (i32, i32, i32) {
    %c0_i32 = arith.constant 0 : i32
    %c0_i32_0 = arith.constant 0 : i32
    %c0_i32_1 = arith.constant 0 : i32
    %c0_i32_2 = arith.constant 0 : i32
    return %c0_i32, %c0_i32_0, %c0_i32_1 : i32, i32, i32
  }
  func.func @transform_6(%arg0: i32) -> (i32, i32, i32) {
    %c0_i32 = arith.constant 0 : i32
    %c0_i32_0 = arith.constant 0 : i32
    %c0_i32_1 = arith.constant 0 : i32
    %c0_i32_2 = arith.constant 0 : i32
    return %c0_i32, %c0_i32_0, %c0_i32_1 : i32, i32, i32
  }
}

</mosaic_0001>

<llo_original>
// kernel: tpu_custom_call.1
$region0: #{tpu_custom_call.1}
  #allocation0 [shape = 'u32[]', space=smem, size = 0x4, offset = 0x4, fixed_abs, tag = 'smem constant byte address 0x4 - core index']
  #allocation1 [shape = 'u32[144,128]{1,0:T(1,128)}', space=vmem, size = 0x12000, scoped, tag = 'internal scratch']
  %s0 = inlined_call_operand.hbm [shape: f32[8,128], index: 0, kind: input, shape index: {}]
  %s1 = inlined_call_operand.hbm [shape: f32[128,128], index: 1, kind: input, shape index: {}]
  %s2 = inlined_call_operand.vmem [shape: f32[1,128], index: 2, kind: input, shape index: {}]
  %s3 = inlined_call_operand.hbm [shape: f32[128,128], index: 3, kind: input, shape index: {}]
  %s4 = inlined_call_operand.vmem [shape: f32[1,128], index: 4, kind: input, shape index: {}]
  %s5 = inlined_call_operand.hbm [shape: f32[25,8,128], index: 5, kind: output, shape index: {0}]
  %s6 = inlined_call_operand.hbm [shape: f32[25,8,128], index: 6, kind: output, shape index: {1}]
  %7 = xla_tuple %s5, %s6
  %s8 = sld [smem:[#allocation0]]
  $region50: #{tpu_custom_call.1} parent=0
    _
  %s10 = ssub.s32 1, %s8
  %s11 = scalar_select 0, %s10, %s8
  $region1: #{tpu_custom_call.1} parent=0
    #allocation2 [shape = 'u8[4096]{0}', space=vmem, size = 0x1000, scoped, tag = 'input window, operand 0, single buffered']
    #allocation3 [shape = 's32[1]{0}', space=sflag, size = 0x4, scoped, tag = 'scoped memory for tpu_custom_call.1']
    #allocation4 [shape = 's32[1]{0}', space=sflag, size = 0x4, scoped, tag = 'scoped memory for tpu_custom_call.1']
    #allocation5 [shape = 'u8[65536]{0}', space=vmem, size = 0x10000, scoped, tag = 'input window, operand 1, single buffered']
    #allocation6 [shape = 's32[1]{0}', space=sflag, size = 0x4, scoped, tag = 'scoped memory for tpu_custom_call.1']
    #allocation7 [shape = 'u8[65536]{0}', space=vmem, size = 0x10000, scoped, tag = 'input window, operand 3, single buffered']
    #allocation8 [shape = 'u8[102400]{0}', space=vmem, size = 0x19000, scoped, tag = 'output window, operand 0, single buffered']
    #allocation9 [shape = 'u8[102400]{0}', space=vmem, size = 0x19000, scoped, tag = 'output window, operand 1, single buffered']
    #allocation10 [shape = 's32[1]{0}', space=sflag, size = 0x4, scoped, tag = 'scoped memory for tpu_custom_call.1']
    %12 = vsyncpa [#allocation3], 0
    %13 = vsyncpa [#allocation6], 0
    %14 = vsyncpa [#allocation4], 0
    %15 = vsyncpa [#allocation10], 0
    // Predicated region
    $region2: #{tpu_custom_call.1} parent=1 // pred_check
      _
    $region3: #{tpu_custom_call.1} parent=1 // pred_check_branch
      %17 = sbr.rel (0) target = $region5
    $region4: #{tpu_custom_call.1} parent=1 // pred_region
      %s19 = ssub.s32 128, 128
      %20 = vsyncadd [#allocation3], %s19
      %s22 = sshll.u32 [#allocation2], 4
      %s23 = int_to_ptr.vmem [resolvable:$true] %s22
      %25 = dma.hbm_to_vmem [thread:$0]  %s0, 128, %s23, [#allocation3]
    $region5: #{tpu_custom_call.1} parent=1 // pred_fallthru
      _
    // Predicated region
    $region6: #{tpu_custom_call.1} parent=1 // pred_check
      _
    $region7: #{tpu_custom_call.1} parent=1 // pred_check_branch
      %27 = sbr.rel (0) target = $region9
    $region8: #{tpu_custom_call.1} parent=1 // pred_region
      %s29 = ssub.s32 2048, 2048
      %30 = vsyncadd [#allocation6], %s29
      %s31 = sshll.u32 [#allocation5], 4
      %s32 = int_to_ptr.vmem [resolvable:$true] %s31
      %37 = dma.hbm_to_vmem [thread:$0]  %s1, 2048, %s32, [#allocation6], 128, 128, 8
    $region9: #{tpu_custom_call.1} parent=1 // pred_fallthru
      _
    // Predicated region
    $region10: #{tpu_custom_call.1} parent=1 // pred_check
      _
    $region11: #{tpu_custom_call.1} parent=1 // pred_check_branch
      %39 = sbr.rel (0) target = $region13
    $region12: #{tpu_custom_call.1} parent=1 // pred_region
      _
    $region13: #{tpu_custom_call.1} parent=1 // pred_fallthru
      _
    // Predicated region
    $region14: #{tpu_custom_call.1} parent=1 // pred_check
      _
    $region15: #{tpu_custom_call.1} parent=1 // pred_check_branch
      %41 = sbr.rel (0) target = $region17
    $region16: #{tpu_custom_call.1} parent=1 // pred_region
      %s43 = ssub.s32 2048, 2048
      %44 = vsyncadd [#allocation6], %s43
      %s45 = sshll.u32 [#allocation7], 4
      %s46 = int_to_ptr.vmem [resolvable:$true] %s45
      %51 = dma.hbm_to_vmem [thread:$0]  %s3, 2048, %s46, [#allocation6], 128, 128, 8
    $region17: #{tpu_custom_call.1} parent=1 // pred_fallthru
      _
    // Predicated region
    $region18: #{tpu_custom_call.1} parent=1 // pred_check
      _
    $region19: #{tpu_custom_call.1} parent=1 // pred_check_branch
      %53 = sbr.rel (0) target = $region21
    $region20: #{tpu_custom_call.1} parent=1 // pred_region
      _
    $region21: #{tpu_custom_call.1} parent=1 // pred_fallthru
      _
    // Predicated region
    $region22: #{tpu_custom_call.1} parent=1 // pred_check
      _
    $region23: #{tpu_custom_call.1} parent=1 // pred_check_branch
      %55 = sbr.rel (0) target = $region25
    $region24: #{tpu_custom_call.1} parent=1 // pred_region
      %56 = dma.done [#allocation3], 128
    $region25: #{tpu_custom_call.1} parent=1 // pred_fallthru
      _
    // Predicated region
    $region26: #{tpu_custom_call.1} parent=1 // pred_check
      _
    $region27: #{tpu_custom_call.1} parent=1 // pred_check_branch
      %58 = sbr.rel (0) target = $region29
    $region28: #{tpu_custom_call.1} parent=1 // pred_region
      %59 = dma.done [#allocation6], 2048
    $region29: #{tpu_custom_call.1} parent=1 // pred_fallthru
      _
    // Predicated region
    $region30: #{tpu_custom_call.1} parent=1 // pred_check
      _
    $region31: #{tpu_custom_call.1} parent=1 // pred_check_branch
      %61 = sbr.rel (0) target = $region33
    $region32: #{tpu_custom_call.1} parent=1 // pred_region
      %62 = dma.done [#allocation6], 2048
    $region33: #{tpu_custom_call.1} parent=1 // pred_fallthru
      _
    %v63 = vld [vmem:[#allocation2] sm:$0xff]
    %v64 = vld [vmem:[#allocation5] sm:$0xff]
    %v65 = vld [vmem:[#allocation5 + $0x8] sm:$0xff]
    %v66 = vld [vmem:[#allocation5 + $0x10] sm:$0xff]
    %v67 = vld [vmem:[#allocation5 + $0x18] sm:$0xff]
    %v68 = vld [vmem:[#allocation5 + $0x20] sm:$0xff]
    %v69 = vld [vmem:[#allocation5 + $0x28] sm:$0xff]
    %v70 = vld [vmem:[#allocation5 + $0x30] sm:$0xff]
    %v71 = vld [vmem:[#allocation5 + $0x38] sm:$0xff]
    %v72 = vld [vmem:[#allocation5 + $0x40] sm:$0xff]
    %v73 = vld [vmem:[#allocation5 + $0x48] sm:$0xff]
    %v74 = vld [vmem:[#allocation5 + $0x50] sm:$0xff]
    %v75 = vld [vmem:[#allocation5 + $0x58] sm:$0xff]
    %v76 = vld [vmem:[#allocation5 + $0x60] sm:$0xff]
    %v77 = vld [vmem:[#allocation5 + $0x68] sm:$0xff]
    %v78 = vld [vmem:[#allocation5 + $0x70] sm:$0xff]
    %v79 = vld [vmem:[#allocation5 + $0x78] sm:$0xff]
    %v80 = vld [vmem:[%s2] sm:$0x1]
    %v82 = vlaneseq
    %v83 = vshrl.u32 %v82, 7
    %v84 = vsub.s32 0, %v83
    %v85 = vrot.slane %v80, %v84
    %87 = vmatprep.subr.mxu0 0.0
    %88 = vmatpush1.msra.mxu0 %v64
    %89 = vmatprep.subr.mxu0 0.0
    %90 = vmatpush1.msra.mxu0 %v65
    %91 = vmatprep.subr.mxu0 0.0
    %92 = vmatpush1.msra.mxu0 %v66
    %93 = vmatprep.subr.mxu0 0.0
    %94 = vmatpush1.msra.mxu0 %v67
    %95 = vmatprep.subr.mxu0 0.0
    %96 = vmatpush1.msra.mxu0 %v68
    %97 = vmatprep.subr.mxu0 0.0
    %98 = vmatpush1.msra.mxu0 %v69
    %99 = vmatprep.subr.mxu0 0.0
    %100 = vmatpush1.msra.mxu0 %v70
    %101 = vmatprep.subr.mxu0 0.0
    %102 = vmatpush1.msra.mxu0 %v71
    %103 = vmatprep.subr.mxu0 0.0
    %104 = vmatpush1.msra.mxu0 %v72
    %105 = vmatprep.subr.mxu0 0.0
    %106 = vmatpush1.msra.mxu0 %v73
    %107 = vmatprep.subr.mxu0 0.0
    %108 = vmatpush1.msra.mxu0 %v74
    %109 = vmatprep.subr.mxu0 0.0
    %110 = vmatpush1.msra.mxu0 %v75
    %111 = vmatprep.subr.mxu0 0.0
    %112 = vmatpush1.msra.mxu0 %v76
    %113 = vmatprep.subr.mxu0 0.0
    %114 = vmatpush1.msra.mxu0 %v77
    %115 = vmatprep.subr.mxu0 0.0
    %116 = vmatpush1.msra.mxu0 %v78
    %117 = vmatprep.subr.mxu0 0.0
    %118 = vmatpush1.msra.mxu0 %v79
    %119 = vmatprep.subr.mxu0 0.0
    %120 = vmatpush1.msra.mxu0 0.0
    %121 = vmatprep.subr.mxu0 0.0
    %122 = vmatpush1.msra.mxu0 0.0
    %123 = vmatprep.subr.mxu0 0.0
    %124 = vmatpush1.msra.mxu0 0.0
    %125 = vmatprep.subr.mxu0 0.0
    %126 = vmatpush1.msra.mxu0 0.0
    %127 = vmatprep.subr.mxu0 0.0
    %128 = vmatpush1.msra.mxu0 0.0
    %129 = vmatprep.subr.mxu0 0.0
    %130 = vmatpush1.msra.mxu0 0.0
    %131 = vmatprep.subr.mxu0 0.0
    %132 = vmatpush1.msra.mxu0 0.0
    %133 = vmatprep.subr.mxu0 0.0
    %134 = vmatpush1.msra.mxu0 0.0
    %135 = vmatprep.subr.mxu0 0.0
    %136 = vmatpush1.msra.mxu0 0.0
    %137 = vmatprep.subr.mxu0 0.0
    %138 = vmatpush1.msra.mxu0 0.0
    %139 = vmatprep.subr.mxu0 0.0
    %140 = vmatpush1.msra.mxu0 0.0
    %141 = vmatprep.subr.mxu0 0.0
    %142 = vmatpush1.msra.mxu0 0.0
    %143 = vmatprep.subr.mxu0 0.0
    %144 = vmatpush1.msra.mxu0 0.0
    %145 = vmatprep.subr.mxu0 0.0
    %146 = vmatpush1.msra.mxu0 0.0
    %147 = vmatprep.subr.mxu0 0.0
    %148 = vmatpush1.msra.mxu0 0.0
    %149 = vmatprep.subr.mxu0 0.0
    %150 = vmatpush1.msra.mxu0 0.0
    %151 = vmatprep.mubr.f32.mxu0 0.0
    %152 = vmatmul.mubr.f32.gmra.mrb[0].mxu0 %v63
    %v153 = vpop.f32.mrb[0].mxu0
    %v154 = vadd.f32 %v85, %v153
    %v155 = vpop.f32.mrb[0].mxu0
    %156 = vdwg.mxu0
    %v157 = vld [vmem:[%s4] sm:$0x1]
    %v159 = vlaneseq
    %v160 = vshrl.u32 %v159, 7
    %v161 = vsub.s32 0, %v160
    %v162 = vrot.slane %v157, %v161
    %v164 = vld [vmem:[#allocation7] sm:$0xff]
    %v165 = vld [vmem:[#allocation7 + $0x8] sm:$0xff]
    %v166 = vld [vmem:[#allocation7 + $0x10] sm:$0xff]
    %v167 = vld [vmem:[#allocation7 + $0x18] sm:$0xff]
    %v168 = vld [vmem:[#allocation7 + $0x20] sm:$0xff]
    %v169 = vld [vmem:[#allocation7 + $0x28] sm:$0xff]
    %v170 = vld [vmem:[#allocation7 + $0x30] sm:$0xff]
    %v171 = vld [vmem:[#allocation7 + $0x38] sm:$0xff]
    %v172 = vld [vmem:[#allocation7 + $0x40] sm:$0xff]
    %v173 = vld [vmem:[#allocation7 + $0x48] sm:$0xff]
    %v174 = vld [vmem:[#allocation7 + $0x50] sm:$0xff]
    %v175 = vld [vmem:[#allocation7 + $0x58] sm:$0xff]
    %v176 = vld [vmem:[#allocation7 + $0x60] sm:$0xff]
    %v177 = vld [vmem:[#allocation7 + $0x68] sm:$0xff]
    %v178 = vld [vmem:[#allocation7 + $0x70] sm:$0xff]
    %v179 = vld [vmem:[#allocation7 + $0x78] sm:$0xff]
    %v180 = vadd.f32 %v154, 0.0
    %vm181 = vcmp.gt.f32.partialorder %v180, 1.0
    %v182 = vsel %vm181, 1, 0
    %v183 = vcvt.s32.f32 %v182
    %184 = vmatprep.subr.mxu0 0.0
    %185 = vmatpush1.msra.mxu0 %v164
    %186 = vmatprep.subr.mxu0 0.0
    %187 = vmatpush1.msra.mxu0 %v165
    %188 = vmatprep.subr.mxu0 0.0
    %189 = vmatpush1.msra.mxu0 %v166
    %190 = vmatprep.subr.mxu0 0.0
    %191 = vmatpush1.msra.mxu0 %v167
    %192 = vmatprep.subr.mxu0 0.0
    %193 = vmatpush1.msra.mxu0 %v168
    %194 = vmatprep.subr.mxu0 0.0
    %195 = vmatpush1.msra.mxu0 %v169
    %196 = vmatprep.subr.mxu0 0.0
    %197 = vmatpush1.msra.mxu0 %v170
    %198 = vmatprep.subr.mxu0 0.0
    %199 = vmatpush1.msra.mxu0 %v171
    %200 = vmatprep.subr.mxu0 0.0
    %201 = vmatpush1.msra.mxu0 %v172
    %202 = vmatprep.subr.mxu0 0.0
    %203 = vmatpush1.msra.mxu0 %v173
    %204 = vmatprep.subr.mxu0 0.0
    %205 = vmatpush1.msra.mxu0 %v174
    %206 = vmatprep.subr.mxu0 0.0
    %207 = vmatpush1.msra.mxu0 %v175
    %208 = vmatprep.subr.mxu0 0.0
    %209 = vmatpush1.msra.mxu0 %v176
    %210 = vmatprep.subr.mxu0 0.0
    %211 = vmatpush1.msra.mxu0 %v177
    %212 = vmatprep.subr.mxu0 0.0
    %213 = vmatpush1.msra.mxu0 %v178
    %214 = vmatprep.subr.mxu0 0.0
    %215 = vmatpush1.msra.mxu0 %v179
    %216 = vmatprep.subr.mxu0 0.0
    %217 = vmatpush1.msra.mxu0 0.0
    %218 = vmatprep.subr.mxu0 0.0
    %219 = vmatpush1.msra.mxu0 0.0
    %220 = vmatprep.subr.mxu0 0.0
    %221 = vmatpush1.msra.mxu0 0.0
    %222 = vmatprep.subr.mxu0 0.0
    %223 = vmatpush1.msra.mxu0 0.0
    %224 = vmatprep.subr.mxu0 0.0
    %225 = vmatpush1.msra.mxu0 0.0
    %226 = vmatprep.subr.mxu0 0.0
    %227 = vmatpush1.msra.mxu0 0.0
    %228 = vmatprep.subr.mxu0 0.0
    %229 = vmatpush1.msra.mxu0 0.0
    %230 = vmatprep.subr.mxu0 0.0
    %231 = vmatpush1.msra.mxu0 0.0
    %232 = vmatprep.subr.mxu0 0.0
    %233 = vmatpush1.msra.mxu0 0.0
    %234 = vmatprep.subr.mxu0 0.0
    %235 = vmatpush1.msra.mxu0 0.0
    %236 = vmatprep.subr.mxu0 0.0
    %237 = vmatpush1.msra.mxu0 0.0
    %238 = vmatprep.subr.mxu0 0.0
    %239 = vmatpush1.msra.mxu0 0.0
    %240 = vmatprep.subr.mxu0 0.0
    %241 = vmatpush1.msra.mxu0 0.0
    %242 = vmatprep.subr.mxu0 0.0
    %243 = vmatpush1.msra.mxu0 0.0
    %244 = vmatprep.subr.mxu0 0.0
    %245 = vmatpush1.msra.mxu0 0.0
    %246 = vmatprep.subr.mxu0 0.0
    %247 = vmatpush1.msra.mxu0 0.0
    %248 = vmatprep.mubr.f32.mxu0 0.0
    %249 = vmatmul.mubr.f32.gmra.mrb[0].mxu0 %v183
    %v250 = vpop.f32.mrb[0].mxu0
    %v251 = vadd.f32 %v162, %v250
    %v252 = vpop.f32.mrb[0].mxu0
    %253 = vdwg.mxu0
    %v254 = vadd.f32 %v251, 0.0
    %vm255 = vcmp.gt.f32.partialorder %v254, 1.0
    %v256 = vsel %vm255, 1, 0
    %v257 = vcvt.s32.f32 %v256
    %258 = vst [vmem:[#allocation8] sm:$0xff] %v257
    %259 = vst [vmem:[#allocation9] sm:$0xff] %v254
    %v260 = vmul.f32 %v180, 0.9
    %v261 = vadd.f32 %v260, %v154
    %v262 = vsub.f32 %v261, %v183
    %vm263 = vcmp.gt.f32.partialorder %v262, 1.0
    %v264 = vsel %vm263, 1, 0
    %v265 = vcvt.s32.f32 %v264
    %266 = vmatprep.subr.mxu0 0.0
    %267 = vmatpush1.msra.mxu0 %v164
    %268 = vmatprep.subr.mxu0 0.0
    %269 = vmatpush1.msra.mxu0 %v165
    %270 = vmatprep.subr.mxu0 0.0
    %271 = vmatpush1.msra.mxu0 %v166
    %272 = vmatprep.subr.mxu0 0.0
    %273 = vmatpush1.msra.mxu0 %v167
    %274 = vmatprep.subr.mxu0 0.0
    %275 = vmatpush1.msra.mxu0 %v168
    %276 = vmatprep.subr.mxu0 0.0
    %277 = vmatpush1.msra.mxu0 %v169
    %278 = vmatprep.subr.mxu0 0.0
    %279 = vmatpush1.msra.mxu0 %v170
    %280 = vmatprep.subr.mxu0 0.0
    %281 = vmatpush1.msra.mxu0 %v171
    %282 = vmatprep.subr.mxu0 0.0
    %283 = vmatpush1.msra.mxu0 %v172
    %284 = vmatprep.subr.mxu0 0.0
    %285 = vmatpush1.msra.mxu0 %v173
    %286 = vmatprep.subr.mxu0 0.0
    %287 = vmatpush1.msra.mxu0 %v174
    %288 = vmatprep.subr.mxu0 0.0
    %289 = vmatpush1.msra.mxu0 %v175
    %290 = vmatprep.subr.mxu0 0.0
    %291 = vmatpush1.msra.mxu0 %v176
    %292 = vmatprep.subr.mxu0 0.0
    %293 = vmatpush1.msra.mxu0 %v177
    %294 = vmatprep.subr.mxu0 0.0
    %295 = vmatpush1.msra.mxu0 %v178
    %296 = vmatprep.subr.mxu0 0.0
    %297 = vmatpush1.msra.mxu0 %v179
    %298 = vmatprep.subr.mxu0 0.0
    %299 = vmatpush1.msra.mxu0 0.0
    %300 = vmatprep.subr.mxu0 0.0
    %301 = vmatpush1.msra.mxu0 0.0
    %302 = vmatprep.subr.mxu0 0.0
    %303 = vmatpush1.msra.mxu0 0.0
    %304 = vmatprep.subr.mxu0 0.0
    %305 = vmatpush1.msra.mxu0 0.0
    %306 = vmatprep.subr.mxu0 0.0
    %307 = vmatpush1.msra.mxu0 0.0
    %308 = vmatprep.subr.mxu0 0.0
    %309 = vmatpush1.msra.mxu0 0.0
    %310 = vmatprep.subr.mxu0 0.0
    %311 = vmatpush1.msra.mxu0 0.0
    %312 = vmatprep.subr.mxu0 0.0
    %313 = vmatpush1.msra.mxu0 0.0
    %314 = vmatprep.subr.mxu0 0.0
    %315 = vmatpush1.msra.mxu0 0.0
    %316 = vmatprep.subr.mxu0 0.0
    %317 = vmatpush1.msra.mxu0 0.0
    %318 = vmatprep.subr.mxu0 0.0
    %319 = vmatpush1.msra.mxu0 0.0
    %320 = vmatprep.subr.mxu0 0.0
    %321 = vmatpush1.msra.mxu0 0.0
    %322 = vmatprep.subr.mxu0 0.0
    %323 = vmatpush1.msra.mxu0 0.0
    %324 = vmatprep.subr.mxu0 0.0
    %325 = vmatpush1.msra.mxu0 0.0
    %326 = vmatprep.subr.mxu0 0.0
    %327 = vmatpush1.msra.mxu0 0.0
    %328 = vmatprep.subr.mxu0 0.0
    %329 = vmatpush1.msra.mxu0 0.0
    %330 = vmatprep.mubr.f32.mxu0 0.0
    %331 = vmatmul.mubr.f32.gmra.mrb[0].mxu0 %v265
    %v332 = vpop.f32.mrb[0].mxu0
    %v333 = vadd.f32 %v162, %v332
    %v334 = vpop.f32.mrb[0].mxu0
    %335 = vdwg.mxu0
    %v336 = vmul.f32 %v254, 0.9
    %v337 = vadd.f32 %v336, %v333
    %v338 = vsub.f32 %v337, %v257
    %vm339 = vcmp.gt.f32.partialorder %v338, 1.0
    %v340 = vsel %vm339, 1, 0
    %v341 = vcvt.s32.f32 %v340
    %s342 = scalar_lea.vmem [#allocation8], 8
    %343 = vst [vmem:[%s342] sm:$0xff] %v341
    %s344 = scalar_lea.vmem [#allocation9], 8
    %345 = vst [vmem:[%s344] sm:$0xff] %v338
    %v346 = vmul.f32 %v262, 0.9
    %v347 = vadd.f32 %v346, %v154
    %v348 = vsub.f32 %v347, %v265
    %vm349 = vcmp.gt.f32.partialorder %v348, 1.0
    %v350 = vsel %vm349, 1, 0
    %v351 = vcvt.s32.f32 %v350
    %352 = vmatprep.subr.mxu0 0.0
    %353 = vmatpush1.msra.mxu0 %v164
    %354 = vmatprep.subr.mxu0 0.0
    %355 = vmatpush1.msra.mxu0 %v165
    %356 = vmatprep.subr.mxu0 0.0
    %357 = vmatpush1.msra.mxu0 %v166
    %358 = vmatprep.subr.mxu0 0.0
    %359 = vmatpush1.msra.mxu0 %v167
    %360 = vmatprep.subr.mxu0 0.0
    %361 = vmatpush1.msra.mxu0 %v168
    %362 = vmatprep.subr.mxu0 0.0
    %363 = vmatpush1.msra.mxu0 %v169
    %364 = vmatprep.subr.mxu0 0.0
    %365 = vmatpush1.msra.mxu0 %v170
    %366 = vmatprep.subr.mxu0 0.0
    %367 = vmatpush1.msra.mxu0 %v171
    %368 = vmatprep.subr.mxu0 0.0
    %369 = vmatpush1.msra.mxu0 %v172
    %370 = vmatprep.subr.mxu0 0.0
    %371 = vmatpush1.msra.mxu0 %v173
    %372 = vmatprep.subr.mxu0 0.0
    %373 = vmatpush1.msra.mxu0 %v174
    %374 = vmatprep.subr.mxu0 0.0
    %375 = vmatpush1.msra.mxu0 %v175
    %376 = vmatprep.subr.mxu0 0.0
    %377 = vmatpush1.msra.mxu0 %v176
    %378 = vmatprep.subr.mxu0 0.0
    %379 = vmatpush1.msra.mxu0 %v177
    %380 = vmatprep.subr.mxu0 0.0
    %381 = vmatpush1.msra.mxu0 %v178
    %382 = vmatprep.subr.mxu0 0.0
    %383 = vmatpush1.msra.mxu0 %v179
    %384 = vmatprep.subr.mxu0 0.0
    %385 = vmatpush1.msra.mxu0 0.0
    %386 = vmatprep.subr.mxu0 0.0
    %387 = vmatpush1.msra.mxu0 0.0
    %388 = vmatprep.subr.mxu0 0.0
    %389 = vmatpush1.msra.mxu0 0.0
    %390 = vmatprep.subr.mxu0 0.0
    %391 = vmatpush1.msra.mxu0 0.0
    %392 = vmatprep.subr.mxu0 0.0
    %393 = vmatpush1.msra.mxu0 0.0
    %394 = vmatprep.subr.mxu0 0.0
    %395 = vmatpush1.msra.mxu0 0.0
    %396 = vmatprep.subr.mxu0 0.0
    %397 = vmatpush1.msra.mxu0 0.0
    %398 = vmatprep.subr.mxu0 0.0
    %399 = vmatpush1.msra.mxu0 0.0
    %400 = vmatprep.subr.mxu0 0.0
    %401 = vmatpush1.msra.mxu0 0.0
    %402 = vmatprep.subr.mxu0 0.0
    %403 = vmatpush1.msra.mxu0 0.0
    %404 = vmatprep.subr.mxu0 0.0
    %405 = vmatpush1.msra.mxu0 0.0
    %406 = vmatprep.subr.mxu0 0.0
    %407 = vmatpush1.msra.mxu0 0.0
    %408 = vmatprep.subr.mxu0 0.0
    %409 = vmatpush1.msra.mxu0 0.0
    %410 = vmatprep.subr.mxu0 0.0
    %411 = vmatpush1.msra.mxu0 0.0
    %412 = vmatprep.subr.mxu0 0.0
    %413 = vmatpush1.msra.mxu0 0.0
    %414 = vmatprep.subr.mxu0 0.0
    %415 = vmatpush1.msra.mxu0 0.0
    %416 = vmatprep.mubr.f32.mxu0 0.0
    %417 = vmatmul.mubr.f32.gmra.mrb[0].mxu0 %v351
    %v418 = vpop.f32.mrb[0].mxu0
    %v419 = vadd.f32 %v162, %v418
    %v420 = vpop.f32.mrb[0].mxu0
    %421 = vdwg.mxu0
    %v422 = vmul.f32 %v338, 0.9
    %v423 = vadd.f32 %v422, %v419
    %v424 = vsub.f32 %v423, %v341
    %vm425 = vcmp.gt.f32.partialorder %v424, 1.0
    %v426 = vsel %vm425, 1, 0
    %v427 = vcvt.s32.f32 %v426
    %s428 = scalar_lea.vmem [#allocation8], 16
    %429 = vst [vmem:[%s428] sm:$0xff] %v427
    %s430 = scalar_lea.vmem [#allocation9], 16
    %431 = vst [vmem:[%s430] sm:$0xff] %v424
    %v432 = vmul.f32 %v348, 0.9
    %v433 = vadd.f32 %v432, %v154
    %v434 = vsub.f32 %v433, %v351
    %vm435 = vcmp.gt.f32.partialorder %v434, 1.0
    %v436 = vsel %vm435, 1, 0
    %v437 = vcvt.s32.f32 %v436
    %438 = vmatprep.subr.mxu0 0.0
    %439 = vmatpush1.msra.mxu0 %v164
    %440 = vmatprep.subr.mxu0 0.0
    %441 = vmatpush1.msra.mxu0 %v165
    %442 = vmatprep.subr.mxu0 0.0
    %443 = vmatpush1.msra.mxu0 %v166
    %444 = vmatprep.subr.mxu0 0.0
    %445 = vmatpush1.msra.mxu0 %v167
    %446 = vmatprep.subr.mxu0 0.0
    %447 = vmatpush1.msra.mxu0 %v168
    %448 = vmatprep.subr.mxu0 0.0
    %449 = vmatpush1.msra.mxu0 %v169
    %450 = vmatprep.subr.mxu0 0.0
    %451 = vmatpush1.msra.mxu0 %v170
    %452 = vmatprep.subr.mxu0 0.0
    %453 = vmatpush1.msra.mxu0 %v171
    %454 = vmatprep.subr.mxu0 0.0
    %455 = vmatpush1.msra.mxu0 %v172
    %456 = vmatprep.subr.mxu0 0.0
    %457 = vmatpush1.msra.mxu0 %v173
    %458 = vmatprep.subr.mxu0 0.0
    %459 = vmatpush1.msra.mxu0 %v174
    %460 = vmatprep.subr.mxu0 0.0
    %461 = vmatpush1.msra.mxu0 %v175
    %462 = vmatprep.subr.mxu0 0.0
    %463 = vmatpush1.msra.mxu0 %v176
    %464 = vmatprep.subr.mxu0 0.0
    %465 = vmatpush1.msra.mxu0 %v177
    %466 = vmatprep.subr.mxu0 0.0
    %467 = vmatpush1.msra.mxu0 %v178
    %468 = vmatprep.subr.mxu0 0.0
    %469 = vmatpush1.msra.mxu0 %v179
    %470 = vmatprep.subr.mxu0 0.0
    %471 = vmatpush1.msra.mxu0 0.0
    %472 = vmatprep.subr.mxu0 0.0
    %473 = vmatpush1.msra.mxu0 0.0
    %474 = vmatprep.subr.mxu0 0.0
    %475 = vmatpush1.msra.mxu0 0.0
    %476 = vmatprep.subr.mxu0 0.0
    %477 = vmatpush1.msra.mxu0 0.0
    %478 = vmatprep.subr.mxu0 0.0
    %479 = vmatpush1.msra.mxu0 0.0
    %480 = vmatprep.subr.mxu0 0.0
    %481 = vmatpush1.msra.mxu0 0.0
    %482 = vmatprep.subr.mxu0 0.0
    %483 = vmatpush1.msra.mxu0 0.0
    %484 = vmatprep.subr.mxu0 0.0
    %485 = vmatpush1.msra.mxu0 0.0
    %486 = vmatprep.subr.mxu0 0.0
    %487 = vmatpush1.msra.mxu0 0.0
    %488 = vmatprep.subr.mxu0 0.0
    %489 = vmatpush1.msra.mxu0 0.0
    %490 = vmatprep.subr.mxu0 0.0
    %491 = vmatpush1.msra.mxu0 0.0
    %492 = vmatprep.subr.mxu0 0.0
    %493 = vmatpush1.msra.mxu0 0.0
    %494 = vmatprep.subr.mxu0 0.0
    %495 = vmatpush1.msra.mxu0 0.0
    %496 = vmatprep.subr.mxu0 0.0
    %497 = vmatpush1.msra.mxu0 0.0
    %498 = vmatprep.subr.mxu0 0.0
    %499 = vmatpush1.msra.mxu0 0.0
    %500 = vmatprep.subr.mxu0 0.0
    %501 = vmatpush1.msra.mxu0 0.0
    %502 = vmatprep.mubr.f32.mxu0 0.0
    %503 = vmatmul.mubr.f32.gmra.mrb[0].mxu0 %v437
    %v504 = vpop.f32.mrb[0].mxu0
    %v505 = vadd.f32 %v162, %v504
    %v506 = vpop.f32.mrb[0].mxu0
    %507 = vdwg.mxu0
    %v508 = vmul.f32 %v424, 0.9
    %v509 = vadd.f32 %v508, %v505
    %v510 = vsub.f32 %v509, %v427
    %vm511 = vcmp.gt.f32.partialorder %v510, 1.0
    %v512 = vsel %vm511, 1, 0
    %v513 = vcvt.s32.f32 %v512
    %s514 = scalar_lea.vmem [#allocation8], 24
    %515 = vst [vmem:[%s514] sm:$0xff] %v513
    %s516 = scalar_lea.vmem [#allocation9], 24
    %517 = vst [vmem:[%s516] sm:$0xff] %v510
    %v518 = vmul.f32 %v434, 0.9
    %v519 = vadd.f32 %v518, %v154
    %v520 = vsub.f32 %v519, %v437
    %vm521 = vcmp.gt.f32.partialorder %v520, 1.0
    %v522 = vsel %vm521, 1, 0
    %v523 = vcvt.s32.f32 %v522
    %524 = vmatprep.subr.mxu0 0.0
    %525 = vmatpush1.msra.mxu0 %v164
    %526 = vmatprep.subr.mxu0 0.0
    %527 = vmatpush1.msra.mxu0 %v165
    %528 = vmatprep.subr.mxu0 0.0
    %529 = vmatpush1.msra.mxu0 %v166
    %530 = vmatprep.subr.mxu0 0.0
    %531 = vmatpush1.msra.mxu0 %v167
    %532 = vmatprep.subr.mxu0 0.0
    %533 = vmatpush1.msra.mxu0 %v168
    %534 = vmatprep.subr.mxu0 0.0
    %535 = vmatpush1.msra.mxu0 %v169
    %536 = vmatprep.subr.mxu0 0.0
    %537 = vmatpush1.msra.mxu0 %v170
    %538 = vmatprep.subr.mxu0 0.0
    %539 = vmatpush1.msra.mxu0 %v171
    %540 = vmatprep.subr.mxu0 0.0
    %541 = vmatpush1.msra.mxu0 %v172
    %542 = vmatprep.subr.mxu0 0.0
    %543 = vmatpush1.msra.mxu0 %v173
    %544 = vmatprep.subr.mxu0 0.0
    %545 = vmatpush1.msra.mxu0 %v174
    %546 = vmatprep.subr.mxu0 0.0
    %547 = vmatpush1.msra.mxu0 %v175
    %548 = vmatprep.subr.mxu0 0.0
    %549 = vmatpush1.msra.mxu0 %v176
    %550 = vmatprep.subr.mxu0 0.0
    %551 = vmatpush1.msra.mxu0 %v177
    %552 = vmatprep.subr.mxu0 0.0
    %553 = vmatpush1.msra.mxu0 %v178
    %554 = vmatprep.subr.mxu0 0.0
    %555 = vmatpush1.msra.mxu0 %v179
    %556 = vmatprep.subr.mxu0 0.0
    %557 = vmatpush1.msra.mxu0 0.0
    %558 = vmatprep.subr.mxu0 0.0
    %559 = vmatpush1.msra.mxu0 0.0
    %560 = vmatprep.subr.mxu0 0.0
    %561 = vmatpush1.msra.mxu0 0.0
    %562 = vmatprep.subr.mxu0 0.0
    %563 = vmatpush1.msra.mxu0 0.0
    %564 = vmatprep.subr.mxu0 0.0
    %565 = vmatpush1.msra.mxu0 0.0
    %566 = vmatprep.subr.mxu0 0.0
    %567 = vmatpush1.msra.mxu0 0.0
    %568 = vmatprep.subr.mxu0 0.0
    %569 = vmatpush1.msra.mxu0 0.0
    %570 = vmatprep.subr.mxu0 0.0
    %571 = vmatpush1.msra.mxu0 0.0
    %572 = vmatprep.subr.mxu0 0.0
    %573 = vmatpush1.msra.mxu0 0.0
    %574 = vmatprep.subr.mxu0 0.0
    %575 = vmatpush1.msra.mxu0 0.0
    %576 = vmatprep.subr.mxu0 0.0
    %577 = vmatpush1.msra.mxu0 0.0
    %578 = vmatprep.subr.mxu0 0.0
    %579 = vmatpush1.msra.mxu0 0.0
    %580 = vmatprep.subr.mxu0 0.0
    %581 = vmatpush1.msra.mxu0 0.0
    %582 = vmatprep.subr.mxu0 0.0
    %583 = vmatpush1.msra.mxu0 0.0
    %584 = vmatprep.subr.mxu0 0.0
    %585 = vmatpush1.msra.mxu0 0.0
    %586 = vmatprep.subr.mxu0 0.0
    %587 = vmatpush1.msra.mxu0 0.0
    %588 = vmatprep.mubr.f32.mxu0 0.0
    %589 = vmatmul.mubr.f32.gmra.mrb[0].mxu0 %v523
    %v590 = vpop.f32.mrb[0].mxu0
    %v591 = vadd.f32 %v162, %v590
    %v592 = vpop.f32.mrb[0].mxu0
    %593 = vdwg.mxu0
    %v594 = vmul.f32 %v510, 0.9
    %v595 = vadd.f32 %v594, %v591
    %v596 = vsub.f32 %v595, %v513
    %vm597 = vcmp.gt.f32.partialorder %v596, 1.0
    %v598 = vsel %vm597, 1, 0
    %v599 = vcvt.s32.f32 %v598
    %s600 = scalar_lea.vmem [#allocation8], 32
    %601 = vst [vmem:[%s600] sm:$0xff] %v599
    %s602 = scalar_lea.vmem [#allocation9], 32
    %603 = vst [vmem:[%s602] sm:$0xff] %v596
    %v604 = vmul.f32 %v520, 0.9
    %v605 = vadd.f32 %v604, %v154
    %v606 = vsub.f32 %v605, %v523
    %vm607 = vcmp.gt.f32.partialorder %v606, 1.0
    %v608 = vsel %vm607, 1, 0
    %v609 = vcvt.s32.f32 %v608
    %610 = vmatprep.subr.mxu0 0.0
    %611 = vmatpush1.msra.mxu0 %v164
    %612 = vmatprep.subr.mxu0 0.0
    %613 = vmatpush1.msra.mxu0 %v165
    %614 = vmatprep.subr.mxu0 0.0
    %615 = vmatpush1.msra.mxu0 %v166
    %616 = vmatprep.subr.mxu0 0.0
    %617 = vmatpush1.msra.mxu0 %v167
    %618 = vmatprep.subr.mxu0 0.0
    %619 = vmatpush1.msra.mxu0 %v168
    %620 = vmatprep.subr.mxu0 0.0
    %621 = vmatpush1.msra.mxu0 %v169
    %622 = vmatprep.subr.mxu0 0.0
    %623 = vmatpush1.msra.mxu0 %v170
    %624 = vmatprep.subr.mxu0 0.0
    %625 = vmatpush1.msra.mxu0 %v171
    %626 = vmatprep.subr.mxu0 0.0
    %627 = vmatpush1.msra.mxu0 %v172
    %628 = vmatprep.subr.mxu0 0.0
    %629 = vmatpush1.msra.mxu0 %v173
    %630 = vmatprep.subr.mxu0 0.0
    %631 = vmatpush1.msra.mxu0 %v174
    %632 = vmatprep.subr.mxu0 0.0
    %633 = vmatpush1.msra.mxu0 %v175
    %634 = vmatprep.subr.mxu0 0.0
    %635 = vmatpush1.msra.mxu0 %v176
    %636 = vmatprep.subr.mxu0 0.0
    %637 = vmatpush1.msra.mxu0 %v177
    %638 = vmatprep.subr.mxu0 0.0
    %639 = vmatpush1.msra.mxu0 %v178
    %640 = vmatprep.subr.mxu0 0.0
    %641 = vmatpush1.msra.mxu0 %v179
    %642 = vmatprep.subr.mxu0 0.0
    %643 = vmatpush1.msra.mxu0 0.0
    %644 = vmatprep.subr.mxu0 0.0
    %645 = vmatpush1.msra.mxu0 0.0
    %646 = vmatprep.subr.mxu0 0.0
    %647 = vmatpush1.msra.mxu0 0.0
    %648 = vmatprep.subr.mxu0 0.0
    %649 = vmatpush1.msra.mxu0 0.0
    %650 = vmatprep.subr.mxu0 0.0
    %651 = vmatpush1.msra.mxu0 0.0
    %652 = vmatprep.subr.mxu0 0.0
    %653 = vmatpush1.msra.mxu0 0.0
    %654 = vmatprep.subr.mxu0 0.0
    %655 = vmatpush1.msra.mxu0 0.0
    %656 = vmatprep.subr.mxu0 0.0
    %657 = vmatpush1.msra.mxu0 0.0
    %658 = vmatprep.subr.mxu0 0.0
    %659 = vmatpush1.msra.mxu0 0.0
    %660 = vmatprep.subr.mxu0 0.0
    %661 = vmatpush1.msra.mxu0 0.0
    %662 = vmatprep.subr.mxu0 0.0
    %663 = vmatpush1.msra.mxu0 0.0
    %664 = vmatprep.subr.mxu0 0.0
    %665 = vmatpush1.msra.mxu0 0.0
    %666 = vmatprep.subr.mxu0 0.0
    %667 = vmatpush1.msra.mxu0 0.0
    %668 = vmatprep.subr.mxu0 0.0
    %669 = vmatpush1.msra.mxu0 0.0
    %670 = vmatprep.subr.mxu0 0.0
    %671 = vmatpush1.msra.mxu0 0.0
    %672 = vmatprep.subr.mxu0 0.0
    %673 = vmatpush1.msra.mxu0 0.0
    %674 = vmatprep.mubr.f32.mxu0 0.0
    %675 = vmatmul.mubr.f32.gmra.mrb[0].mxu0 %v609
    %v676 = vpop.f32.mrb[0].mxu0
    %v677 = vadd.f32 %v162, %v676
    %v678 = vpop.f32.mrb[0].mxu0
    %679 = vdwg.mxu0
    %v680 = vmul.f32 %v596, 0.9
    %v681 = vadd.f32 %v680, %v677
    %v682 = vsub.f32 %v681, %v599
    %vm683 = vcmp.gt.f32.partialorder %v682, 1.0
    %v684 = vsel %vm683, 1, 0
    %v685 = vcvt.s32.f32 %v684
    %s686 = scalar_lea.vmem [#allocation8], 40
    %687 = vst [vmem:[%s686] sm:$0xff] %v685
    %s688 = scalar_lea.vmem [#allocation9], 40
    %689 = vst [vmem:[%s688] sm:$0xff] %v682
    %v690 = vmul.f32 %v606, 0.9
    %v691 = vadd.f32 %v690, %v154
    %v692 = vsub.f32 %v691, %v609
    %vm693 = vcmp.gt.f32.partialorder %v692, 1.0
    %v694 = vsel %vm693, 1, 0
    %v695 = vcvt.s32.f32 %v694
    %696 = vmatprep.subr.mxu0 0.0
    %697 = vmatpush1.msra.mxu0 %v164
    %698 = vmatprep.subr.mxu0 0.0
    %699 = vmatpush1.msra.mxu0 %v165
    %700 = vmatprep.subr.mxu0 0.0
    %701 = vmatpush1.msra.mxu0 %v166
    %702 = vmatprep.subr.mxu0 0.0
    %703 = vmatpush1.msra.mxu0 %v167
    %704 = vmatprep.subr.mxu0 0.0
    %705 = vmatpush1.msra.mxu0 %v168
    %706 = vmatprep.subr.mxu0 0.0
    %707 = vmatpush1.msra.mxu0 %v169
    %708 = vmatprep.subr.mxu0 0.0
    %709 = vmatpush1.msra.mxu0 %v170
    %710 = vmatprep.subr.mxu0 0.0
    %711 = vmatpush1.msra.mxu0 %v171
    %712 = vmatprep.subr.mxu0 0.0
    %713 = vmatpush1.msra.mxu0 %v172
    %714 = vmatprep.subr.mxu0 0.0
    %715 = vmatpush1.msra.mxu0 %v173
    %716 = vmatprep.subr.mxu0 0.0
    %717 = vmatpush1.msra.mxu0 %v174
    %718 = vmatprep.subr.mxu0 0.0
    %719 = vmatpush1.msra.mxu0 %v175
    %720 = vmatprep.subr.mxu0 0.0
    %721 = vmatpush1.msra.mxu0 %v176
    %722 = vmatprep.subr.mxu0 0.0
    %723 = vmatpush1.msra.mxu0 %v177
    %724 = vmatprep.subr.mxu0 0.0
    %725 = vmatpush1.msra.mxu0 %v178
    %726 = vmatprep.subr.mxu0 0.0
    %727 = vmatpush1.msra.mxu0 %v179
    %728 = vmatprep.subr.mxu0 0.0
    %729 = vmatpush1.msra.mxu0 0.0
    %730 = vmatprep.subr.mxu0 0.0
    %731 = vmatpush1.msra.mxu0 0.0
    %732 = vmatprep.subr.mxu0 0.0
    %733 = vmatpush1.msra.mxu0 0.0
    %734 = vmatprep.subr.mxu0 0.0
    %735 = vmatpush1.msra.mxu0 0.0
    %736 = vmatprep.subr.mxu0 0.0
    %737 = vmatpush1.msra.mxu0 0.0
    %738 = vmatprep.subr.mxu0 0.0
    %739 = vmatpush1.msra.mxu0 0.0
    %740 = vmatprep.subr.mxu0 0.0
    %741 = vmatpush1.msra.mxu0 0.0
    %742 = vmatprep.subr.mxu0 0.0
    %743 = vmatpush1.msra.mxu0 0.0
    %744 = vmatprep.subr.mxu0 0.0
    %745 = vmatpush1.msra.mxu0 0.0
    %746 = vmatprep.subr.mxu0 0.0
    %747 = vmatpush1.msra.mxu0 0.0
    %748 = vmatprep.subr.mxu0 0.0
    %749 = vmatpush1.msra.mxu0 0.0
    %750 = vmatprep.subr.mxu0 0.0
    %751 = vmatpush1.msra.mxu0 0.0
    %752 = vmatprep.subr.mxu0 0.0
    %753 = vmatpush1.msra.mxu0 0.0
    %754 = vmatprep.subr.mxu0 0.0
    %755 = vmatpush1.msra.mxu0 0.0
    %756 = vmatprep.subr.mxu0 0.0
    %757 = vmatpush1.msra.mxu0 0.0
    %758 = vmatprep.subr.mxu0 0.0
    %759 = vmatpush1.msra.mxu0 0.0
    %760 = vmatprep.mubr.f32.mxu0 0.0
    %761 = vmatmul.mubr.f32.gmra.mrb[0].mxu0 %v695
    %v762 = vpop.f32.mrb[0].mxu0
    %v763 = vadd.f32 %v162, %v762
    %v764 = vpop.f32.mrb[0].mxu0
    %765 = vdwg.mxu0
    %v766 = vmul.f32 %v682, 0.9
    %v767 = vadd.f32 %v766, %v763
    %v768 = vsub.f32 %v767, %v685
    %vm769 = vcmp.gt.f32.partialorder %v768, 1.0
    %v770 = vsel %vm769, 1, 0
    %v771 = vcvt.s32.f32 %v770
    %s772 = scalar_lea.vmem [#allocation8], 48
    %773 = vst [vmem:[%s772] sm:$0xff] %v771
    %s774 = scalar_lea.vmem [#allocation9], 48
    %775 = vst [vmem:[%s774] sm:$0xff] %v768
    %v776 = vmul.f32 %v692, 0.9
    %v777 = vadd.f32 %v776, %v154
    %v778 = vsub.f32 %v777, %v695
    %vm779 = vcmp.gt.f32.partialorder %v778, 1.0
    %v780 = vsel %vm779, 1, 0
    %v781 = vcvt.s32.f32 %v780
    %782 = vmatprep.subr.mxu0 0.0
    %783 = vmatpush1.msra.mxu0 %v164
    %784 = vmatprep.subr.mxu0 0.0
    %785 = vmatpush1.msra.mxu0 %v165
    %786 = vmatprep.subr.mxu0 0.0
    %787 = vmatpush1.msra.mxu0 %v166
    %788 = vmatprep.subr.mxu0 0.0
    %789 = vmatpush1.msra.mxu0 %v167
    %790 = vmatprep.subr.mxu0 0.0
    %791 = vmatpush1.msra.mxu0 %v168
    %792 = vmatprep.subr.mxu0 0.0
    %793 = vmatpush1.msra.mxu0 %v169
    %794 = vmatprep.subr.mxu0 0.0
    %795 = vmatpush1.msra.mxu0 %v170
    %796 = vmatprep.subr.mxu0 0.0
    %797 = vmatpush1.msra.mxu0 %v171
    %798 = vmatprep.subr.mxu0 0.0
    %799 = vmatpush1.msra.mxu0 %v172
    %800 = vmatprep.subr.mxu0 0.0
    %801 = vmatpush1.msra.mxu0 %v173
    %802 = vmatprep.subr.mxu0 0.0
    %803 = vmatpush1.msra.mxu0 %v174
    %804 = vmatprep.subr.mxu0 0.0
    %805 = vmatpush1.msra.mxu0 %v175
    %806 = vmatprep.subr.mxu0 0.0
    %807 = vmatpush1.msra.mxu0 %v176
    %808 = vmatprep.subr.mxu0 0.0
    %809 = vmatpush1.msra.mxu0 %v177
    %810 = vmatprep.subr.mxu0 0.0
    %811 = vmatpush1.msra.mxu0 %v178
    %812 = vmatprep.subr.mxu0 0.0
    %813 = vmatpush1.msra.mxu0 %v179
    %814 = vmatprep.subr.mxu0 0.0
    %815 = vmatpush1.msra.mxu0 0.0
    %816 = vmatprep.subr.mxu0 0.0
    %817 = vmatpush1.msra.mxu0 0.0
    %818 = vmatprep.subr.mxu0 0.0
    %819 = vmatpush1.msra.mxu0 0.0
    %820 = vmatprep.subr.mxu0 0.0
    %821 = vmatpush1.msra.mxu0 0.0
    %822 = vmatprep.subr.mxu0 0.0
    %823 = vmatpush1.msra.mxu0 0.0
    %824 = vmatprep.subr.mxu0 0.0
    %825 = vmatpush1.msra.mxu0 0.0
    %826 = vmatprep.subr.mxu0 0.0
    %827 = vmatpush1.msra.mxu0 0.0
    %828 = vmatprep.subr.mxu0 0.0
    %829 = vmatpush1.msra.mxu0 0.0
    %830 = vmatprep.subr.mxu0 0.0
    %831 = vmatpush1.msra.mxu0 0.0
    %832 = vmatprep.subr.mxu0 0.0
    %833 = vmatpush1.msra.mxu0 0.0
    %834 = vmatprep.subr.mxu0 0.0
    %835 = vmatpush1.msra.mxu0 0.0
    %836 = vmatprep.subr.mxu0 0.0
    %837 = vmatpush1.msra.mxu0 0.0
    %838 = vmatprep.subr.mxu0 0.0
    %839 = vmatpush1.msra.mxu0 0.0
    %840 = vmatprep.subr.mxu0 0.0
    %841 = vmatpush1.msra.mxu0 0.0
    %842 = vmatprep.subr.mxu0 0.0
    %843 = vmatpush1.msra.mxu0 0.0
    %844 = vmatprep.subr.mxu0 0.0
    %845 = vmatpush1.msra.mxu0 0.0
    %846 = vmatprep.mubr.f32.mxu0 0.0
    %847 = vmatmul.mubr.f32.gmra.mrb[0].mxu0 %v781
    %v848 = vpop.f32.mrb[0].mxu0
    %v849 = vadd.f32 %v162, %v848
    %v850 = vpop.f32.mrb[0].mxu0
    %851 = vdwg.mxu0
    %v852 = vmul.f32 %v768, 0.9
    %v853 = vadd.f32 %v852, %v849
    %v854 = vsub.f32 %v853, %v771
    %vm855 = vcmp.gt.f32.partialorder %v854, 1.0
    %v856 = vsel %vm855, 1, 0
    %v857 = vcvt.s32.f32 %v856
    %s858 = scalar_lea.vmem [#allocation8], 56
    %859 = vst [vmem:[%s858] sm:$0xff] %v857
    %s860 = scalar_lea.vmem [#allocation9], 56
    %861 = vst [vmem:[%s860] sm:$0xff] %v854
    %v862 = vmul.f32 %v778, 0.9
    %v863 = vadd.f32 %v862, %v154
    %v864 = vsub.f32 %v863, %v781
    %vm865 = vcmp.gt.f32.partialorder %v864, 1.0
    %v866 = vsel %vm865, 1, 0
    %v867 = vcvt.s32.f32 %v866
    %868 = vmatprep.subr.mxu0 0.0
    %869 = vmatpush1.msra.mxu0 %v164
    %870 = vmatprep.subr.mxu0 0.0
    %871 = vmatpush1.msra.mxu0 %v165
    %872 = vmatprep.subr.mxu0 0.0
    %873 = vmatpush1.msra.mxu0 %v166
    %874 = vmatprep.subr.mxu0 0.0
    %875 = vmatpush1.msra.mxu0 %v167
    %876 = vmatprep.subr.mxu0 0.0
    %877 = vmatpush1.msra.mxu0 %v168
    %878 = vmatprep.subr.mxu0 0.0
    %879 = vmatpush1.msra.mxu0 %v169
    %880 = vmatprep.subr.mxu0 0.0
    %881 = vmatpush1.msra.mxu0 %v170
    %882 = vmatprep.subr.mxu0 0.0
    %883 = vmatpush1.msra.mxu0 %v171
    %884 = vmatprep.subr.mxu0 0.0
    %885 = vmatpush1.msra.mxu0 %v172
    %886 = vmatprep.subr.mxu0 0.0
    %887 = vmatpush1.msra.mxu0 %v173
    %888 = vmatprep.subr.mxu0 0.0
    %889 = vmatpush1.msra.mxu0 %v174
    %890 = vmatprep.subr.mxu0 0.0
    %891 = vmatpush1.msra.mxu0 %v175
    %892 = vmatprep.subr.mxu0 0.0
    %893 = vmatpush1.msra.mxu0 %v176
    %894 = vmatprep.subr.mxu0 0.0
    %895 = vmatpush1.msra.mxu0 %v177
    %896 = vmatprep.subr.mxu0 0.0
    %897 = vmatpush1.msra.mxu0 %v178
    %898 = vmatprep.subr.mxu0 0.0
    %899 = vmatpush1.msra.mxu0 %v179
    %900 = vmatprep.subr.mxu0 0.0
    %901 = vmatpush1.msra.mxu0 0.0
    %902 = vmatprep.subr.mxu0 0.0
    %903 = vmatpush1.msra.mxu0 0.0
    %904 = vmatprep.subr.mxu0 0.0
    %905 = vmatpush1.msra.mxu0 0.0
    %906 = vmatprep.subr.mxu0 0.0
    %907 = vmatpush1.msra.mxu0 0.0
    %908 = vmatprep.subr.mxu0 0.0
    %909 = vmatpush1.msra.mxu0 0.0
    %910 = vmatprep.subr.mxu0 0.0
    %911 = vmatpush1.msra.mxu0 0.0
    %912 = vmatprep.subr.mxu0 0.0
    %913 = vmatpush1.msra.mxu0 0.0
    %914 = vmatprep.subr.mxu0 0.0
    %915 = vmatpush1.msra.mxu0 0.0
    %916 = vmatprep.subr.mxu0 0.0
    %917 = vmatpush1.msra.mxu0 0.0
    %918 = vmatprep.subr.mxu0 0.0
    %919 = vmatpush1.msra.mxu0 0.0
    %920 = vmatprep.subr.mxu0 0.0
    %921 = vmatpush1.msra.mxu0 0.0
    %922 = vmatprep.subr.mxu0 0.0
    %923 = vmatpush1.msra.mxu0 0.0
    %924 = vmatprep.subr.mxu0 0.0
    %925 = vmatpush1.msra.mxu0 0.0
    %926 = vmatprep.subr.mxu0 0.0
    %927 = vmatpush1.msra.mxu0 0.0
    %928 = vmatprep.subr.mxu0 0.0
    %929 = vmatpush1.msra.mxu0 0.0
    %930 = vmatprep.subr.mxu0 0.0
    %931 = vmatpush1.msra.mxu0 0.0
    %932 = vmatprep.mubr.f32.mxu0 0.0
    %933 = vmatmul.mubr.f32.gmra.mrb[0].mxu0 %v867
    %v934 = vpop.f32.mrb[0].mxu0
    %v935 = vadd.f32 %v162, %v934
    %v936 = vpop.f32.mrb[0].mxu0
    %937 = vdwg.mxu0
    %v938 = vmul.f32 %v854, 0.9
    %v939 = vadd.f32 %v938, %v935
    %v940 = vsub.f32 %v939, %v857
    %vm941 = vcmp.gt.f32.partialorder %v940, 1.0
    %v942 = vsel %vm941, 1, 0
    %v943 = vcvt.s32.f32 %v942
    %s944 = scalar_lea.vmem [#allocation8], 64
    %945 = vst [vmem:[%s944] sm:$0xff] %v943
    %s946 = scalar_lea.vmem [#allocation9], 64
    %947 = vst [vmem:[%s946] sm:$0xff] %v940
    %v948 = vmul.f32 %v864, 0.9
    %v949 = vadd.f32 %v948, %v154
    %v950 = vsub.f32 %v949, %v867
    %vm951 = vcmp.gt.f32.partialorder %v950, 1.0
    %v952 = vsel %vm951, 1, 0
    %v953 = vcvt.s32.f32 %v952
    %954 = vmatprep.subr.mxu0 0.0
    %955 = vmatpush1.msra.mxu0 %v164
    %956 = vmatprep.subr.mxu0 0.0
    %957 = vmatpush1.msra.mxu0 %v165
    %958 = vmatprep.subr.mxu0 0.0
    %959 = vmatpush1.msra.mxu0 %v166
    %960 = vmatprep.subr.mxu0 0.0
    %961 = vmatpush1.msra.mxu0 %v167
    %962 = vmatprep.subr.mxu0 0.0
    %963 = vmatpush1.msra.mxu0 %v168
    %964 = vmatprep.subr.mxu0 0.0
    %965 = vmatpush1.msra.mxu0 %v169
    %966 = vmatprep.subr.mxu0 0.0
    %967 = vmatpush1.msra.mxu0 %v170
    %968 = vmatprep.subr.mxu0 0.0
    %969 = vmatpush1.msra.mxu0 %v171
    %970 = vmatprep.subr.mxu0 0.0
    %971 = vmatpush1.msra.mxu0 %v172
    %972 = vmatprep.subr.mxu0 0.0
    %973 = vmatpush1.msra.mxu0 %v173
    %974 = vmatprep.subr.mxu0 0.0
    %975 = vmatpush1.msra.mxu0 %v174
    %976 = vmatprep.subr.mxu0 0.0
    %977 = vmatpush1.msra.mxu0 %v175
    %978 = vmatprep.subr.mxu0 0.0
    %979 = vmatpush1.msra.mxu0 %v176
    %980 = vmatprep.subr.mxu0 0.0
    %981 = vmatpush1.msra.mxu0 %v177
    %982 = vmatprep.subr.mxu0 0.0
    %983 = vmatpush1.msra.mxu0 %v178
    %984 = vmatprep.subr.mxu0 0.0
    %985 = vmatpush1.msra.mxu0 %v179
    %986 = vmatprep.subr.mxu0 0.0
    %987 = vmatpush1.msra.mxu0 0.0
    %988 = vmatprep.subr.mxu0 0.0
    %989 = vmatpush1.msra.mxu0 0.0
    %990 = vmatprep.subr.mxu0 0.0
    %991 = vmatpush1.msra.mxu0 0.0
    %992 = vmatprep.subr.mxu0 0.0
    %993 = vmatpush1.msra.mxu0 0.0
    %994 = vmatprep.subr.mxu0 0.0
    %995 = vmatpush1.msra.mxu0 0.0
    %996 = vmatprep.subr.mxu0 0.0
    %997 = vmatpush1.msra.mxu0 0.0
    %998 = vmatprep.subr.mxu0 0.0
    %999 = vmatpush1.msra.mxu0 0.0
    %1000 = vmatprep.subr.mxu0 0.0
    %1001 = vmatpush1.msra.mxu0 0.0
    %1002 = vmatprep.subr.mxu0 0.0
    %1003 = vmatpush1.msra.mxu0 0.0
    %1004 = vmatprep.subr.mxu0 0.0
    %1005 = vmatpush1.msra.mxu0 0.0
    %1006 = vmatprep.subr.mxu0 0.0
    %1007 = vmatpush1.msra.mxu0 0.0
    %1008 = vmatprep.subr.mxu0 0.0
    %1009 = vmatpush1.msra.mxu0 0.0
    %1010 = vmatprep.subr.mxu0 0.0
    %1011 = vmatpush1.msra.mxu0 0.0
    %1012 = vmatprep.subr.mxu0 0.0
    %1013 = vmatpush1.msra.mxu0 0.0
    %1014 = vmatprep.subr.mxu0 0.0
    %1015 = vmatpush1.msra.mxu0 0.0
    %1016 = vmatprep.subr.mxu0 0.0
    %1017 = vmatpush1.msra.mxu0 0.0
    %1018 = vmatprep.mubr.f32.mxu0 0.0
    %1019 = vmatmul.mubr.f32.gmra.mrb[0].mxu0 %v953
    %v1020 = vpop.f32.mrb[0].mxu0
    %v1021 = vadd.f32 %v162, %v1020
    %v1022 = vpop.f32.mrb[0].mxu0
    %1023 = vdwg.mxu0
    %v1024 = vmul.f32 %v940, 0.9
    %v1025 = vadd.f32 %v1024, %v1021
    %v1026 = vsub.f32 %v1025, %v943
    %vm1027 = vcmp.gt.f32.partialorder %v1026, 1.0
    %v1028 = vsel %vm1027, 1, 0
    %v1029 = vcvt.s32.f32 %v1028
    %s1030 = scalar_lea.vmem [#allocation8], 72
    %1031 = vst [vmem:[%s1030] sm:$0xff] %v1029
    %s1032 = scalar_lea.vmem [#allocation9], 72
    %1033 = vst [vmem:[%s1032] sm:$0xff] %v1026
    %v1034 = vmul.f32 %v950, 0.9
    %v1035 = vadd.f32 %v1034, %v154
    %v1036 = vsub.f32 %v1035, %v953
    %vm1037 = vcmp.gt.f32.partialorder %v1036, 1.0
    %v1038 = vsel %vm1037, 1, 0
    %v1039 = vcvt.s32.f32 %v1038
    %1040 = vmatprep.subr.mxu0 0.0
    %1041 = vmatpush1.msra.mxu0 %v164
    %1042 = vmatprep.subr.mxu0 0.0
    %1043 = vmatpush1.msra.mxu0 %v165
    %1044 = vmatprep.subr.mxu0 0.0
    %1045 = vmatpush1.msra.mxu0 %v166
    %1046 = vmatprep.subr.mxu0 0.0
    %1047 = vmatpush1.msra.mxu0 %v167
    %1048 = vmatprep.subr.mxu0 0.0
    %1049 = vmatpush1.msra.mxu0 %v168
    %1050 = vmatprep.subr.mxu0 0.0
    %1051 = vmatpush1.msra.mxu0 %v169
    %1052 = vmatprep.subr.mxu0 0.0
    %1053 = vmatpush1.msra.mxu0 %v170
    %1054 = vmatprep.subr.mxu0 0.0
    %1055 = vmatpush1.msra.mxu0 %v171
    %1056 = vmatprep.subr.mxu0 0.0
    %1057 = vmatpush1.msra.mxu0 %v172
    %1058 = vmatprep.subr.mxu0 0.0
    %1059 = vmatpush1.msra.mxu0 %v173
    %1060 = vmatprep.subr.mxu0 0.0
    %1061 = vmatpush1.msra.mxu0 %v174
    %1062 = vmatprep.subr.mxu0 0.0
    %1063 = vmatpush1.msra.mxu0 %v175
    %1064 = vmatprep.subr.mxu0 0.0
    %1065 = vmatpush1.msra.mxu0 %v176
    %1066 = vmatprep.subr.mxu0 0.0
    %1067 = vmatpush1.msra.mxu0 %v177
    %1068 = vmatprep.subr.mxu0 0.0
    %1069 = vmatpush1.msra.mxu0 %v178
    %1070 = vmatprep.subr.mxu0 0.0
    %1071 = vmatpush1.msra.mxu0 %v179
    %1072 = vmatprep.subr.mxu0 0.0
    %1073 = vmatpush1.msra.mxu0 0.0
    %1074 = vmatprep.subr.mxu0 0.0
    %1075 = vmatpush1.msra.mxu0 0.0
    %1076 = vmatprep.subr.mxu0 0.0
    %1077 = vmatpush1.msra.mxu0 0.0
    %1078 = vmatprep.subr.mxu0 0.0
    %1079 = vmatpush1.msra.mxu0 0.0
    %1080 = vmatprep.subr.mxu0 0.0
    %1081 = vmatpush1.msra.mxu0 0.0
    %1082 = vmatprep.subr.mxu0 0.0
    %1083 = vmatpush1.msra.mxu0 0.0
    %1084 = vmatprep.subr.mxu0 0.0
    %1085 = vmatpush1.msra.mxu0 0.0
    %1086 = vmatprep.subr.mxu0 0.0
    %1087 = vmatpush1.msra.mxu0 0.0
    %1088 = vmatprep.subr.mxu0 0.0
    %1089 = vmatpush1.msra.mxu0 0.0
    %1090 = vmatprep.subr.mxu0 0.0
    %1091 = vmatpush1.msra.mxu0 0.0
    %1092 = vmatprep.subr.mxu0 0.0
    %1093 = vmatpush1.msra.mxu0 0.0
    %1094 = vmatprep.subr.mxu0 0.0
    %1095 = vmatpush1.msra.mxu0 0.0
    %1096 = vmatprep.subr.mxu0 0.0
    %1097 = vmatpush1.msra.mxu0 0.0
    %1098 = vmatprep.subr.mxu0 0.0
    %1099 = vmatpush1.msra.mxu0 0.0
    %1100 = vmatprep.subr.mxu0 0.0
    %1101 = vmatpush1.msra.mxu0 0.0
    %1102 = vmatprep.subr.mxu0 0.0
    %1103 = vmatpush1.msra.mxu0 0.0
    %1104 = vmatprep.mubr.f32.mxu0 0.0
    %1105 = vmatmul.mubr.f32.gmra.mrb[0].mxu0 %v1039
    %v1106 = vpop.f32.mrb[0].mxu0
    %v1107 = vadd.f32 %v162, %v1106
    %v1108 = vpop.f32.mrb[0].mxu0
    %1109 = vdwg.mxu0
    %v1110 = vmul.f32 %v1026, 0.9
    %v1111 = vadd.f32 %v1110, %v1107
    %v1112 = vsub.f32 %v1111, %v1029
    %vm1113 = vcmp.gt.f32.partialorder %v1112, 1.0
    %v1114 = vsel %vm1113, 1, 0
    %v1115 = vcvt.s32.f32 %v1114
    %s1116 = scalar_lea.vmem [#allocation8], 80
    %1117 = vst [vmem:[%s1116] sm:$0xff] %v1115
    %s1118 = scalar_lea.vmem [#allocation9], 80
    %1119 = vst [vmem:[%s1118] sm:$0xff] %v1112
    %v1120 = vmul.f32 %v1036, 0.9
    %v1121 = vadd.f32 %v1120, %v154
    %v1122 = vsub.f32 %v1121, %v1039
    %vm1123 = vcmp.gt.f32.partialorder %v1122, 1.0
    %v1124 = vsel %vm1123, 1, 0
    %v1125 = vcvt.s32.f32 %v1124
    %1126 = vmatprep.subr.mxu0 0.0
    %1127 = vmatpush1.msra.mxu0 %v164
    %1128 = vmatprep.subr.mxu0 0.0
    %1129 = vmatpush1.msra.mxu0 %v165
    %1130 = vmatprep.subr.mxu0 0.0
    %1131 = vmatpush1.msra.mxu0 %v166
    %1132 = vmatprep.subr.mxu0 0.0
    %1133 = vmatpush1.msra.mxu0 %v167
    %1134 = vmatprep.subr.mxu0 0.0
    %1135 = vmatpush1.msra.mxu0 %v168
    %1136 = vmatprep.subr.mxu0 0.0
    %1137 = vmatpush1.msra.mxu0 %v169
    %1138 = vmatprep.subr.mxu0 0.0
    %1139 = vmatpush1.msra.mxu0 %v170
    %1140 = vmatprep.subr.mxu0 0.0
    %1141 = vmatpush1.msra.mxu0 %v171
    %1142 = vmatprep.subr.mxu0 0.0
    %1143 = vmatpush1.msra.mxu0 %v172
    %1144 = vmatprep.subr.mxu0 0.0
    %1145 = vmatpush1.msra.mxu0 %v173
    %1146 = vmatprep.subr.mxu0 0.0
    %1147 = vmatpush1.msra.mxu0 %v174
    %1148 = vmatprep.subr.mxu0 0.0
    %1149 = vmatpush1.msra.mxu0 %v175
    %1150 = vmatprep.subr.mxu0 0.0
    %1151 = vmatpush1.msra.mxu0 %v176
    %1152 = vmatprep.subr.mxu0 0.0
    %1153 = vmatpush1.msra.mxu0 %v177
    %1154 = vmatprep.subr.mxu0 0.0
    %1155 = vmatpush1.msra.mxu0 %v178
    %1156 = vmatprep.subr.mxu0 0.0
    %1157 = vmatpush1.msra.mxu0 %v179
    %1158 = vmatprep.subr.mxu0 0.0
    %1159 = vmatpush1.msra.mxu0 0.0
    %1160 = vmatprep.subr.mxu0 0.0
    %1161 = vmatpush1.msra.mxu0 0.0
    %1162 = vmatprep.subr.mxu0 0.0
    %1163 = vmatpush1.msra.mxu0 0.0
    %1164 = vmatprep.subr.mxu0 0.0
    %1165 = vmatpush1.msra.mxu0 0.0
    %1166 = vmatprep.subr.mxu0 0.0
    %1167 = vmatpush1.msra.mxu0 0.0
    %1168 = vmatprep.subr.mxu0 0.0
    %1169 = vmatpush1.msra.mxu0 0.0
    %1170 = vmatprep.subr.mxu0 0.0
    %1171 = vmatpush1.msra.mxu0 0.0
    %1172 = vmatprep.subr.mxu0 0.0
    %1173 = vmatpush1.msra.mxu0 0.0
    %1174 = vmatprep.subr.mxu0 0.0
    %1175 = vmatpush1.msra.mxu0 0.0
    %1176 = vmatprep.subr.mxu0 0.0
    %1177 = vmatpush1.msra.mxu0 0.0
    %1178 = vmatprep.subr.mxu0 0.0
    %1179 = vmatpush1.msra.mxu0 0.0
    %1180 = vmatprep.subr.mxu0 0.0
    %1181 = vmatpush1.msra.mxu0 0.0
    %1182 = vmatprep.subr.mxu0 0.0
    %1183 = vmatpush1.msra.mxu0 0.0
    %1184 = vmatprep.subr.mxu0 0.0
    %1185 = vmatpush1.msra.mxu0 0.0
    %1186 = vmatprep.subr.mxu0 0.0
    %1187 = vmatpush1.msra.mxu0 0.0
    %1188 = vmatprep.subr.mxu0 0.0
    %1189 = vmatpush1.msra.mxu0 0.0
    %1190 = vmatprep.mubr.f32.mxu0 0.0
    %1191 = vmatmul.mubr.f32.gmra.mrb[0].mxu0 %v1125
    %v1192 = vpop.f32.mrb[0].mxu0
    %v1193 = vadd.f32 %v162, %v1192
    %v1194 = vpop.f32.mrb[0].mxu0
    %1195 = vdwg.mxu0
    %v1196 = vmul.f32 %v1112, 0.9
    %v1197 = vadd.f32 %v1196, %v1193
    %v1198 = vsub.f32 %v1197, %v1115
    %vm1199 = vcmp.gt.f32.partialorder %v1198, 1.0
    %v1200 = vsel %vm1199, 1, 0
    %v1201 = vcvt.s32.f32 %v1200
    %s1202 = scalar_lea.vmem [#allocation8], 88
    %1203 = vst [vmem:[%s1202] sm:$0xff] %v1201
    %s1204 = scalar_lea.vmem [#allocation9], 88
    %1205 = vst [vmem:[%s1204] sm:$0xff] %v1198
    %v1206 = vmul.f32 %v1122, 0.9
    %v1207 = vadd.f32 %v1206, %v154
    %v1208 = vsub.f32 %v1207, %v1125
    %vm1209 = vcmp.gt.f32.partialorder %v1208, 1.0
    %v1210 = vsel %vm1209, 1, 0
    %v1211 = vcvt.s32.f32 %v1210
    %1212 = vmatprep.subr.mxu0 0.0
    %1213 = vmatpush1.msra.mxu0 %v164
    %1214 = vmatprep.subr.mxu0 0.0
    %1215 = vmatpush1.msra.mxu0 %v165
    %1216 = vmatprep.subr.mxu0 0.0
    %1217 = vmatpush1.msra.mxu0 %v166
    %1218 = vmatprep.subr.mxu0 0.0
    %1219 = vmatpush1.msra.mxu0 %v167
    %1220 = vmatprep.subr.mxu0 0.0
    %1221 = vmatpush1.msra.mxu0 %v168
    %1222 = vmatprep.subr.mxu0 0.0
    %1223 = vmatpush1.msra.mxu0 %v169
    %1224 = vmatprep.subr.mxu0 0.0
    %1225 = vmatpush1.msra.mxu0 %v170
    %1226 = vmatprep.subr.mxu0 0.0
    %1227 = vmatpush1.msra.mxu0 %v171
    %1228 = vmatprep.subr.mxu0 0.0
    %1229 = vmatpush1.msra.mxu0 %v172
    %1230 = vmatprep.subr.mxu0 0.0
    %1231 = vmatpush1.msra.mxu0 %v173
    %1232 = vmatprep.subr.mxu0 0.0
    %1233 = vmatpush1.msra.mxu0 %v174
    %1234 = vmatprep.subr.mxu0 0.0
    %1235 = vmatpush1.msra.mxu0 %v175
    %1236 = vmatprep.subr.mxu0 0.0
    %1237 = vmatpush1.msra.mxu0 %v176
    %1238 = vmatprep.subr.mxu0 0.0
    %1239 = vmatpush1.msra.mxu0 %v177
    %1240 = vmatprep.subr.mxu0 0.0
    %1241 = vmatpush1.msra.mxu0 %v178
    %1242 = vmatprep.subr.mxu0 0.0
    %1243 = vmatpush1.msra.mxu0 %v179
    %1244 = vmatprep.subr.mxu0 0.0
    %1245 = vmatpush1.msra.mxu0 0.0
    %1246 = vmatprep.subr.mxu0 0.0
    %1247 = vmatpush1.msra.mxu0 0.0
    %1248 = vmatprep.subr.mxu0 0.0
    %1249 = vmatpush1.msra.mxu0 0.0
    %1250 = vmatprep.subr.mxu0 0.0
    %1251 = vmatpush1.msra.mxu0 0.0
    %1252 = vmatprep.subr.mxu0 0.0
    %1253 = vmatpush1.msra.mxu0 0.0
    %1254 = vmatprep.subr.mxu0 0.0
    %1255 = vmatpush1.msra.mxu0 0.0
    %1256 = vmatprep.subr.mxu0 0.0
    %1257 = vmatpush1.msra.mxu0 0.0
    %1258 = vmatprep.subr.mxu0 0.0
    %1259 = vmatpush1.msra.mxu0 0.0
    %1260 = vmatprep.subr.mxu0 0.0
    %1261 = vmatpush1.msra.mxu0 0.0
    %1262 = vmatprep.subr.mxu0 0.0
    %1263 = vmatpush1.msra.mxu0 0.0
    %1264 = vmatprep.subr.mxu0 0.0
    %1265 = vmatpush1.msra.mxu0 0.0
    %1266 = vmatprep.subr.mxu0 0.0
    %1267 = vmatpush1.msra.mxu0 0.0
    %1268 = vmatprep.subr.mxu0 0.0
    %1269 = vmatpush1.msra.mxu0 0.0
    %1270 = vmatprep.subr.mxu0 0.0
    %1271 = vmatpush1.msra.mxu0 0.0
    %1272 = vmatprep.subr.mxu0 0.0
    %1273 = vmatpush1.msra.mxu0 0.0
    %1274 = vmatprep.subr.mxu0 0.0
    %1275 = vmatpush1.msra.mxu0 0.0
    %1276 = vmatprep.mubr.f32.mxu0 0.0
    %1277 = vmatmul.mubr.f32.gmra.mrb[0].mxu0 %v1211
    %v1278 = vpop.f32.mrb[0].mxu0
    %v1279 = vadd.f32 %v162, %v1278
    %v1280 = vpop.f32.mrb[0].mxu0
    %1281 = vdwg.mxu0
    %v1282 = vmul.f32 %v1198, 0.9
    %v1283 = vadd.f32 %v1282, %v1279
    %v1284 = vsub.f32 %v1283, %v1201
    %vm1285 = vcmp.gt.f32.partialorder %v1284, 1.0
    %v1286 = vsel %vm1285, 1, 0
    %v1287 = vcvt.s32.f32 %v1286
    %s1288 = scalar_lea.vmem [#allocation8], 96
    %1289 = vst [vmem:[%s1288] sm:$0xff] %v1287
    %s1290 = scalar_lea.vmem [#allocation9], 96
    %1291 = vst [vmem:[%s1290] sm:$0xff] %v1284
    %v1292 = vmul.f32 %v1208, 0.9
    %v1293 = vadd.f32 %v1292, %v154
    %v1294 = vsub.f32 %v1293, %v1211
    %vm1295 = vcmp.gt.f32.partialorder %v1294, 1.0
    %v1296 = vsel %vm1295, 1, 0
    %v1297 = vcvt.s32.f32 %v1296
    %1298 = vmatprep.subr.mxu0 0.0
    %1299 = vmatpush1.msra.mxu0 %v164
    %1300 = vmatprep.subr.mxu0 0.0
    %1301 = vmatpush1.msra.mxu0 %v165
    %1302 = vmatprep.subr.mxu0 0.0
    %1303 = vmatpush1.msra.mxu0 %v166
    %1304 = vmatprep.subr.mxu0 0.0
    %1305 = vmatpush1.msra.mxu0 %v167
    %1306 = vmatprep.subr.mxu0 0.0
    %1307 = vmatpush1.msra.mxu0 %v168
    %1308 = vmatprep.subr.mxu0 0.0
    %1309 = vmatpush1.msra.mxu0 %v169
    %1310 = vmatprep.subr.mxu0 0.0
    %1311 = vmatpush1.msra.mxu0 %v170
    %1312 = vmatprep.subr.mxu0 0.0
    %1313 = vmatpush1.msra.mxu0 %v171
    %1314 = vmatprep.subr.mxu0 0.0
    %1315 = vmatpush1.msra.mxu0 %v172
    %1316 = vmatprep.subr.mxu0 0.0
    %1317 = vmatpush1.msra.mxu0 %v173
    %1318 = vmatprep.subr.mxu0 0.0
    %1319 = vmatpush1.msra.mxu0 %v174
    %1320 = vmatprep.subr.mxu0 0.0
    %1321 = vmatpush1.msra.mxu0 %v175
    %1322 = vmatprep.subr.mxu0 0.0
    %1323 = vmatpush1.msra.mxu0 %v176
    %1324 = vmatprep.subr.mxu0 0.0
    %1325 = vmatpush1.msra.mxu0 %v177
    %1326 = vmatprep.subr.mxu0 0.0
    %1327 = vmatpush1.msra.mxu0 %v178
    %1328 = vmatprep.subr.mxu0 0.0
    %1329 = vmatpush1.msra.mxu0 %v179
    %1330 = vmatprep.subr.mxu0 0.0
    %1331 = vmatpush1.msra.mxu0 0.0
    %1332 = vmatprep.subr.mxu0 0.0
    %1333 = vmatpush1.msra.mxu0 0.0
    %1334 = vmatprep.subr.mxu0 0.0
    %1335 = vmatpush1.msra.mxu0 0.0
    %1336 = vmatprep.subr.mxu0 0.0
    %1337 = vmatpush1.msra.mxu0 0.0
    %1338 = vmatprep.subr.mxu0 0.0
    %1339 = vmatpush1.msra.mxu0 0.0
    %1340 = vmatprep.subr.mxu0 0.0
    %1341 = vmatpush1.msra.mxu0 0.0
    %1342 = vmatprep.subr.mxu0 0.0
    %1343 = vmatpush1.msra.mxu0 0.0
    %1344 = vmatprep.subr.mxu0 0.0
    %1345 = vmatpush1.msra.mxu0 0.0
    %1346 = vmatprep.subr.mxu0 0.0
    %1347 = vmatpush1.msra.mxu0 0.0
    %1348 = vmatprep.subr.mxu0 0.0
    %1349 = vmatpush1.msra.mxu0 0.0
    %1350 = vmatprep.subr.mxu0 0.0
    %1351 = vmatpush1.msra.mxu0 0.0
    %1352 = vmatprep.subr.mxu0 0.0
    %1353 = vmatpush1.msra.mxu0 0.0
    %1354 = vmatprep.subr.mxu0 0.0
    %1355 = vmatpush1.msra.mxu0 0.0
    %1356 = vmatprep.subr.mxu0 0.0
    %1357 = vmatpush1.msra.mxu0 0.0
    %1358 = vmatprep.subr.mxu0 0.0
    %1359 = vmatpush1.msra.mxu0 0.0
    %1360 = vmatprep.subr.mxu0 0.0
    %1361 = vmatpush1.msra.mxu0 0.0
    %1362 = vmatprep.mubr.f32.mxu0 0.0
    %1363 = vmatmul.mubr.f32.gmra.mrb[0].mxu0 %v1297
    %v1364 = vpop.f32.mrb[0].mxu0
    %v1365 = vadd.f32 %v162, %v1364
    %v1366 = vpop.f32.mrb[0].mxu0
    %1367 = vdwg.mxu0
    %v1368 = vmul.f32 %v1284, 0.9
    %v1369 = vadd.f32 %v1368, %v1365
    %v1370 = vsub.f32 %v1369, %v1287
    %vm1371 = vcmp.gt.f32.partialorder %v1370, 1.0
    %v1372 = vsel %vm1371, 1, 0
    %v1373 = vcvt.s32.f32 %v1372
    %s1374 = scalar_lea.vmem [#allocation8], 104
    %1375 = vst [vmem:[%s1374] sm:$0xff] %v1373
    %s1376 = scalar_lea.vmem [#allocation9], 104
    %1377 = vst [vmem:[%s1376] sm:$0xff] %v1370
    %v1378 = vmul.f32 %v1294, 0.9
    %v1379 = vadd.f32 %v1378, %v154
    %v1380 = vsub.f32 %v1379, %v1297
    %vm1381 = vcmp.gt.f32.partialorder %v1380, 1.0
    %v1382 = vsel %vm1381, 1, 0
    %v1383 = vcvt.s32.f32 %v1382
    %1384 = vmatprep.subr.mxu0 0.0
    %1385 = vmatpush1.msra.mxu0 %v164
    %1386 = vmatprep.subr.mxu0 0.0
    %1387 = vmatpush1.msra.mxu0 %v165
    %1388 = vmatprep.subr.mxu0 0.0
    %1389 = vmatpush1.msra.mxu0 %v166
    %1390 = vmatprep.subr.mxu0 0.0
    %1391 = vmatpush1.msra.mxu0 %v167
    %1392 = vmatprep.subr.mxu0 0.0
    %1393 = vmatpush1.msra.mxu0 %v168
    %1394 = vmatprep.subr.mxu0 0.0
    %1395 = vmatpush1.msra.mxu0 %v169
    %1396 = vmatprep.subr.mxu0 0.0
    %1397 = vmatpush1.msra.mxu0 %v170
    %1398 = vmatprep.subr.mxu0 0.0
    %1399 = vmatpush1.msra.mxu0 %v171
    %1400 = vmatprep.subr.mxu0 0.0
    %1401 = vmatpush1.msra.mxu0 %v172
    %1402 = vmatprep.subr.mxu0 0.0
    %1403 = vmatpush1.msra.mxu0 %v173
    %1404 = vmatprep.subr.mxu0 0.0
    %1405 = vmatpush1.msra.mxu0 %v174
    %1406 = vmatprep.subr.mxu0 0.0
    %1407 = vmatpush1.msra.mxu0 %v175
    %1408 = vmatprep.subr.mxu0 0.0
    %1409 = vmatpush1.msra.mxu0 %v176
    %1410 = vmatprep.subr.mxu0 0.0
    %1411 = vmatpush1.msra.mxu0 %v177
    %1412 = vmatprep.subr.mxu0 0.0
    %1413 = vmatpush1.msra.mxu0 %v178
    %1414 = vmatprep.subr.mxu0 0.0
    %1415 = vmatpush1.msra.mxu0 %v179
    %1416 = vmatprep.subr.mxu0 0.0
    %1417 = vmatpush1.msra.mxu0 0.0
    %1418 = vmatprep.subr.mxu0 0.0
    %1419 = vmatpush1.msra.mxu0 0.0
    %1420 = vmatprep.subr.mxu0 0.0
    %1421 = vmatpush1.msra.mxu0 0.0
    %1422 = vmatprep.subr.mxu0 0.0
    %1423 = vmatpush1.msra.mxu0 0.0
    %1424 = vmatprep.subr.mxu0 0.0
    %1425 = vmatpush1.msra.mxu0 0.0
    %1426 = vmatprep.subr.mxu0 0.0
    %1427 = vmatpush1.msra.mxu0 0.0
    %1428 = vmatprep.subr.mxu0 0.0
    %1429 = vmatpush1.msra.mxu0 0.0
    %1430 = vmatprep.subr.mxu0 0.0
    %1431 = vmatpush1.msra.mxu0 0.0
    %1432 = vmatprep.subr.mxu0 0.0
    %1433 = vmatpush1.msra.mxu0 0.0
    %1434 = vmatprep.subr.mxu0 0.0
    %1435 = vmatpush1.msra.mxu0 0.0
    %1436 = vmatprep.subr.mxu0 0.0
    %1437 = vmatpush1.msra.mxu0 0.0
    %1438 = vmatprep.subr.mxu0 0.0
    %1439 = vmatpush1.msra.mxu0 0.0
    %1440 = vmatprep.subr.mxu0 0.0
    %1441 = vmatpush1.msra.mxu0 0.0
    %1442 = vmatprep.subr.mxu0 0.0
    %1443 = vmatpush1.msra.mxu0 0.0
    %1444 = vmatprep.subr.mxu0 0.0
    %1445 = vmatpush1.msra.mxu0 0.0
    %1446 = vmatprep.subr.mxu0 0.0
    %1447 = vmatpush1.msra.mxu0 0.0
    %1448 = vmatprep.mubr.f32.mxu0 0.0
    %1449 = vmatmul.mubr.f32.gmra.mrb[0].mxu0 %v1383
    %v1450 = vpop.f32.mrb[0].mxu0
    %v1451 = vadd.f32 %v162, %v1450
    %v1452 = vpop.f32.mrb[0].mxu0
    %1453 = vdwg.mxu0
    %v1454 = vmul.f32 %v1370, 0.9
    %v1455 = vadd.f32 %v1454, %v1451
    %v1456 = vsub.f32 %v1455, %v1373
    %vm1457 = vcmp.gt.f32.partialorder %v1456, 1.0
    %v1458 = vsel %vm1457, 1, 0
    %v1459 = vcvt.s32.f32 %v1458
    %s1460 = scalar_lea.vmem [#allocation8], 112
    %1461 = vst [vmem:[%s1460] sm:$0xff] %v1459
    %s1462 = scalar_lea.vmem [#allocation9], 112
    %1463 = vst [vmem:[%s1462] sm:$0xff] %v1456
    %v1464 = vmul.f32 %v1380, 0.9
    %v1465 = vadd.f32 %v1464, %v154
    %v1466 = vsub.f32 %v1465, %v1383
    %vm1467 = vcmp.gt.f32.partialorder %v1466, 1.0
    %v1468 = vsel %vm1467, 1, 0
    %v1469 = vcvt.s32.f32 %v1468
    %1470 = vmatprep.subr.mxu0 0.0
    %1471 = vmatpush1.msra.mxu0 %v164
    %1472 = vmatprep.subr.mxu0 0.0
    %1473 = vmatpush1.msra.mxu0 %v165
    %1474 = vmatprep.subr.mxu0 0.0
    %1475 = vmatpush1.msra.mxu0 %v166
    %1476 = vmatprep.subr.mxu0 0.0
    %1477 = vmatpush1.msra.mxu0 %v167
    %1478 = vmatprep.subr.mxu0 0.0
    %1479 = vmatpush1.msra.mxu0 %v168
    %1480 = vmatprep.subr.mxu0 0.0
    %1481 = vmatpush1.msra.mxu0 %v169
    %1482 = vmatprep.subr.mxu0 0.0
    %1483 = vmatpush1.msra.mxu0 %v170
    %1484 = vmatprep.subr.mxu0 0.0
    %1485 = vmatpush1.msra.mxu0 %v171
    %1486 = vmatprep.subr.mxu0 0.0
    %1487 = vmatpush1.msra.mxu0 %v172
    %1488 = vmatprep.subr.mxu0 0.0
    %1489 = vmatpush1.msra.mxu0 %v173
    %1490 = vmatprep.subr.mxu0 0.0
    %1491 = vmatpush1.msra.mxu0 %v174
    %1492 = vmatprep.subr.mxu0 0.0
    %1493 = vmatpush1.msra.mxu0 %v175
    %1494 = vmatprep.subr.mxu0 0.0
    %1495 = vmatpush1.msra.mxu0 %v176
    %1496 = vmatprep.subr.mxu0 0.0
    %1497 = vmatpush1.msra.mxu0 %v177
    %1498 = vmatprep.subr.mxu0 0.0
    %1499 = vmatpush1.msra.mxu0 %v178
    %1500 = vmatprep.subr.mxu0 0.0
    %1501 = vmatpush1.msra.mxu0 %v179
    %1502 = vmatprep.subr.mxu0 0.0
    %1503 = vmatpush1.msra.mxu0 0.0
    %1504 = vmatprep.subr.mxu0 0.0
    %1505 = vmatpush1.msra.mxu0 0.0
    %1506 = vmatprep.subr.mxu0 0.0
    %1507 = vmatpush1.msra.mxu0 0.0
    %1508 = vmatprep.subr.mxu0 0.0
    %1509 = vmatpush1.msra.mxu0 0.0
    %1510 = vmatprep.subr.mxu0 0.0
    %1511 = vmatpush1.msra.mxu0 0.0
    %1512 = vmatprep.subr.mxu0 0.0
    %1513 = vmatpush1.msra.mxu0 0.0
    %1514 = vmatprep.subr.mxu0 0.0
    %1515 = vmatpush1.msra.mxu0 0.0
    %1516 = vmatprep.subr.mxu0 0.0
    %1517 = vmatpush1.msra.mxu0 0.0
    %1518 = vmatprep.subr.mxu0 0.0
    %1519 = vmatpush1.msra.mxu0 0.0
    %1520 = vmatprep.subr.mxu0 0.0
    %1521 = vmatpush1.msra.mxu0 0.0
    %1522 = vmatprep.subr.mxu0 0.0
    %1523 = vmatpush1.msra.mxu0 0.0
    %1524 = vmatprep.subr.mxu0 0.0
    %1525 = vmatpush1.msra.mxu0 0.0
    %1526 = vmatprep.subr.mxu0 0.0
    %1527 = vmatpush1.msra.mxu0 0.0
    %1528 = vmatprep.subr.mxu0 0.0
    %1529 = vmatpush1.msra.mxu0 0.0
    %1530 = vmatprep.subr.mxu0 0.0
    %1531 = vmatpush1.msra.mxu0 0.0
    %1532 = vmatprep.subr.mxu0 0.0
    %1533 = vmatpush1.msra.mxu0 0.0
    %1534 = vmatprep.mubr.f32.mxu0 0.0
    %1535 = vmatmul.mubr.f32.gmra.mrb[0].mxu0 %v1469
    %v1536 = vpop.f32.mrb[0].mxu0
    %v1537 = vadd.f32 %v162, %v1536
    %v1538 = vpop.f32.mrb[0].mxu0
    %1539 = vdwg.mxu0
    %v1540 = vmul.f32 %v1456, 0.9
    %v1541 = vadd.f32 %v1540, %v1537
    %v1542 = vsub.f32 %v1541, %v1459
    %vm1543 = vcmp.gt.f32.partialorder %v1542, 1.0
    %v1544 = vsel %vm1543, 1, 0
    %v1545 = vcvt.s32.f32 %v1544
    %s1546 = scalar_lea.vmem [#allocation8], 120
    %1547 = vst [vmem:[%s1546] sm:$0xff] %v1545
    %s1548 = scalar_lea.vmem [#allocation9], 120
    %1549 = vst [vmem:[%s1548] sm:$0xff] %v1542
    %v1550 = vmul.f32 %v1466, 0.9
    %v1551 = vadd.f32 %v1550, %v154
    %v1552 = vsub.f32 %v1551, %v1469
    %vm1553 = vcmp.gt.f32.partialorder %v1552, 1.0
    %v1554 = vsel %vm1553, 1, 0
    %v1555 = vcvt.s32.f32 %v1554
    %1556 = vmatprep.subr.mxu0 0.0
    %1557 = vmatpush1.msra.mxu0 %v164
    %1558 = vmatprep.subr.mxu0 0.0
    %1559 = vmatpush1.msra.mxu0 %v165
    %1560 = vmatprep.subr.mxu0 0.0
    %1561 = vmatpush1.msra.mxu0 %v166
    %1562 = vmatprep.subr.mxu0 0.0
    %1563 = vmatpush1.msra.mxu0 %v167
    %1564 = vmatprep.subr.mxu0 0.0
    %1565 = vmatpush1.msra.mxu0 %v168
    %1566 = vmatprep.subr.mxu0 0.0
    %1567 = vmatpush1.msra.mxu0 %v169
    %1568 = vmatprep.subr.mxu0 0.0
    %1569 = vmatpush1.msra.mxu0 %v170
    %1570 = vmatprep.subr.mxu0 0.0
    %1571 = vmatpush1.msra.mxu0 %v171
    %1572 = vmatprep.subr.mxu0 0.0
    %1573 = vmatpush1.msra.mxu0 %v172
    %1574 = vmatprep.subr.mxu0 0.0
    %1575 = vmatpush1.msra.mxu0 %v173
    %1576 = vmatprep.subr.mxu0 0.0
    %1577 = vmatpush1.msra.mxu0 %v174
    %1578 = vmatprep.subr.mxu0 0.0
    %1579 = vmatpush1.msra.mxu0 %v175
    %1580 = vmatprep.subr.mxu0 0.0
    %1581 = vmatpush1.msra.mxu0 %v176
    %1582 = vmatprep.subr.mxu0 0.0
    %1583 = vmatpush1.msra.mxu0 %v177
    %1584 = vmatprep.subr.mxu0 0.0
    %1585 = vmatpush1.msra.mxu0 %v178
    %1586 = vmatprep.subr.mxu0 0.0
    %1587 = vmatpush1.msra.mxu0 %v179
    %1588 = vmatprep.subr.mxu0 0.0
    %1589 = vmatpush1.msra.mxu0 0.0
    %1590 = vmatprep.subr.mxu0 0.0
    %1591 = vmatpush1.msra.mxu0 0.0
    %1592 = vmatprep.subr.mxu0 0.0
    %1593 = vmatpush1.msra.mxu0 0.0
    %1594 = vmatprep.subr.mxu0 0.0
    %1595 = vmatpush1.msra.mxu0 0.0
    %1596 = vmatprep.subr.mxu0 0.0
    %1597 = vmatpush1.msra.mxu0 0.0
    %1598 = vmatprep.subr.mxu0 0.0
    %1599 = vmatpush1.msra.mxu0 0.0
    %1600 = vmatprep.subr.mxu0 0.0
    %1601 = vmatpush1.msra.mxu0 0.0
    %1602 = vmatprep.subr.mxu0 0.0
    %1603 = vmatpush1.msra.mxu0 0.0
    %1604 = vmatprep.subr.mxu0 0.0
    %1605 = vmatpush1.msra.mxu0 0.0
    %1606 = vmatprep.subr.mxu0 0.0
    %1607 = vmatpush1.msra.mxu0 0.0
    %1608 = vmatprep.subr.mxu0 0.0
    %1609 = vmatpush1.msra.mxu0 0.0
    %1610 = vmatprep.subr.mxu0 0.0
    %1611 = vmatpush1.msra.mxu0 0.0
    %1612 = vmatprep.subr.mxu0 0.0
    %1613 = vmatpush1.msra.mxu0 0.0
    %1614 = vmatprep.subr.mxu0 0.0
    %1615 = vmatpush1.msra.mxu0 0.0
    %1616 = vmatprep.subr.mxu0 0.0
    %1617 = vmatpush1.msra.mxu0 0.0
    %1618 = vmatprep.subr.mxu0 0.0
    %1619 = vmatpush1.msra.mxu0 0.0
    %1620 = vmatprep.mubr.f32.mxu0 0.0
    %1621 = vmatmul.mubr.f32.gmra.mrb[0].mxu0 %v1555
    %v1622 = vpop.f32.mrb[0].mxu0
    %v1623 = vadd.f32 %v162, %v1622
    %v1624 = vpop.f32.mrb[0].mxu0
    %1625 = vdwg.mxu0
    %v1626 = vmul.f32 %v1542, 0.9
    %v1627 = vadd.f32 %v1626, %v1623
    %v1628 = vsub.f32 %v1627, %v1545
    %vm1629 = vcmp.gt.f32.partialorder %v1628, 1.0
    %v1630 = vsel %vm1629, 1, 0
    %v1631 = vcvt.s32.f32 %v1630
    %s1632 = scalar_lea.vmem [#allocation8], 128
    %1633 = vst [vmem:[%s1632] sm:$0xff] %v1631
    %s1634 = scalar_lea.vmem [#allocation9], 128
    %1635 = vst [vmem:[%s1634] sm:$0xff] %v1628
    %v1636 = vmul.f32 %v1552, 0.9
    %v1637 = vadd.f32 %v1636, %v154
    %v1638 = vsub.f32 %v1637, %v1555
    %vm1639 = vcmp.gt.f32.partialorder %v1638, 1.0
    %v1640 = vsel %vm1639, 1, 0
    %v1641 = vcvt.s32.f32 %v1640
    %1642 = vmatprep.subr.mxu0 0.0
    %1643 = vmatpush1.msra.mxu0 %v164
    %1644 = vmatprep.subr.mxu0 0.0
    %1645 = vmatpush1.msra.mxu0 %v165
    %1646 = vmatprep.subr.mxu0 0.0
    %1647 = vmatpush1.msra.mxu0 %v166
    %1648 = vmatprep.subr.mxu0 0.0
    %1649 = vmatpush1.msra.mxu0 %v167
    %1650 = vmatprep.subr.mxu0 0.0
    %1651 = vmatpush1.msra.mxu0 %v168
    %1652 = vmatprep.subr.mxu0 0.0
    %1653 = vmatpush1.msra.mxu0 %v169
    %1654 = vmatprep.subr.mxu0 0.0
    %1655 = vmatpush1.msra.mxu0 %v170
    %1656 = vmatprep.subr.mxu0 0.0
    %1657 = vmatpush1.msra.mxu0 %v171
    %1658 = vmatprep.subr.mxu0 0.0
    %1659 = vmatpush1.msra.mxu0 %v172
    %1660 = vmatprep.subr.mxu0 0.0
    %1661 = vmatpush1.msra.mxu0 %v173
    %1662 = vmatprep.subr.mxu0 0.0
    %1663 = vmatpush1.msra.mxu0 %v174
    %1664 = vmatprep.subr.mxu0 0.0
    %1665 = vmatpush1.msra.mxu0 %v175
    %1666 = vmatprep.subr.mxu0 0.0
    %1667 = vmatpush1.msra.mxu0 %v176
    %1668 = vmatprep.subr.mxu0 0.0
    %1669 = vmatpush1.msra.mxu0 %v177
    %1670 = vmatprep.subr.mxu0 0.0
    %1671 = vmatpush1.msra.mxu0 %v178
    %1672 = vmatprep.subr.mxu0 0.0
    %1673 = vmatpush1.msra.mxu0 %v179
    %1674 = vmatprep.subr.mxu0 0.0
    %1675 = vmatpush1.msra.mxu0 0.0
    %1676 = vmatprep.subr.mxu0 0.0
    %1677 = vmatpush1.msra.mxu0 0.0
    %1678 = vmatprep.subr.mxu0 0.0
    %1679 = vmatpush1.msra.mxu0 0.0
    %1680 = vmatprep.subr.mxu0 0.0
    %1681 = vmatpush1.msra.mxu0 0.0
    %1682 = vmatprep.subr.mxu0 0.0
    %1683 = vmatpush1.msra.mxu0 0.0
    %1684 = vmatprep.subr.mxu0 0.0
    %1685 = vmatpush1.msra.mxu0 0.0
    %1686 = vmatprep.subr.mxu0 0.0
    %1687 = vmatpush1.msra.mxu0 0.0
    %1688 = vmatprep.subr.mxu0 0.0
    %1689 = vmatpush1.msra.mxu0 0.0
    %1690 = vmatprep.subr.mxu0 0.0
    %1691 = vmatpush1.msra.mxu0 0.0
    %1692 = vmatprep.subr.mxu0 0.0
    %1693 = vmatpush1.msra.mxu0 0.0
    %1694 = vmatprep.subr.mxu0 0.0
    %1695 = vmatpush1.msra.mxu0 0.0
    %1696 = vmatprep.subr.mxu0 0.0
    %1697 = vmatpush1.msra.mxu0 0.0
    %1698 = vmatprep.subr.mxu0 0.0
    %1699 = vmatpush1.msra.mxu0 0.0
    %1700 = vmatprep.subr.mxu0 0.0
    %1701 = vmatpush1.msra.mxu0 0.0
    %1702 = vmatprep.subr.mxu0 0.0
    %1703 = vmatpush1.msra.mxu0 0.0
    %1704 = vmatprep.subr.mxu0 0.0
    %1705 = vmatpush1.msra.mxu0 0.0
    %1706 = vmatprep.mubr.f32.mxu0 0.0
    %1707 = vmatmul.mubr.f32.gmra.mrb[0].mxu0 %v1641
    %v1708 = vpop.f32.mrb[0].mxu0
    %v1709 = vadd.f32 %v162, %v1708
    %v1710 = vpop.f32.mrb[0].mxu0
    %1711 = vdwg.mxu0
    %v1712 = vmul.f32 %v1628, 0.9
    %v1713 = vadd.f32 %v1712, %v1709
    %v1714 = vsub.f32 %v1713, %v1631
    %vm1715 = vcmp.gt.f32.partialorder %v1714, 1.0
    %v1716 = vsel %vm1715, 1, 0
    %v1717 = vcvt.s32.f32 %v1716
    %s1718 = scalar_lea.vmem [#allocation8], 136
    %1719 = vst [vmem:[%s1718] sm:$0xff] %v1717
    %s1720 = scalar_lea.vmem [#allocation9], 136
    %1721 = vst [vmem:[%s1720] sm:$0xff] %v1714
    %v1722 = vmul.f32 %v1638, 0.9
    %v1723 = vadd.f32 %v1722, %v154
    %v1724 = vsub.f32 %v1723, %v1641
    %vm1725 = vcmp.gt.f32.partialorder %v1724, 1.0
    %v1726 = vsel %vm1725, 1, 0
    %v1727 = vcvt.s32.f32 %v1726
    %1728 = vmatprep.subr.mxu0 0.0
    %1729 = vmatpush1.msra.mxu0 %v164
    %1730 = vmatprep.subr.mxu0 0.0
    %1731 = vmatpush1.msra.mxu0 %v165
    %1732 = vmatprep.subr.mxu0 0.0
    %1733 = vmatpush1.msra.mxu0 %v166
    %1734 = vmatprep.subr.mxu0 0.0
    %1735 = vmatpush1.msra.mxu0 %v167
    %1736 = vmatprep.subr.mxu0 0.0
    %1737 = vmatpush1.msra.mxu0 %v168
    %1738 = vmatprep.subr.mxu0 0.0
    %1739 = vmatpush1.msra.mxu0 %v169
    %1740 = vmatprep.subr.mxu0 0.0
    %1741 = vmatpush1.msra.mxu0 %v170
    %1742 = vmatprep.subr.mxu0 0.0
    %1743 = vmatpush1.msra.mxu0 %v171
    %1744 = vmatprep.subr.mxu0 0.0
    %1745 = vmatpush1.msra.mxu0 %v172
    %1746 = vmatprep.subr.mxu0 0.0
    %1747 = vmatpush1.msra.mxu0 %v173
    %1748 = vmatprep.subr.mxu0 0.0
    %1749 = vmatpush1.msra.mxu0 %v174
    %1750 = vmatprep.subr.mxu0 0.0
    %1751 = vmatpush1.msra.mxu0 %v175
    %1752 = vmatprep.subr.mxu0 0.0
    %1753 = vmatpush1.msra.mxu0 %v176
    %1754 = vmatprep.subr.mxu0 0.0
    %1755 = vmatpush1.msra.mxu0 %v177
    %1756 = vmatprep.subr.mxu0 0.0
    %1757 = vmatpush1.msra.mxu0 %v178
    %1758 = vmatprep.subr.mxu0 0.0
    %1759 = vmatpush1.msra.mxu0 %v179
    %1760 = vmatprep.subr.mxu0 0.0
    %1761 = vmatpush1.msra.mxu0 0.0
    %1762 = vmatprep.subr.mxu0 0.0
    %1763 = vmatpush1.msra.mxu0 0.0
    %1764 = vmatprep.subr.mxu0 0.0
    %1765 = vmatpush1.msra.mxu0 0.0
    %1766 = vmatprep.subr.mxu0 0.0
    %1767 = vmatpush1.msra.mxu0 0.0
    %1768 = vmatprep.subr.mxu0 0.0
    %1769 = vmatpush1.msra.mxu0 0.0
    %1770 = vmatprep.subr.mxu0 0.0
    %1771 = vmatpush1.msra.mxu0 0.0
    %1772 = vmatprep.subr.mxu0 0.0
    %1773 = vmatpush1.msra.mxu0 0.0
    %1774 = vmatprep.subr.mxu0 0.0
    %1775 = vmatpush1.msra.mxu0 0.0
    %1776 = vmatprep.subr.mxu0 0.0
    %1777 = vmatpush1.msra.mxu0 0.0
    %1778 = vmatprep.subr.mxu0 0.0
    %1779 = vmatpush1.msra.mxu0 0.0
    %1780 = vmatprep.subr.mxu0 0.0
    %1781 = vmatpush1.msra.mxu0 0.0
    %1782 = vmatprep.subr.mxu0 0.0
    %1783 = vmatpush1.msra.mxu0 0.0
    %1784 = vmatprep.subr.mxu0 0.0
    %1785 = vmatpush1.msra.mxu0 0.0
    %1786 = vmatprep.subr.mxu0 0.0
    %1787 = vmatpush1.msra.mxu0 0.0
    %1788 = vmatprep.subr.mxu0 0.0
    %1789 = vmatpush1.msra.mxu0 0.0
    %1790 = vmatprep.subr.mxu0 0.0
    %1791 = vmatpush1.msra.mxu0 0.0
    %1792 = vmatprep.mubr.f32.mxu0 0.0
    %1793 = vmatmul.mubr.f32.gmra.mrb[0].mxu0 %v1727
    %v1794 = vpop.f32.mrb[0].mxu0
    %v1795 = vadd.f32 %v162, %v1794
    %v1796 = vpop.f32.mrb[0].mxu0
    %1797 = vdwg.mxu0
    %v1798 = vmul.f32 %v1714, 0.9
    %v1799 = vadd.f32 %v1798, %v1795
    %v1800 = vsub.f32 %v1799, %v1717
    %vm1801 = vcmp.gt.f32.partialorder %v1800, 1.0
    %v1802 = vsel %vm1801, 1, 0
    %v1803 = vcvt.s32.f32 %v1802
    %s1804 = scalar_lea.vmem [#allocation8], 144
    %1805 = vst [vmem:[%s1804] sm:$0xff] %v1803
    %s1806 = scalar_lea.vmem [#allocation9], 144
    %1807 = vst [vmem:[%s1806] sm:$0xff] %v1800
    %v1808 = vmul.f32 %v1724, 0.9
    %v1809 = vadd.f32 %v1808, %v154
    %v1810 = vsub.f32 %v1809, %v1727
    %vm1811 = vcmp.gt.f32.partialorder %v1810, 1.0
    %v1812 = vsel %vm1811, 1, 0
    %v1813 = vcvt.s32.f32 %v1812
    %1814 = vmatprep.subr.mxu0 0.0
    %1815 = vmatpush1.msra.mxu0 %v164
    %1816 = vmatprep.subr.mxu0 0.0
    %1817 = vmatpush1.msra.mxu0 %v165
    %1818 = vmatprep.subr.mxu0 0.0
    %1819 = vmatpush1.msra.mxu0 %v166
    %1820 = vmatprep.subr.mxu0 0.0
    %1821 = vmatpush1.msra.mxu0 %v167
    %1822 = vmatprep.subr.mxu0 0.0
    %1823 = vmatpush1.msra.mxu0 %v168
    %1824 = vmatprep.subr.mxu0 0.0
    %1825 = vmatpush1.msra.mxu0 %v169
    %1826 = vmatprep.subr.mxu0 0.0
    %1827 = vmatpush1.msra.mxu0 %v170
    %1828 = vmatprep.subr.mxu0 0.0
    %1829 = vmatpush1.msra.mxu0 %v171
    %1830 = vmatprep.subr.mxu0 0.0
    %1831 = vmatpush1.msra.mxu0 %v172
    %1832 = vmatprep.subr.mxu0 0.0
    %1833 = vmatpush1.msra.mxu0 %v173
    %1834 = vmatprep.subr.mxu0 0.0
    %1835 = vmatpush1.msra.mxu0 %v174
    %1836 = vmatprep.subr.mxu0 0.0
    %1837 = vmatpush1.msra.mxu0 %v175
    %1838 = vmatprep.subr.mxu0 0.0
    %1839 = vmatpush1.msra.mxu0 %v176
    %1840 = vmatprep.subr.mxu0 0.0
    %1841 = vmatpush1.msra.mxu0 %v177
    %1842 = vmatprep.subr.mxu0 0.0
    %1843 = vmatpush1.msra.mxu0 %v178
    %1844 = vmatprep.subr.mxu0 0.0
    %1845 = vmatpush1.msra.mxu0 %v179
    %1846 = vmatprep.subr.mxu0 0.0
    %1847 = vmatpush1.msra.mxu0 0.0
    %1848 = vmatprep.subr.mxu0 0.0
    %1849 = vmatpush1.msra.mxu0 0.0
    %1850 = vmatprep.subr.mxu0 0.0
    %1851 = vmatpush1.msra.mxu0 0.0
    %1852 = vmatprep.subr.mxu0 0.0
    %1853 = vmatpush1.msra.mxu0 0.0
    %1854 = vmatprep.subr.mxu0 0.0
    %1855 = vmatpush1.msra.mxu0 0.0
    %1856 = vmatprep.subr.mxu0 0.0
    %1857 = vmatpush1.msra.mxu0 0.0
    %1858 = vmatprep.subr.mxu0 0.0
    %1859 = vmatpush1.msra.mxu0 0.0
    %1860 = vmatprep.subr.mxu0 0.0
    %1861 = vmatpush1.msra.mxu0 0.0
    %1862 = vmatprep.subr.mxu0 0.0
    %1863 = vmatpush1.msra.mxu0 0.0
    %1864 = vmatprep.subr.mxu0 0.0
    %1865 = vmatpush1.msra.mxu0 0.0
    %1866 = vmatprep.subr.mxu0 0.0
    %1867 = vmatpush1.msra.mxu0 0.0
    %1868 = vmatprep.subr.mxu0 0.0
    %1869 = vmatpush1.msra.mxu0 0.0
    %1870 = vmatprep.subr.mxu0 0.0
    %1871 = vmatpush1.msra.mxu0 0.0
    %1872 = vmatprep.subr.mxu0 0.0
    %1873 = vmatpush1.msra.mxu0 0.0
    %1874 = vmatprep.subr.mxu0 0.0
    %1875 = vmatpush1.msra.mxu0 0.0
    %1876 = vmatprep.subr.mxu0 0.0
    %1877 = vmatpush1.msra.mxu0 0.0
    %1878 = vmatprep.mubr.f32.mxu0 0.0
    %1879 = vmatmul.mubr.f32.gmra.mrb[0].mxu0 %v1813
    %v1880 = vpop.f32.mrb[0].mxu0
    %v1881 = vadd.f32 %v162, %v1880
    %v1882 = vpop.f32.mrb[0].mxu0
    %1883 = vdwg.mxu0
    %v1884 = vmul.f32 %v1800, 0.9
    %v1885 = vadd.f32 %v1884, %v1881
    %v1886 = vsub.f32 %v1885, %v1803
    %vm1887 = vcmp.gt.f32.partialorder %v1886, 1.0
    %v1888 = vsel %vm1887, 1, 0
    %v1889 = vcvt.s32.f32 %v1888
    %s1890 = scalar_lea.vmem [#allocation8], 152
    %1891 = vst [vmem:[%s1890] sm:$0xff] %v1889
    %s1892 = scalar_lea.vmem [#allocation9], 152
    %1893 = vst [vmem:[%s1892] sm:$0xff] %v1886
    %v1894 = vmul.f32 %v1810, 0.9
    %v1895 = vadd.f32 %v1894, %v154
    %v1896 = vsub.f32 %v1895, %v1813
    %vm1897 = vcmp.gt.f32.partialorder %v1896, 1.0
    %v1898 = vsel %vm1897, 1, 0
    %v1899 = vcvt.s32.f32 %v1898
    %1900 = vmatprep.subr.mxu0 0.0
    %1901 = vmatpush1.msra.mxu0 %v164
    %1902 = vmatprep.subr.mxu0 0.0
    %1903 = vmatpush1.msra.mxu0 %v165
    %1904 = vmatprep.subr.mxu0 0.0
    %1905 = vmatpush1.msra.mxu0 %v166
    %1906 = vmatprep.subr.mxu0 0.0
    %1907 = vmatpush1.msra.mxu0 %v167
    %1908 = vmatprep.subr.mxu0 0.0
    %1909 = vmatpush1.msra.mxu0 %v168
    %1910 = vmatprep.subr.mxu0 0.0
    %1911 = vmatpush1.msra.mxu0 %v169
    %1912 = vmatprep.subr.mxu0 0.0
    %1913 = vmatpush1.msra.mxu0 %v170
    %1914 = vmatprep.subr.mxu0 0.0
    %1915 = vmatpush1.msra.mxu0 %v171
    %1916 = vmatprep.subr.mxu0 0.0
    %1917 = vmatpush1.msra.mxu0 %v172
    %1918 = vmatprep.subr.mxu0 0.0
    %1919 = vmatpush1.msra.mxu0 %v173
    %1920 = vmatprep.subr.mxu0 0.0
    %1921 = vmatpush1.msra.mxu0 %v174
    %1922 = vmatprep.subr.mxu0 0.0
    %1923 = vmatpush1.msra.mxu0 %v175
    %1924 = vmatprep.subr.mxu0 0.0
    %1925 = vmatpush1.msra.mxu0 %v176
    %1926 = vmatprep.subr.mxu0 0.0
    %1927 = vmatpush1.msra.mxu0 %v177
    %1928 = vmatprep.subr.mxu0 0.0
    %1929 = vmatpush1.msra.mxu0 %v178
    %1930 = vmatprep.subr.mxu0 0.0
    %1931 = vmatpush1.msra.mxu0 %v179
    %1932 = vmatprep.subr.mxu0 0.0
    %1933 = vmatpush1.msra.mxu0 0.0
    %1934 = vmatprep.subr.mxu0 0.0
    %1935 = vmatpush1.msra.mxu0 0.0
    %1936 = vmatprep.subr.mxu0 0.0
    %1937 = vmatpush1.msra.mxu0 0.0
    %1938 = vmatprep.subr.mxu0 0.0
    %1939 = vmatpush1.msra.mxu0 0.0
    %1940 = vmatprep.subr.mxu0 0.0
    %1941 = vmatpush1.msra.mxu0 0.0
    %1942 = vmatprep.subr.mxu0 0.0
    %1943 = vmatpush1.msra.mxu0 0.0
    %1944 = vmatprep.subr.mxu0 0.0
    %1945 = vmatpush1.msra.mxu0 0.0
    %1946 = vmatprep.subr.mxu0 0.0
    %1947 = vmatpush1.msra.mxu0 0.0
    %1948 = vmatprep.subr.mxu0 0.0
    %1949 = vmatpush1.msra.mxu0 0.0
    %1950 = vmatprep.subr.mxu0 0.0
    %1951 = vmatpush1.msra.mxu0 0.0
    %1952 = vmatprep.subr.mxu0 0.0
    %1953 = vmatpush1.msra.mxu0 0.0
    %1954 = vmatprep.subr.mxu0 0.0
    %1955 = vmatpush1.msra.mxu0 0.0
    %1956 = vmatprep.subr.mxu0 0.0
    %1957 = vmatpush1.msra.mxu0 0.0
    %1958 = vmatprep.subr.mxu0 0.0
    %1959 = vmatpush1.msra.mxu0 0.0
    %1960 = vmatprep.subr.mxu0 0.0
    %1961 = vmatpush1.msra.mxu0 0.0
    %1962 = vmatprep.subr.mxu0 0.0
    %1963 = vmatpush1.msra.mxu0 0.0
    %1964 = vmatprep.mubr.f32.mxu0 0.0
    %1965 = vmatmul.mubr.f32.gmra.mrb[0].mxu0 %v1899
    %v1966 = vpop.f32.mrb[0].mxu0
    %v1967 = vadd.f32 %v162, %v1966
    %v1968 = vpop.f32.mrb[0].mxu0
    %1969 = vdwg.mxu0
    %v1970 = vmul.f32 %v1886, 0.9
    %v1971 = vadd.f32 %v1970, %v1967
    %v1972 = vsub.f32 %v1971, %v1889
    %vm1973 = vcmp.gt.f32.partialorder %v1972, 1.0
    %v1974 = vsel %vm1973, 1, 0
    %v1975 = vcvt.s32.f32 %v1974
    %s1976 = scalar_lea.vmem [#allocation8], 160
    %1977 = vst [vmem:[%s1976] sm:$0xff] %v1975
    %s1978 = scalar_lea.vmem [#allocation9], 160
    %1979 = vst [vmem:[%s1978] sm:$0xff] %v1972
    %v1980 = vmul.f32 %v1896, 0.9
    %v1981 = vadd.f32 %v1980, %v154
    %v1982 = vsub.f32 %v1981, %v1899
    %vm1983 = vcmp.gt.f32.partialorder %v1982, 1.0
    %v1984 = vsel %vm1983, 1, 0
    %v1985 = vcvt.s32.f32 %v1984
    %1986 = vmatprep.subr.mxu0 0.0
    %1987 = vmatpush1.msra.mxu0 %v164
    %1988 = vmatprep.subr.mxu0 0.0
    %1989 = vmatpush1.msra.mxu0 %v165
    %1990 = vmatprep.subr.mxu0 0.0
    %1991 = vmatpush1.msra.mxu0 %v166
    %1992 = vmatprep.subr.mxu0 0.0
    %1993 = vmatpush1.msra.mxu0 %v167
    %1994 = vmatprep.subr.mxu0 0.0
    %1995 = vmatpush1.msra.mxu0 %v168
    %1996 = vmatprep.subr.mxu0 0.0
    %1997 = vmatpush1.msra.mxu0 %v169
    %1998 = vmatprep.subr.mxu0 0.0
    %1999 = vmatpush1.msra.mxu0 %v170
    %2000 = vmatprep.subr.mxu0 0.0
    %2001 = vmatpush1.msra.mxu0 %v171
    %2002 = vmatprep.subr.mxu0 0.0
    %2003 = vmatpush1.msra.mxu0 %v172
    %2004 = vmatprep.subr.mxu0 0.0
    %2005 = vmatpush1.msra.mxu0 %v173
    %2006 = vmatprep.subr.mxu0 0.0
    %2007 = vmatpush1.msra.mxu0 %v174
    %2008 = vmatprep.subr.mxu0 0.0
    %2009 = vmatpush1.msra.mxu0 %v175
    %2010 = vmatprep.subr.mxu0 0.0
    %2011 = vmatpush1.msra.mxu0 %v176
    %2012 = vmatprep.subr.mxu0 0.0
    %2013 = vmatpush1.msra.mxu0 %v177
    %2014 = vmatprep.subr.mxu0 0.0
    %2015 = vmatpush1.msra.mxu0 %v178
    %2016 = vmatprep.subr.mxu0 0.0
    %2017 = vmatpush1.msra.mxu0 %v179
    %2018 = vmatprep.subr.mxu0 0.0
    %2019 = vmatpush1.msra.mxu0 0.0
    %2020 = vmatprep.subr.mxu0 0.0
    %2021 = vmatpush1.msra.mxu0 0.0
    %2022 = vmatprep.subr.mxu0 0.0
    %2023 = vmatpush1.msra.mxu0 0.0
    %2024 = vmatprep.subr.mxu0 0.0
    %2025 = vmatpush1.msra.mxu0 0.0
    %2026 = vmatprep.subr.mxu0 0.0
    %2027 = vmatpush1.msra.mxu0 0.0
    %2028 = vmatprep.subr.mxu0 0.0
    %2029 = vmatpush1.msra.mxu0 0.0
    %2030 = vmatprep.subr.mxu0 0.0
    %2031 = vmatpush1.msra.mxu0 0.0
    %2032 = vmatprep.subr.mxu0 0.0
    %2033 = vmatpush1.msra.mxu0 0.0
    %2034 = vmatprep.subr.mxu0 0.0
    %2035 = vmatpush1.msra.mxu0 0.0
    %2036 = vmatprep.subr.mxu0 0.0
    %2037 = vmatpush1.msra.mxu0 0.0
    %2038 = vmatprep.subr.mxu0 0.0
    %2039 = vmatpush1.msra.mxu0 0.0
    %2040 = vmatprep.subr.mxu0 0.0
    %2041 = vmatpush1.msra.mxu0 0.0
    %2042 = vmatprep.subr.mxu0 0.0
    %2043 = vmatpush1.msra.mxu0 0.0
    %2044 = vmatprep.subr.mxu0 0.0
    %2045 = vmatpush1.msra.mxu0 0.0
    %2046 = vmatprep.subr.mxu0 0.0
    %2047 = vmatpush1.msra.mxu0 0.0
    %2048 = vmatprep.subr.mxu0 0.0
    %2049 = vmatpush1.msra.mxu0 0.0
    %2050 = vmatprep.mubr.f32.mxu0 0.0
    %2051 = vmatmul.mubr.f32.gmra.mrb[0].mxu0 %v1985
    %v2052 = vpop.f32.mrb[0].mxu0
    %v2053 = vadd.f32 %v162, %v2052
    %v2054 = vpop.f32.mrb[0].mxu0
    %2055 = vdwg.mxu0
    %v2056 = vmul.f32 %v1972, 0.9
    %v2057 = vadd.f32 %v2056, %v2053
    %v2058 = vsub.f32 %v2057, %v1975
    %vm2059 = vcmp.gt.f32.partialorder %v2058, 1.0
    %v2060 = vsel %vm2059, 1, 0
    %v2061 = vcvt.s32.f32 %v2060
    %s2062 = scalar_lea.vmem [#allocation8], 168
    %2063 = vst [vmem:[%s2062] sm:$0xff] %v2061
    %s2064 = scalar_lea.vmem [#allocation9], 168
    %2065 = vst [vmem:[%s2064] sm:$0xff] %v2058
    %v2066 = vmul.f32 %v1982, 0.9
    %v2067 = vadd.f32 %v2066, %v154
    %v2068 = vsub.f32 %v2067, %v1985
    %vm2069 = vcmp.gt.f32.partialorder %v2068, 1.0
    %v2070 = vsel %vm2069, 1, 0
    %v2071 = vcvt.s32.f32 %v2070
    %2072 = vmatprep.subr.mxu0 0.0
    %2073 = vmatpush1.msra.mxu0 %v164
    %2074 = vmatprep.subr.mxu0 0.0
    %2075 = vmatpush1.msra.mxu0 %v165
    %2076 = vmatprep.subr.mxu0 0.0
    %2077 = vmatpush1.msra.mxu0 %v166
    %2078 = vmatprep.subr.mxu0 0.0
    %2079 = vmatpush1.msra.mxu0 %v167
    %2080 = vmatprep.subr.mxu0 0.0
    %2081 = vmatpush1.msra.mxu0 %v168
    %2082 = vmatprep.subr.mxu0 0.0
    %2083 = vmatpush1.msra.mxu0 %v169
    %2084 = vmatprep.subr.mxu0 0.0
    %2085 = vmatpush1.msra.mxu0 %v170
    %2086 = vmatprep.subr.mxu0 0.0
    %2087 = vmatpush1.msra.mxu0 %v171
    %2088 = vmatprep.subr.mxu0 0.0
    %2089 = vmatpush1.msra.mxu0 %v172
    %2090 = vmatprep.subr.mxu0 0.0
    %2091 = vmatpush1.msra.mxu0 %v173
    %2092 = vmatprep.subr.mxu0 0.0
    %2093 = vmatpush1.msra.mxu0 %v174
    %2094 = vmatprep.subr.mxu0 0.0
    %2095 = vmatpush1.msra.mxu0 %v175
    %2096 = vmatprep.subr.mxu0 0.0
    %2097 = vmatpush1.msra.mxu0 %v176
    %2098 = vmatprep.subr.mxu0 0.0
    %2099 = vmatpush1.msra.mxu0 %v177
    %2100 = vmatprep.subr.mxu0 0.0
    %2101 = vmatpush1.msra.mxu0 %v178
    %2102 = vmatprep.subr.mxu0 0.0
    %2103 = vmatpush1.msra.mxu0 %v179
    %2104 = vmatprep.subr.mxu0 0.0
    %2105 = vmatpush1.msra.mxu0 0.0
    %2106 = vmatprep.subr.mxu0 0.0
    %2107 = vmatpush1.msra.mxu0 0.0
    %2108 = vmatprep.subr.mxu0 0.0
    %2109 = vmatpush1.msra.mxu0 0.0
    %2110 = vmatprep.subr.mxu0 0.0
    %2111 = vmatpush1.msra.mxu0 0.0
    %2112 = vmatprep.subr.mxu0 0.0
    %2113 = vmatpush1.msra.mxu0 0.0
    %2114 = vmatprep.subr.mxu0 0.0
    %2115 = vmatpush1.msra.mxu0 0.0
    %2116 = vmatprep.subr.mxu0 0.0
    %2117 = vmatpush1.msra.mxu0 0.0
    %2118 = vmatprep.subr.mxu0 0.0
    %2119 = vmatpush1.msra.mxu0 0.0
    %2120 = vmatprep.subr.mxu0 0.0
    %2121 = vmatpush1.msra.mxu0 0.0
    %2122 = vmatprep.subr.mxu0 0.0
    %2123 = vmatpush1.msra.mxu0 0.0
    %2124 = vmatprep.subr.mxu0 0.0
    %2125 = vmatpush1.msra.mxu0 0.0
    %2126 = vmatprep.subr.mxu0 0.0
    %2127 = vmatpush1.msra.mxu0 0.0
    %2128 = vmatprep.subr.mxu0 0.0
    %2129 = vmatpush1.msra.mxu0 0.0
    %2130 = vmatprep.subr.mxu0 0.0
    %2131 = vmatpush1.msra.mxu0 0.0
    %2132 = vmatprep.subr.mxu0 0.0
    %2133 = vmatpush1.msra.mxu0 0.0
    %2134 = vmatprep.subr.mxu0 0.0
    %2135 = vmatpush1.msra.mxu0 0.0
    %2136 = vmatprep.mubr.f32.mxu0 0.0
    %2137 = vmatmul.mubr.f32.gmra.mrb[0].mxu0 %v2071
    %v2138 = vpop.f32.mrb[0].mxu0
    %v2139 = vadd.f32 %v162, %v2138
    %v2140 = vpop.f32.mrb[0].mxu0
    %2141 = vdwg.mxu0
    %v2142 = vmul.f32 %v2058, 0.9
    %v2143 = vadd.f32 %v2142, %v2139
    %v2144 = vsub.f32 %v2143, %v2061
    %vm2145 = vcmp.gt.f32.partialorder %v2144, 1.0
    %v2146 = vsel %vm2145, 1, 0
    %v2147 = vcvt.s32.f32 %v2146
    %s2148 = scalar_lea.vmem [#allocation8], 176
    %2149 = vst [vmem:[%s2148] sm:$0xff] %v2147
    %s2150 = scalar_lea.vmem [#allocation9], 176
    %2151 = vst [vmem:[%s2150] sm:$0xff] %v2144
    %v2152 = vmul.f32 %v2068, 0.9
    %v2153 = vadd.f32 %v2152, %v154
    %v2154 = vsub.f32 %v2153, %v2071
    %vm2155 = vcmp.gt.f32.partialorder %v2154, 1.0
    %v2156 = vsel %vm2155, 1, 0
    %v2157 = vcvt.s32.f32 %v2156
    %2158 = vmatprep.subr.mxu0 0.0
    %2159 = vmatpush1.msra.mxu0 %v164
    %2160 = vmatprep.subr.mxu0 0.0
    %2161 = vmatpush1.msra.mxu0 %v165
    %2162 = vmatprep.subr.mxu0 0.0
    %2163 = vmatpush1.msra.mxu0 %v166
    %2164 = vmatprep.subr.mxu0 0.0
    %2165 = vmatpush1.msra.mxu0 %v167
    %2166 = vmatprep.subr.mxu0 0.0
    %2167 = vmatpush1.msra.mxu0 %v168
    %2168 = vmatprep.subr.mxu0 0.0
    %2169 = vmatpush1.msra.mxu0 %v169
    %2170 = vmatprep.subr.mxu0 0.0
    %2171 = vmatpush1.msra.mxu0 %v170
    %2172 = vmatprep.subr.mxu0 0.0
    %2173 = vmatpush1.msra.mxu0 %v171
    %2174 = vmatprep.subr.mxu0 0.0
    %2175 = vmatpush1.msra.mxu0 %v172
    %2176 = vmatprep.subr.mxu0 0.0
    %2177 = vmatpush1.msra.mxu0 %v173
    %2178 = vmatprep.subr.mxu0 0.0
    %2179 = vmatpush1.msra.mxu0 %v174
    %2180 = vmatprep.subr.mxu0 0.0
    %2181 = vmatpush1.msra.mxu0 %v175
    %2182 = vmatprep.subr.mxu0 0.0
    %2183 = vmatpush1.msra.mxu0 %v176
    %2184 = vmatprep.subr.mxu0 0.0
    %2185 = vmatpush1.msra.mxu0 %v177
    %2186 = vmatprep.subr.mxu0 0.0
    %2187 = vmatpush1.msra.mxu0 %v178
    %2188 = vmatprep.subr.mxu0 0.0
    %2189 = vmatpush1.msra.mxu0 %v179
    %2190 = vmatprep.subr.mxu0 0.0
    %2191 = vmatpush1.msra.mxu0 0.0
    %2192 = vmatprep.subr.mxu0 0.0
    %2193 = vmatpush1.msra.mxu0 0.0
    %2194 = vmatprep.subr.mxu0 0.0
    %2195 = vmatpush1.msra.mxu0 0.0
    %2196 = vmatprep.subr.mxu0 0.0
    %2197 = vmatpush1.msra.mxu0 0.0
    %2198 = vmatprep.subr.mxu0 0.0
    %2199 = vmatpush1.msra.mxu0 0.0
    %2200 = vmatprep.subr.mxu0 0.0
    %2201 = vmatpush1.msra.mxu0 0.0
    %2202 = vmatprep.subr.mxu0 0.0
    %2203 = vmatpush1.msra.mxu0 0.0
    %2204 = vmatprep.subr.mxu0 0.0
    %2205 = vmatpush1.msra.mxu0 0.0
    %2206 = vmatprep.subr.mxu0 0.0
    %2207 = vmatpush1.msra.mxu0 0.0
    %2208 = vmatprep.subr.mxu0 0.0
    %2209 = vmatpush1.msra.mxu0 0.0
    %2210 = vmatprep.subr.mxu0 0.0
    %2211 = vmatpush1.msra.mxu0 0.0
    %2212 = vmatprep.subr.mxu0 0.0
    %2213 = vmatpush1.msra.mxu0 0.0
    %2214 = vmatprep.subr.mxu0 0.0
    %2215 = vmatpush1.msra.mxu0 0.0
    %2216 = vmatprep.subr.mxu0 0.0
    %2217 = vmatpush1.msra.mxu0 0.0
    %2218 = vmatprep.subr.mxu0 0.0
    %2219 = vmatpush1.msra.mxu0 0.0
    %2220 = vmatprep.subr.mxu0 0.0
    %2221 = vmatpush1.msra.mxu0 0.0
    %2222 = vmatprep.mubr.f32.mxu0 0.0
    %2223 = vmatmul.mubr.f32.gmra.mrb[0].mxu0 %v2157
    %v2224 = vpop.f32.mrb[0].mxu0
    %v2225 = vadd.f32 %v162, %v2224
    %v2226 = vpop.f32.mrb[0].mxu0
    %2227 = vdwg.mxu0
    %v2228 = vmul.f32 %v2144, 0.9
    %v2229 = vadd.f32 %v2228, %v2225
    %v2230 = vsub.f32 %v2229, %v2147
    %vm2231 = vcmp.gt.f32.partialorder %v2230, 1.0
    %v2232 = vsel %vm2231, 1, 0
    %v2233 = vcvt.s32.f32 %v2232
    %s2234 = scalar_lea.vmem [#allocation8], 184
    %2235 = vst [vmem:[%s2234] sm:$0xff] %v2233
    %s2236 = scalar_lea.vmem [#allocation9], 184
    %2237 = vst [vmem:[%s2236] sm:$0xff] %v2230
    %v2238 = vmul.f32 %v2154, 0.9
    %v2239 = vadd.f32 %v2238, %v154
    %v2240 = vsub.f32 %v2239, %v2157
    %vm2241 = vcmp.gt.f32.partialorder %v2240, 1.0
    %v2242 = vsel %vm2241, 1, 0
    %v2243 = vcvt.s32.f32 %v2242
    %2244 = vmatprep.subr.mxu0 0.0
    %2245 = vmatpush1.msra.mxu0 %v164
    %2246 = vmatprep.subr.mxu0 0.0
    %2247 = vmatpush1.msra.mxu0 %v165
    %2248 = vmatprep.subr.mxu0 0.0
    %2249 = vmatpush1.msra.mxu0 %v166
    %2250 = vmatprep.subr.mxu0 0.0
    %2251 = vmatpush1.msra.mxu0 %v167
    %2252 = vmatprep.subr.mxu0 0.0
    %2253 = vmatpush1.msra.mxu0 %v168
    %2254 = vmatprep.subr.mxu0 0.0
    %2255 = vmatpush1.msra.mxu0 %v169
    %2256 = vmatprep.subr.mxu0 0.0
    %2257 = vmatpush1.msra.mxu0 %v170
    %2258 = vmatprep.subr.mxu0 0.0
    %2259 = vmatpush1.msra.mxu0 %v171
    %2260 = vmatprep.subr.mxu0 0.0
    %2261 = vmatpush1.msra.mxu0 %v172
    %2262 = vmatprep.subr.mxu0 0.0
    %2263 = vmatpush1.msra.mxu0 %v173
    %2264 = vmatprep.subr.mxu0 0.0
    %2265 = vmatpush1.msra.mxu0 %v174
    %2266 = vmatprep.subr.mxu0 0.0
    %2267 = vmatpush1.msra.mxu0 %v175
    %2268 = vmatprep.subr.mxu0 0.0
    %2269 = vmatpush1.msra.mxu0 %v176
    %2270 = vmatprep.subr.mxu0 0.0
    %2271 = vmatpush1.msra.mxu0 %v177
    %2272 = vmatprep.subr.mxu0 0.0
    %2273 = vmatpush1.msra.mxu0 %v178
    %2274 = vmatprep.subr.mxu0 0.0
    %2275 = vmatpush1.msra.mxu0 %v179
    %2276 = vmatprep.subr.mxu0 0.0
    %2277 = vmatpush1.msra.mxu0 0.0
    %2278 = vmatprep.subr.mxu0 0.0
    %2279 = vmatpush1.msra.mxu0 0.0
    %2280 = vmatprep.subr.mxu0 0.0
    %2281 = vmatpush1.msra.mxu0 0.0
    %2282 = vmatprep.subr.mxu0 0.0
    %2283 = vmatpush1.msra.mxu0 0.0
    %2284 = vmatprep.subr.mxu0 0.0
    %2285 = vmatpush1.msra.mxu0 0.0
    %2286 = vmatprep.subr.mxu0 0.0
    %2287 = vmatpush1.msra.mxu0 0.0
    %2288 = vmatprep.subr.mxu0 0.0
    %2289 = vmatpush1.msra.mxu0 0.0
    %2290 = vmatprep.subr.mxu0 0.0
    %2291 = vmatpush1.msra.mxu0 0.0
    %2292 = vmatprep.subr.mxu0 0.0
    %2293 = vmatpush1.msra.mxu0 0.0
    %2294 = vmatprep.subr.mxu0 0.0
    %2295 = vmatpush1.msra.mxu0 0.0
    %2296 = vmatprep.subr.mxu0 0.0
    %2297 = vmatpush1.msra.mxu0 0.0
    %2298 = vmatprep.subr.mxu0 0.0
    %2299 = vmatpush1.msra.mxu0 0.0
    %2300 = vmatprep.subr.mxu0 0.0
    %2301 = vmatpush1.msra.mxu0 0.0
    %2302 = vmatprep.subr.mxu0 0.0
    %2303 = vmatpush1.msra.mxu0 0.0
    %2304 = vmatprep.subr.mxu0 0.0
    %2305 = vmatpush1.msra.mxu0 0.0
    %2306 = vmatprep.subr.mxu0 0.0
    %2307 = vmatpush1.msra.mxu0 0.0
    %2308 = vmatprep.mubr.f32.mxu0 0.0
    %2309 = vmatmul.mubr.f32.gmra.mrb[0].mxu0 %v2243
    %v2310 = vpop.f32.mrb[0].mxu0
    %v2311 = vadd.f32 %v162, %v2310
    %v2312 = vpop.f32.mrb[0].mxu0
    %2313 = vdwg.mxu0
    %v2314 = vmul.f32 %v2230, 0.9
    %v2315 = vadd.f32 %v2314, %v2311
    %v2316 = vsub.f32 %v2315, %v2233
    %vm2317 = vcmp.gt.f32.partialorder %v2316, 1.0
    %v2318 = vsel %vm2317, 1, 0
    %v2319 = vcvt.s32.f32 %v2318
    %s2320 = scalar_lea.vmem [#allocation8], 192
    %2321 = vst [vmem:[%s2320] sm:$0xff] %v2319
    %s2322 = scalar_lea.vmem [#allocation9], 192
    %2323 = vst [vmem:[%s2322] sm:$0xff] %v2316
    // Predicated region
    $region34: #{tpu_custom_call.1} parent=1 // pred_check
      _
    $region35: #{tpu_custom_call.1} parent=1 // pred_check_branch
      %2325 = sbr.rel (0) target = $region37
    $region36: #{tpu_custom_call.1} parent=1 // pred_region
      %s2327 = ssub.s32 3200, 3200
      %2328 = vsyncadd [#allocation4], %s2327
      %s2329 = sshll.u32 [#allocation8], 4
      %s2330 = int_to_ptr.vmem [resolvable:$true] %s2329
      %2335 = dma.vmem_to_hbm [thread:$0]  %s2330, 3200, %s5, [#allocation4], 128, 128, 8
    $region37: #{tpu_custom_call.1} parent=1 // pred_fallthru
      _
    // Predicated region
    $region38: #{tpu_custom_call.1} parent=1 // pred_check
      _
    $region39: #{tpu_custom_call.1} parent=1 // pred_check_branch
      %2337 = sbr.rel (0) target = $region41
    $region40: #{tpu_custom_call.1} parent=1 // pred_region
      %s2339 = ssub.s32 3200, 3200
      %2340 = vsyncadd [#allocation10], %s2339
      %s2341 = sshll.u32 [#allocation9], 4
      %s2342 = int_to_ptr.vmem [resolvable:$true] %s2341
      %2347 = dma.vmem_to_hbm [thread:$0]  %s2342, 3200, %s6, [#allocation10], 128, 128, 8
    $region41: #{tpu_custom_call.1} parent=1 // pred_fallthru
      _
    // Predicated region
    $region42: #{tpu_custom_call.1} parent=1 // pred_check
      _
    $region43: #{tpu_custom_call.1} parent=1 // pred_check_branch
      %2349 = sbr.rel (0) target = $region45
    $region44: #{tpu_custom_call.1} parent=1 // pred_region
      %2350 = dma.done [#allocation4], 3200
    $region45: #{tpu_custom_call.1} parent=1 // pred_fallthru
      _
    // Predicated region
    $region46: #{tpu_custom_call.1} parent=1 // pred_check
      _
    $region47: #{tpu_custom_call.1} parent=1 // pred_check_branch
      %2352 = sbr.rel (0) target = $region49
    $region48: #{tpu_custom_call.1} parent=1 // pred_region
      %2353 = dma.done [#allocation10], 3200
    $region49: #{tpu_custom_call.1} parent=1 // pred_fallthru
      _
    %2354 = vsyncpa [#allocation3], 1
    %2355 = vsyncpa [#allocation6], 1
    %2356 = vsyncpa [#allocation4], 1
    %2357 = vsyncpa [#allocation10], 1

</llo_original>
